<compile_context>
chip_gen: v7x
topology: tpu7x:2x2x1
jax: 0.10.0
libtpu: 0.0.40
codegen_flags: <defaults>
</compile_context>

<pallas_src>
import jax
import jax.numpy as jnp
from jax.experimental import pallas as pl
from jax.experimental.pallas import tpu as pltpu


def convdu_kernel(x_ref, w_ref, b_ref, o_ref, s_ref):
    """x_ref / o_ref: (H, C, TM); w_ref: (C_out, C_in); b_ref: (C_out, 1);
    s_ref: f32 VMEM scratch (H, C, TM) holding down-sweep intermediates."""
    h = x_ref.shape[0]
    out_dtype = o_ref.dtype

    # Hoisted: weight / bias stay resident across both sweeps.
    w = w_ref[...].astype(jnp.float32)
    b = b_ref[...].astype(jnp.float32)            # (C, 1), broadcasts over lanes

    def conv(s):                                  # s: (C_in, TM) f32
        y = jnp.dot(w, s, preferred_element_type=jnp.float32) + b
        return jnp.maximum(y, 0.0)

    # ---- Down sweep: s[0] = x[0]; s[i] = relu(W s[i-1] + b) + x[i] ----------
    # TODO(synk): for very large static H, switch both sweeps to
    #             lax.fori_loop(..., unroll=k) to bound code size.
    s = x_ref[0].astype(jnp.float32)
    if h > 1:
        s_ref[0] = s
    for i in range(1, h):
        s = conv(s) + x_ref[i].astype(jnp.float32)
        if i < h - 1:
            s_ref[i] = s                          # needed again by the up sweep
    o_ref[h - 1] = s.astype(out_dtype)

    # ---- Up sweep: for pos = H-2..0: out[pos] = relu(W out[pos+1] + b) + down[pos]
    for pos in range(h - 2, -1, -1):
        s = conv(s) + s_ref[pos]
        o_ref[pos] = s.astype(out_dtype)


def _pick_tile_m(m, h, c, itemsize, budget_bytes=18 * 1024 * 1024):
    """Largest TM keeping (2x in + 2x out double-buffers + f32 scratch) blocks
    under the VMEM budget; multiples of 128 when actually tiling."""
    per_col = h * c * (4 * itemsize + 4)
    tm_max = max(1, budget_bytes // per_col)
    if m <= tm_max:
        return m
    t = (min(tm_max, m) // 128) * 128
    while t >= 128:
        if m % t == 0:
            return t
        t -= 128
    # TODO(synk): ragged (non-128-divisible) M tiling with padded edge blocks.
    return m


def convdu_pallas(x_nchw, conv_weight, conv_bias):
    """x_nchw: (N, C, H, W); conv_weight: (C, C, KH, 1); conv_bias: (C,)."""
    n, c, h, w = x_nchw.shape
    c_out, c_in, kh, kw = conv_weight.shape
    # The center-tap collapse is only valid for convDU's usage pattern:
    # height-1 slices, (KH, 1) kernel, padding ((KH-1)//2, 0).
    assert c_out == c and c_in == c and kw == 1 and kh % 2 == 1, (
        "convDU expects a square-channel (KH, 1) kernel with odd KH")

    w_mid = conv_weight[:, :, kh // 2, 0].astype(jnp.float32)   # (C_out, C_in)
    b2d = conv_bias.reshape(c, 1).astype(jnp.float32)

    m = n * w
    # (N, C, H, W) -> (H, C, N*W): puts the big parallel axis on the lanes.
    x_t = jnp.transpose(x_nchw, (2, 1, 0, 3)).reshape(h, c, m)

    tm = _pick_tile_m(m, h, c, x_nchw.dtype.itemsize)
    grid = (m // tm,)

    out_t = pl.pallas_call(
        convdu_kernel,
        out_shape=jax.ShapeDtypeStruct((h, c, m), x_nchw.dtype),
        grid_spec=pltpu.PrefetchScalarGridSpec(
            num_scalar_prefetch=0,
            grid=grid,
            in_specs=[
                pl.BlockSpec((h, c, tm), lambda i: (0, 0, i)),  # features
                pl.BlockSpec((c, c), lambda i: (0, 0)),         # center-tap W
                pl.BlockSpec((c, 1), lambda i: (0, 0)),         # bias
            ],
            out_specs=pl.BlockSpec((h, c, tm), lambda i: (0, 0, i)),
            scratch_shapes=[pltpu.VMEM((h, c, tm), jnp.float32)],
        ),
        compiler_params=pltpu.CompilerParams(
            # M tiles are independent -> megacore-shardable on v7x.
            dimension_semantics=("parallel",),
            vmem_limit_bytes=48 * 1024 * 1024,
        ),
    )(x_t, w_mid, b2d)

    # (H, C, N*W) -> (N, C, H, W)
    return jnp.transpose(out_t.reshape(h, c, n, w), (2, 1, 0, 3))


def convdu_reference(x_nchw, conv_weight, conv_bias):
    """Pure-JAX reference mirroring the PyTorch loop semantics."""
    n, c, h, w = x_nchw.shape
    kh = conv_weight.shape[2]
    w_mid = conv_weight[:, :, kh // 2, 0]

    def conv(row):  # row: (n, c, w)
        y = jnp.einsum('oc,ncw->now', w_mid, row) + conv_bias[None, :, None]
        return jnp.maximum(y, 0.0)

    stack = [x_nchw[:, :, 0, :]]
    for i in range(1, h):
        stack.append(conv(stack[i - 1]) + x_nchw[:, :, i, :])
    for i in range(h):
        pos = h - i - 1
        if pos == h - 1:
            continue
        stack[pos] = conv(stack[pos + 1]) + stack[pos]
    return jnp.stack(stack, axis=2)


if __name__ == "__main__":
    key = jax.random.PRNGKey(0)
    k1, k2, k3 = jax.random.split(key, 3)

    n, c, h, w = 2, 4, 16, 16
    x = jax.random.normal(k1, (n, c, h, w), jnp.float32)
    # Deterministic synthetic Conv2d params: weight (C, C, 9, 1), bias (C,)
    fan_in = c * 9 * 1
    conv_weight = jax.random.normal(k2, (c, c, 9, 1), jnp.float32) / jnp.sqrt(fan_in)
    conv_bias = jax.random.normal(k3, (c,), jnp.float32) * 0.1

    out = jax.block_until_ready(convdu_pallas(x, conv_weight, conv_bias))

    ref = convdu_reference(x, conv_weight, conv_bias)
    assert out.shape == (n, c, h, w)
    assert jnp.allclose(out, ref, atol=1e-4, rtol=1e-4), float(
        jnp.max(jnp.abs(out - ref)))
    print("KERNEL_OK")
</pallas_src>

<mosaic_0001>
module attributes {stable_mosaic.version = 11 : i64} {
  func.func @convdu_kernel(%arg0: i32, %arg1: memref<16x4x32xf32, #tpu.memory_space<vmem>>, %arg2: memref<4x4xf32, #tpu.memory_space<vmem>>, %arg3: memref<4x1xf32, #tpu.memory_space<vmem>>, %arg4: memref<16x4x32xf32, #tpu.memory_space<vmem>>, %arg5: memref<16x4x32xf32, #tpu.memory_space<vmem>>) attributes {dimension_semantics = [#tpu.dimension_semantics<parallel>], iteration_bounds = array<i64: 1>, scalar_prefetch = 0 : i64, scratch_operands = 1 : i64, tpu.core_type = #tpu.core_type<tc>, window_params = [{transform_indices = @transform_0, window_bounds = array<i64: 16, 4, 32>}, {pipeline_mode = #tpu.pipeline_mode<synchronous>, transform_indices = @transform_1, window_bounds = array<i64: 4, 4>}, {pipeline_mode = #tpu.pipeline_mode<synchronous>, transform_indices = @transform_2, window_bounds = array<i64: 4, 1>}, {transform_indices = @transform_3, window_bounds = array<i64: 16, 4, 32>}]} {
    %c0 = arith.constant 0 : index
    %c0_0 = arith.constant 0 : index
    %0 = vector.load %arg2[%c0, %c0_0] : memref<4x4xf32, #tpu.memory_space<vmem>>, vector<4x4xf32>
    %c0_1 = arith.constant 0 : index
    %c0_2 = arith.constant 0 : index
    %1 = vector.load %arg3[%c0_1, %c0_2] : memref<4x1xf32, #tpu.memory_space<vmem>>, vector<4x1xf32>
    %c0_3 = arith.constant 0 : index
    %c0_4 = arith.constant 0 : index
    %c0_5 = arith.constant 0 : index
    %2 = vector.load %arg1[%c0_3, %c0_4, %c0_5] : memref<16x4x32xf32, #tpu.memory_space<vmem>>, vector<1x4x32xf32>
    %3 = vector.shape_cast %2 : vector<1x4x32xf32> to vector<4x32xf32>
    %c0_6 = arith.constant 0 : index
    %c0_7 = arith.constant 0 : index
    %c0_8 = arith.constant 0 : index
    %4 = vector.load %arg5[%c0_6, %c0_7, %c0_8] : memref<16x4x32xf32, #tpu.memory_space<vmem>>, vector<1x4x32xf32>
    %5 = vector.shape_cast %4 : vector<1x4x32xf32> to vector<4x32xf32>
    %6 = vector.shape_cast %3 : vector<4x32xf32> to vector<1x4x32xf32>
    tpu.vector_store %arg5[%c0_6, %c0_7, %c0_8], %6 {strides = array<i32>} : memref<16x4x32xf32, #tpu.memory_space<vmem>>, vector<1x4x32xf32>,
    %cst = arith.constant dense<0.000000e+00> : vector<4x32xf32>
    %7 = tpu.matmul %0, %3, %cst {dimension_numbers = #tpu.dot_dimension_numbers<[1], [0], [0], [1], [0, 0, 1, 1], [], []>} : vector<4x4xf32>, vector<4x32xf32>, vector<4x32xf32> -> vector<4x32xf32>
    %8 = vector.broadcast %1 : vector<4x1xf32> to vector<4x32xf32>
    %9 = arith.addf %7, %8 : vector<4x32xf32>
    %cst_9 = arith.constant 0.000000e+00 : f32
    %10 = vector.broadcast %cst_9 : f32 to vector<4x32xf32>
    %11 = arith.maximumf %9, %10 : vector<4x32xf32>
    %c1 = arith.constant 1 : index
    %c0_10 = arith.constant 0 : index
    %c0_11 = arith.constant 0 : index
    %12 = vector.load %arg1[%c1, %c0_10, %c0_11] : memref<16x4x32xf32, #tpu.memory_space<vmem>>, vector<1x4x32xf32>
    %13 = vector.shape_cast %12 : vector<1x4x32xf32> to vector<4x32xf32>
    %14 = arith.addf %11, %13 : vector<4x32xf32>
    %c1_12 = arith.constant 1 : index
    %c0_13 = arith.constant 0 : index
    %c0_14 = arith.constant 0 : index
    %15 = vector.load %arg5[%c1_12, %c0_13, %c0_14] : memref<16x4x32xf32, #tpu.memory_space<vmem>>, vector<1x4x32xf32>
    %16 = vector.shape_cast %15 : vector<1x4x32xf32> to vector<4x32xf32>
    %17 = vector.shape_cast %14 : vector<4x32xf32> to vector<1x4x32xf32>
    tpu.vector_store %arg5[%c1_12, %c0_13, %c0_14], %17 {strides = array<i32>} : memref<16x4x32xf32, #tpu.memory_space<vmem>>, vector<1x4x32xf32>,
    %cst_15 = arith.constant dense<0.000000e+00> : vector<4x32xf32>
    %18 = tpu.matmul %0, %14, %cst_15 {dimension_numbers = #tpu.dot_dimension_numbers<[1], [0], [0], [1], [0, 0, 1, 1], [], []>} : vector<4x4xf32>, vector<4x32xf32>, vector<4x32xf32> -> vector<4x32xf32>
    %19 = vector.broadcast %1 : vector<4x1xf32> to vector<4x32xf32>
    %20 = arith.addf %18, %19 : vector<4x32xf32>
    %cst_16 = arith.constant 0.000000e+00 : f32
    %21 = vector.broadcast %cst_16 : f32 to vector<4x32xf32>
    %22 = arith.maximumf %20, %21 : vector<4x32xf32>
    %c2 = arith.constant 2 : index
    %c0_17 = arith.constant 0 : index
    %c0_18 = arith.constant 0 : index
    %23 = vector.load %arg1[%c2, %c0_17, %c0_18] : memref<16x4x32xf32, #tpu.memory_space<vmem>>, vector<1x4x32xf32>
    %24 = vector.shape_cast %23 : vector<1x4x32xf32> to vector<4x32xf32>
    %25 = arith.addf %22, %24 : vector<4x32xf32>
    %c2_19 = arith.constant 2 : index
    %c0_20 = arith.constant 0 : index
    %c0_21 = arith.constant 0 : index
    %26 = vector.load %arg5[%c2_19, %c0_20, %c0_21] : memref<16x4x32xf32, #tpu.memory_space<vmem>>, vector<1x4x32xf32>
    %27 = vector.shape_cast %26 : vector<1x4x32xf32> to vector<4x32xf32>
    %28 = vector.shape_cast %25 : vector<4x32xf32> to vector<1x4x32xf32>
    tpu.vector_store %arg5[%c2_19, %c0_20, %c0_21], %28 {strides = array<i32>} : memref<16x4x32xf32, #tpu.memory_space<vmem>>, vector<1x4x32xf32>,
    %cst_22 = arith.constant dense<0.000000e+00> : vector<4x32xf32>
    %29 = tpu.matmul %0, %25, %cst_22 {dimension_numbers = #tpu.dot_dimension_numbers<[1], [0], [0], [1], [0, 0, 1, 1], [], []>} : vector<4x4xf32>, vector<4x32xf32>, vector<4x32xf32> -> vector<4x32xf32>
    %30 = vector.broadcast %1 : vector<4x1xf32> to vector<4x32xf32>
    %31 = arith.addf %29, %30 : vector<4x32xf32>
    %cst_23 = arith.constant 0.000000e+00 : f32
    %32 = vector.broadcast %cst_23 : f32 to vector<4x32xf32>
    %33 = arith.maximumf %31, %32 : vector<4x32xf32>
    %c3 = arith.constant 3 : index
    %c0_24 = arith.constant 0 : index
    %c0_25 = arith.constant 0 : index
    %34 = vector.load %arg1[%c3, %c0_24, %c0_25] : memref<16x4x32xf32, #tpu.memory_space<vmem>>, vector<1x4x32xf32>
    %35 = vector.shape_cast %34 : vector<1x4x32xf32> to vector<4x32xf32>
    %36 = arith.addf %33, %35 : vector<4x32xf32>
    %c3_26 = arith.constant 3 : index
    %c0_27 = arith.constant 0 : index
    %c0_28 = arith.constant 0 : index
    %37 = vector.load %arg5[%c3_26, %c0_27, %c0_28] : memref<16x4x32xf32, #tpu.memory_space<vmem>>, vector<1x4x32xf32>
    %38 = vector.shape_cast %37 : vector<1x4x32xf32> to vector<4x32xf32>
    %39 = vector.shape_cast %36 : vector<4x32xf32> to vector<1x4x32xf32>
    tpu.vector_store %arg5[%c3_26, %c0_27, %c0_28], %39 {strides = array<i32>} : memref<16x4x32xf32, #tpu.memory_space<vmem>>, vector<1x4x32xf32>,
    %cst_29 = arith.constant dense<0.000000e+00> : vector<4x32xf32>
    %40 = tpu.matmul %0, %36, %cst_29 {dimension_numbers = #tpu.dot_dimension_numbers<[1], [0], [0], [1], [0, 0, 1, 1], [], []>} : vector<4x4xf32>, vector<4x32xf32>, vector<4x32xf32> -> vector<4x32xf32>
    %41 = vector.broadcast %1 : vector<4x1xf32> to vector<4x32xf32>
    %42 = arith.addf %40, %41 : vector<4x32xf32>
    %cst_30 = arith.constant 0.000000e+00 : f32
    %43 = vector.broadcast %cst_30 : f32 to vector<4x32xf32>
    %44 = arith.maximumf %42, %43 : vector<4x32xf32>
    %c4 = arith.constant 4 : index
    %c0_31 = arith.constant 0 : index
    %c0_32 = arith.constant 0 : index
    %45 = vector.load %arg1[%c4, %c0_31, %c0_32] : memref<16x4x32xf32, #tpu.memory_space<vmem>>, vector<1x4x32xf32>
    %46 = vector.shape_cast %45 : vector<1x4x32xf32> to vector<4x32xf32>
    %47 = arith.addf %44, %46 : vector<4x32xf32>
    %c4_33 = arith.constant 4 : index
    %c0_34 = arith.constant 0 : index
    %c0_35 = arith.constant 0 : index
    %48 = vector.load %arg5[%c4_33, %c0_34, %c0_35] : memref<16x4x32xf32, #tpu.memory_space<vmem>>, vector<1x4x32xf32>
    %49 = vector.shape_cast %48 : vector<1x4x32xf32> to vector<4x32xf32>
    %50 = vector.shape_cast %47 : vector<4x32xf32> to vector<1x4x32xf32>
    tpu.vector_store %arg5[%c4_33, %c0_34, %c0_35], %50 {strides = array<i32>} : memref<16x4x32xf32, #tpu.memory_space<vmem>>, vector<1x4x32xf32>,
    %cst_36 = arith.constant dense<0.000000e+00> : vector<4x32xf32>
    %51 = tpu.matmul %0, %47, %cst_36 {dimension_numbers = #tpu.dot_dimension_numbers<[1], [0], [0], [1], [0, 0, 1, 1], [], []>} : vector<4x4xf32>, vector<4x32xf32>, vector<4x32xf32> -> vector<4x32xf32>
    %52 = vector.broadcast %1 : vector<4x1xf32> to vector<4x32xf32>
    %53 = arith.addf %51, %52 : vector<4x32xf32>
    %cst_37 = arith.constant 0.000000e+00 : f32
    %54 = vector.broadcast %cst_37 : f32 to vector<4x32xf32>
    %55 = arith.maximumf %53, %54 : vector<4x32xf32>
    %c5 = arith.constant 5 : index
    %c0_38 = arith.constant 0 : index
    %c0_39 = arith.constant 0 : index
    %56 = vector.load %arg1[%c5, %c0_38, %c0_39] : memref<16x4x32xf32, #tpu.memory_space<vmem>>, vector<1x4x32xf32>
    %57 = vector.shape_cast %56 : vector<1x4x32xf32> to vector<4x32xf32>
    %58 = arith.addf %55, %57 : vector<4x32xf32>
    %c5_40 = arith.constant 5 : index
    %c0_41 = arith.constant 0 : index
    %c0_42 = arith.constant 0 : index
    %59 = vector.load %arg5[%c5_40, %c0_41, %c0_42] : memref<16x4x32xf32, #tpu.memory_space<vmem>>, vector<1x4x32xf32>
    %60 = vector.shape_cast %59 : vector<1x4x32xf32> to vector<4x32xf32>
    %61 = vector.shape_cast %58 : vector<4x32xf32> to vector<1x4x32xf32>
    tpu.vector_store %arg5[%c5_40, %c0_41, %c0_42], %61 {strides = array<i32>} : memref<16x4x32xf32, #tpu.memory_space<vmem>>, vector<1x4x32xf32>,
    %cst_43 = arith.constant dense<0.000000e+00> : vector<4x32xf32>
    %62 = tpu.matmul %0, %58, %cst_43 {dimension_numbers = #tpu.dot_dimension_numbers<[1], [0], [0], [1], [0, 0, 1, 1], [], []>} : vector<4x4xf32>, vector<4x32xf32>, vector<4x32xf32> -> vector<4x32xf32>
    %63 = vector.broadcast %1 : vector<4x1xf32> to vector<4x32xf32>
    %64 = arith.addf %62, %63 : vector<4x32xf32>
    %cst_44 = arith.constant 0.000000e+00 : f32
    %65 = vector.broadcast %cst_44 : f32 to vector<4x32xf32>
    %66 = arith.maximumf %64, %65 : vector<4x32xf32>
    %c6 = arith.constant 6 : index
    %c0_45 = arith.constant 0 : index
    %c0_46 = arith.constant 0 : index
    %67 = vector.load %arg1[%c6, %c0_45, %c0_46] : memref<16x4x32xf32, #tpu.memory_space<vmem>>, vector<1x4x32xf32>
    %68 = vector.shape_cast %67 : vector<1x4x32xf32> to vector<4x32xf32>
    %69 = arith.addf %66, %68 : vector<4x32xf32>
    %c6_47 = arith.constant 6 : index
    %c0_48 = arith.constant 0 : index
    %c0_49 = arith.constant 0 : index
    %70 = vector.load %arg5[%c6_47, %c0_48, %c0_49] : memref<16x4x32xf32, #tpu.memory_space<vmem>>, vector<1x4x32xf32>
    %71 = vector.shape_cast %70 : vector<1x4x32xf32> to vector<4x32xf32>
    %72 = vector.shape_cast %69 : vector<4x32xf32> to vector<1x4x32xf32>
    tpu.vector_store %arg5[%c6_47, %c0_48, %c0_49], %72 {strides = array<i32>} : memref<16x4x32xf32, #tpu.memory_space<vmem>>, vector<1x4x32xf32>,
    %cst_50 = arith.constant dense<0.000000e+00> : vector<4x32xf32>
    %73 = tpu.matmul %0, %69, %cst_50 {dimension_numbers = #tpu.dot_dimension_numbers<[1], [0], [0], [1], [0, 0, 1, 1], [], []>} : vector<4x4xf32>, vector<4x32xf32>, vector<4x32xf32> -> vector<4x32xf32>
    %74 = vector.broadcast %1 : vector<4x1xf32> to vector<4x32xf32>
    %75 = arith.addf %73, %74 : vector<4x32xf32>
    %cst_51 = arith.constant 0.000000e+00 : f32
    %76 = vector.broadcast %cst_51 : f32 to vector<4x32xf32>
    %77 = arith.maximumf %75, %76 : vector<4x32xf32>
    %c7 = arith.constant 7 : index
    %c0_52 = arith.constant 0 : index
    %c0_53 = arith.constant 0 : index
    %78 = vector.load %arg1[%c7, %c0_52, %c0_53] : memref<16x4x32xf32, #tpu.memory_space<vmem>>, vector<1x4x32xf32>
    %79 = vector.shape_cast %78 : vector<1x4x32xf32> to vector<4x32xf32>
    %80 = arith.addf %77, %79 : vector<4x32xf32>
    %c7_54 = arith.constant 7 : index
    %c0_55 = arith.constant 0 : index
    %c0_56 = arith.constant 0 : index
    %81 = vector.load %arg5[%c7_54, %c0_55, %c0_56] : memref<16x4x32xf32, #tpu.memory_space<vmem>>, vector<1x4x32xf32>
    %82 = vector.shape_cast %81 : vector<1x4x32xf32> to vector<4x32xf32>
    %83 = vector.shape_cast %80 : vector<4x32xf32> to vector<1x4x32xf32>
    tpu.vector_store %arg5[%c7_54, %c0_55, %c0_56], %83 {strides = array<i32>} : memref<16x4x32xf32, #tpu.memory_space<vmem>>, vector<1x4x32xf32>,
    %cst_57 = arith.constant dense<0.000000e+00> : vector<4x32xf32>
    %84 = tpu.matmul %0, %80, %cst_57 {dimension_numbers = #tpu.dot_dimension_numbers<[1], [0], [0], [1], [0, 0, 1, 1], [], []>} : vector<4x4xf32>, vector<4x32xf32>, vector<4x32xf32> -> vector<4x32xf32>
    %85 = vector.broadcast %1 : vector<4x1xf32> to vector<4x32xf32>
    %86 = arith.addf %84, %85 : vector<4x32xf32>
    %cst_58 = arith.constant 0.000000e+00 : f32
    %87 = vector.broadcast %cst_58 : f32 to vector<4x32xf32>
    %88 = arith.maximumf %86, %87 : vector<4x32xf32>
    %c8 = arith.constant 8 : index
    %c0_59 = arith.constant 0 : index
    %c0_60 = arith.constant 0 : index
    %89 = vector.load %arg1[%c8, %c0_59, %c0_60] : memref<16x4x32xf32, #tpu.memory_space<vmem>>, vector<1x4x32xf32>
    %90 = vector.shape_cast %89 : vector<1x4x32xf32> to vector<4x32xf32>
    %91 = arith.addf %88, %90 : vector<4x32xf32>
    %c8_61 = arith.constant 8 : index
    %c0_62 = arith.constant 0 : index
    %c0_63 = arith.constant 0 : index
    %92 = vector.load %arg5[%c8_61, %c0_62, %c0_63] : memref<16x4x32xf32, #tpu.memory_space<vmem>>, vector<1x4x32xf32>
    %93 = vector.shape_cast %92 : vector<1x4x32xf32> to vector<4x32xf32>
    %94 = vector.shape_cast %91 : vector<4x32xf32> to vector<1x4x32xf32>
    tpu.vector_store %arg5[%c8_61, %c0_62, %c0_63], %94 {strides = array<i32>} : memref<16x4x32xf32, #tpu.memory_space<vmem>>, vector<1x4x32xf32>,
    %cst_64 = arith.constant dense<0.000000e+00> : vector<4x32xf32>
    %95 = tpu.matmul %0, %91, %cst_64 {dimension_numbers = #tpu.dot_dimension_numbers<[1], [0], [0], [1], [0, 0, 1, 1], [], []>} : vector<4x4xf32>, vector<4x32xf32>, vector<4x32xf32> -> vector<4x32xf32>
    %96 = vector.broadcast %1 : vector<4x1xf32> to vector<4x32xf32>
    %97 = arith.addf %95, %96 : vector<4x32xf32>
    %cst_65 = arith.constant 0.000000e+00 : f32
    %98 = vector.broadcast %cst_65 : f32 to vector<4x32xf32>
    %99 = arith.maximumf %97, %98 : vector<4x32xf32>
    %c9 = arith.constant 9 : index
    %c0_66 = arith.constant 0 : index
    %c0_67 = arith.constant 0 : index
    %100 = vector.load %arg1[%c9, %c0_66, %c0_67] : memref<16x4x32xf32, #tpu.memory_space<vmem>>, vector<1x4x32xf32>
    %101 = vector.shape_cast %100 : vector<1x4x32xf32> to vector<4x32xf32>
    %102 = arith.addf %99, %101 : vector<4x32xf32>
    %c9_68 = arith.constant 9 : index
    %c0_69 = arith.constant 0 : index
    %c0_70 = arith.constant 0 : index
    %103 = vector.load %arg5[%c9_68, %c0_69, %c0_70] : memref<16x4x32xf32, #tpu.memory_space<vmem>>, vector<1x4x32xf32>
    %104 = vector.shape_cast %103 : vector<1x4x32xf32> to vector<4x32xf32>
    %105 = vector.shape_cast %102 : vector<4x32xf32> to vector<1x4x32xf32>
    tpu.vector_store %arg5[%c9_68, %c0_69, %c0_70], %105 {strides = array<i32>} : memref<16x4x32xf32, #tpu.memory_space<vmem>>, vector<1x4x32xf32>,
    %cst_71 = arith.constant dense<0.000000e+00> : vector<4x32xf32>
    %106 = tpu.matmul %0, %102, %cst_71 {dimension_numbers = #tpu.dot_dimension_numbers<[1], [0], [0], [1], [0, 0, 1, 1], [], []>} : vector<4x4xf32>, vector<4x32xf32>, vector<4x32xf32> -> vector<4x32xf32>
    %107 = vector.broadcast %1 : vector<4x1xf32> to vector<4x32xf32>
    %108 = arith.addf %106, %107 : vector<4x32xf32>
    %cst_72 = arith.constant 0.000000e+00 : f32
    %109 = vector.broadcast %cst_72 : f32 to vector<4x32xf32>
    %110 = arith.maximumf %108, %109 : vector<4x32xf32>
    %c10 = arith.constant 10 : index
    %c0_73 = arith.constant 0 : index
    %c0_74 = arith.constant 0 : index
    %111 = vector.load %arg1[%c10, %c0_73, %c0_74] : memref<16x4x32xf32, #tpu.memory_space<vmem>>, vector<1x4x32xf32>
    %112 = vector.shape_cast %111 : vector<1x4x32xf32> to vector<4x32xf32>
    %113 = arith.addf %110, %112 : vector<4x32xf32>
    %c10_75 = arith.constant 10 : index
    %c0_76 = arith.constant 0 : index
    %c0_77 = arith.constant 0 : index
    %114 = vector.load %arg5[%c10_75, %c0_76, %c0_77] : memref<16x4x32xf32, #tpu.memory_space<vmem>>, vector<1x4x32xf32>
    %115 = vector.shape_cast %114 : vector<1x4x32xf32> to vector<4x32xf32>
    %116 = vector.shape_cast %113 : vector<4x32xf32> to vector<1x4x32xf32>
    tpu.vector_store %arg5[%c10_75, %c0_76, %c0_77], %116 {strides = array<i32>} : memref<16x4x32xf32, #tpu.memory_space<vmem>>, vector<1x4x32xf32>,
    %cst_78 = arith.constant dense<0.000000e+00> : vector<4x32xf32>
    %117 = tpu.matmul %0, %113, %cst_78 {dimension_numbers = #tpu.dot_dimension_numbers<[1], [0], [0], [1], [0, 0, 1, 1], [], []>} : vector<4x4xf32>, vector<4x32xf32>, vector<4x32xf32> -> vector<4x32xf32>
    %118 = vector.broadcast %1 : vector<4x1xf32> to vector<4x32xf32>
    %119 = arith.addf %117, %118 : vector<4x32xf32>
    %cst_79 = arith.constant 0.000000e+00 : f32
    %120 = vector.broadcast %cst_79 : f32 to vector<4x32xf32>
    %121 = arith.maximumf %119, %120 : vector<4x32xf32>
    %c11 = arith.constant 11 : index
    %c0_80 = arith.constant 0 : index
    %c0_81 = arith.constant 0 : index
    %122 = vector.load %arg1[%c11, %c0_80, %c0_81] : memref<16x4x32xf32, #tpu.memory_space<vmem>>, vector<1x4x32xf32>
    %123 = vector.shape_cast %122 : vector<1x4x32xf32> to vector<4x32xf32>
    %124 = arith.addf %121, %123 : vector<4x32xf32>
    %c11_82 = arith.constant 11 : index
    %c0_83 = arith.constant 0 : index
    %c0_84 = arith.constant 0 : index
    %125 = vector.load %arg5[%c11_82, %c0_83, %c0_84] : memref<16x4x32xf32, #tpu.memory_space<vmem>>, vector<1x4x32xf32>
    %126 = vector.shape_cast %125 : vector<1x4x32xf32> to vector<4x32xf32>
    %127 = vector.shape_cast %124 : vector<4x32xf32> to vector<1x4x32xf32>
    tpu.vector_store %arg5[%c11_82, %c0_83, %c0_84], %127 {strides = array<i32>} : memref<16x4x32xf32, #tpu.memory_space<vmem>>, vector<1x4x32xf32>,
    %cst_85 = arith.constant dense<0.000000e+00> : vector<4x32xf32>
    %128 = tpu.matmul %0, %124, %cst_85 {dimension_numbers = #tpu.dot_dimension_numbers<[1], [0], [0], [1], [0, 0, 1, 1], [], []>} : vector<4x4xf32>, vector<4x32xf32>, vector<4x32xf32> -> vector<4x32xf32>
    %129 = vector.broadcast %1 : vector<4x1xf32> to vector<4x32xf32>
    %130 = arith.addf %128, %129 : vector<4x32xf32>
    %cst_86 = arith.constant 0.000000e+00 : f32
    %131 = vector.broadcast %cst_86 : f32 to vector<4x32xf32>
    %132 = arith.maximumf %130, %131 : vector<4x32xf32>
    %c12 = arith.constant 12 : index
    %c0_87 = arith.constant 0 : index
    %c0_88 = arith.constant 0 : index
    %133 = vector.load %arg1[%c12, %c0_87, %c0_88] : memref<16x4x32xf32, #tpu.memory_space<vmem>>, vector<1x4x32xf32>
    %134 = vector.shape_cast %133 : vector<1x4x32xf32> to vector<4x32xf32>
    %135 = arith.addf %132, %134 : vector<4x32xf32>
    %c12_89 = arith.constant 12 : index
    %c0_90 = arith.constant 0 : index
    %c0_91 = arith.constant 0 : index
    %136 = vector.load %arg5[%c12_89, %c0_90, %c0_91] : memref<16x4x32xf32, #tpu.memory_space<vmem>>, vector<1x4x32xf32>
    %137 = vector.shape_cast %136 : vector<1x4x32xf32> to vector<4x32xf32>
    %138 = vector.shape_cast %135 : vector<4x32xf32> to vector<1x4x32xf32>
    tpu.vector_store %arg5[%c12_89, %c0_90, %c0_91], %138 {strides = array<i32>} : memref<16x4x32xf32, #tpu.memory_space<vmem>>, vector<1x4x32xf32>,
    %cst_92 = arith.constant dense<0.000000e+00> : vector<4x32xf32>
    %139 = tpu.matmul %0, %135, %cst_92 {dimension_numbers = #tpu.dot_dimension_numbers<[1], [0], [0], [1], [0, 0, 1, 1], [], []>} : vector<4x4xf32>, vector<4x32xf32>, vector<4x32xf32> -> vector<4x32xf32>
    %140 = vector.broadcast %1 : vector<4x1xf32> to vector<4x32xf32>
    %141 = arith.addf %139, %140 : vector<4x32xf32>
    %cst_93 = arith.constant 0.000000e+00 : f32
    %142 = vector.broadcast %cst_93 : f32 to vector<4x32xf32>
    %143 = arith.maximumf %141, %142 : vector<4x32xf32>
    %c13 = arith.constant 13 : index
    %c0_94 = arith.constant 0 : index
    %c0_95 = arith.constant 0 : index
    %144 = vector.load %arg1[%c13, %c0_94, %c0_95] : memref<16x4x32xf32, #tpu.memory_space<vmem>>, vector<1x4x32xf32>
    %145 = vector.shape_cast %144 : vector<1x4x32xf32> to vector<4x32xf32>
    %146 = arith.addf %143, %145 : vector<4x32xf32>
    %c13_96 = arith.constant 13 : index
    %c0_97 = arith.constant 0 : index
    %c0_98 = arith.constant 0 : index
    %147 = vector.load %arg5[%c13_96, %c0_97, %c0_98] : memref<16x4x32xf32, #tpu.memory_space<vmem>>, vector<1x4x32xf32>
    %148 = vector.shape_cast %147 : vector<1x4x32xf32> to vector<4x32xf32>
    %149 = vector.shape_cast %146 : vector<4x32xf32> to vector<1x4x32xf32>
    tpu.vector_store %arg5[%c13_96, %c0_97, %c0_98], %149 {strides = array<i32>} : memref<16x4x32xf32, #tpu.memory_space<vmem>>, vector<1x4x32xf32>,
    %cst_99 = arith.constant dense<0.000000e+00> : vector<4x32xf32>
    %150 = tpu.matmul %0, %146, %cst_99 {dimension_numbers = #tpu.dot_dimension_numbers<[1], [0], [0], [1], [0, 0, 1, 1], [], []>} : vector<4x4xf32>, vector<4x32xf32>, vector<4x32xf32> -> vector<4x32xf32>
    %151 = vector.broadcast %1 : vector<4x1xf32> to vector<4x32xf32>
    %152 = arith.addf %150, %151 : vector<4x32xf32>
    %cst_100 = arith.constant 0.000000e+00 : f32
    %153 = vector.broadcast %cst_100 : f32 to vector<4x32xf32>
    %154 = arith.maximumf %152, %153 : vector<4x32xf32>
    %c14 = arith.constant 14 : index
    %c0_101 = arith.constant 0 : index
    %c0_102 = arith.constant 0 : index
    %155 = vector.load %arg1[%c14, %c0_101, %c0_102] : memref<16x4x32xf32, #tpu.memory_space<vmem>>, vector<1x4x32xf32>
    %156 = vector.shape_cast %155 : vector<1x4x32xf32> to vector<4x32xf32>
    %157 = arith.addf %154, %156 : vector<4x32xf32>
    %c14_103 = arith.constant 14 : index
    %c0_104 = arith.constant 0 : index
    %c0_105 = arith.constant 0 : index
    %158 = vector.load %arg5[%c14_103, %c0_104, %c0_105] : memref<16x4x32xf32, #tpu.memory_space<vmem>>, vector<1x4x32xf32>
    %159 = vector.shape_cast %158 : vector<1x4x32xf32> to vector<4x32xf32>
    %160 = vector.shape_cast %157 : vector<4x32xf32> to vector<1x4x32xf32>
    tpu.vector_store %arg5[%c14_103, %c0_104, %c0_105], %160 {strides = array<i32>} : memref<16x4x32xf32, #tpu.memory_space<vmem>>, vector<1x4x32xf32>,
    %cst_106 = arith.constant dense<0.000000e+00> : vector<4x32xf32>
    %161 = tpu.matmul %0, %157, %cst_106 {dimension_numbers = #tpu.dot_dimension_numbers<[1], [0], [0], [1], [0, 0, 1, 1], [], []>} : vector<4x4xf32>, vector<4x32xf32>, vector<4x32xf32> -> vector<4x32xf32>
    %162 = vector.broadcast %1 : vector<4x1xf32> to vector<4x32xf32>
    %163 = arith.addf %161, %162 : vector<4x32xf32>
    %cst_107 = arith.constant 0.000000e+00 : f32
    %164 = vector.broadcast %cst_107 : f32 to vector<4x32xf32>
    %165 = arith.maximumf %163, %164 : vector<4x32xf32>
    %c15 = arith.constant 15 : index
    %c0_108 = arith.constant 0 : index
    %c0_109 = arith.constant 0 : index
    %166 = vector.load %arg1[%c15, %c0_108, %c0_109] : memref<16x4x32xf32, #tpu.memory_space<vmem>>, vector<1x4x32xf32>
    %167 = vector.shape_cast %166 : vector<1x4x32xf32> to vector<4x32xf32>
    %168 = arith.addf %165, %167 : vector<4x32xf32>
    %c15_110 = arith.constant 15 : index
    %c0_111 = arith.constant 0 : index
    %c0_112 = arith.constant 0 : index
    %169 = vector.load %arg4[%c15_110, %c0_111, %c0_112] : memref<16x4x32xf32, #tpu.memory_space<vmem>>, vector<1x4x32xf32>
    %170 = vector.shape_cast %169 : vector<1x4x32xf32> to vector<4x32xf32>
    %171 = vector.shape_cast %168 : vector<4x32xf32> to vector<1x4x32xf32>
    tpu.vector_store %arg4[%c15_110, %c0_111, %c0_112], %171 {strides = array<i32>} : memref<16x4x32xf32, #tpu.memory_space<vmem>>, vector<1x4x32xf32>,
    %cst_113 = arith.constant dense<0.000000e+00> : vector<4x32xf32>
    %172 = tpu.matmul %0, %168, %cst_113 {dimension_numbers = #tpu.dot_dimension_numbers<[1], [0], [0], [1], [0, 0, 1, 1], [], []>} : vector<4x4xf32>, vector<4x32xf32>, vector<4x32xf32> -> vector<4x32xf32>
    %173 = vector.broadcast %1 : vector<4x1xf32> to vector<4x32xf32>
    %174 = arith.addf %172, %173 : vector<4x32xf32>
    %cst_114 = arith.constant 0.000000e+00 : f32
    %175 = vector.broadcast %cst_114 : f32 to vector<4x32xf32>
    %176 = arith.maximumf %174, %175 : vector<4x32xf32>
    %c14_115 = arith.constant 14 : index
    %c0_116 = arith.constant 0 : index
    %c0_117 = arith.constant 0 : index
    %177 = vector.load %arg5[%c14_115, %c0_116, %c0_117] : memref<16x4x32xf32, #tpu.memory_space<vmem>>, vector<1x4x32xf32>
    %178 = vector.shape_cast %177 : vector<1x4x32xf32> to vector<4x32xf32>
    %179 = arith.addf %176, %178 : vector<4x32xf32>
    %c14_118 = arith.constant 14 : index
    %c0_119 = arith.constant 0 : index
    %c0_120 = arith.constant 0 : index
    %180 = vector.load %arg4[%c14_118, %c0_119, %c0_120] : memref<16x4x32xf32, #tpu.memory_space<vmem>>, vector<1x4x32xf32>
    %181 = vector.shape_cast %180 : vector<1x4x32xf32> to vector<4x32xf32>
    %182 = vector.shape_cast %179 : vector<4x32xf32> to vector<1x4x32xf32>
    tpu.vector_store %arg4[%c14_118, %c0_119, %c0_120], %182 {strides = array<i32>} : memref<16x4x32xf32, #tpu.memory_space<vmem>>, vector<1x4x32xf32>,
    %cst_121 = arith.constant dense<0.000000e+00> : vector<4x32xf32>
    %183 = tpu.matmul %0, %179, %cst_121 {dimension_numbers = #tpu.dot_dimension_numbers<[1], [0], [0], [1], [0, 0, 1, 1], [], []>} : vector<4x4xf32>, vector<4x32xf32>, vector<4x32xf32> -> vector<4x32xf32>
    %184 = vector.broadcast %1 : vector<4x1xf32> to vector<4x32xf32>
    %185 = arith.addf %183, %184 : vector<4x32xf32>
    %cst_122 = arith.constant 0.000000e+00 : f32
    %186 = vector.broadcast %cst_122 : f32 to vector<4x32xf32>
    %187 = arith.maximumf %185, %186 : vector<4x32xf32>
    %c13_123 = arith.constant 13 : index
    %c0_124 = arith.constant 0 : index
    %c0_125 = arith.constant 0 : index
    %188 = vector.load %arg5[%c13_123, %c0_124, %c0_125] : memref<16x4x32xf32, #tpu.memory_space<vmem>>, vector<1x4x32xf32>
    %189 = vector.shape_cast %188 : vector<1x4x32xf32> to vector<4x32xf32>
    %190 = arith.addf %187, %189 : vector<4x32xf32>
    %c13_126 = arith.constant 13 : index
    %c0_127 = arith.constant 0 : index
    %c0_128 = arith.constant 0 : index
    %191 = vector.load %arg4[%c13_126, %c0_127, %c0_128] : memref<16x4x32xf32, #tpu.memory_space<vmem>>, vector<1x4x32xf32>
    %192 = vector.shape_cast %191 : vector<1x4x32xf32> to vector<4x32xf32>
    %193 = vector.shape_cast %190 : vector<4x32xf32> to vector<1x4x32xf32>
    tpu.vector_store %arg4[%c13_126, %c0_127, %c0_128], %193 {strides = array<i32>} : memref<16x4x32xf32, #tpu.memory_space<vmem>>, vector<1x4x32xf32>,
    %cst_129 = arith.constant dense<0.000000e+00> : vector<4x32xf32>
    %194 = tpu.matmul %0, %190, %cst_129 {dimension_numbers = #tpu.dot_dimension_numbers<[1], [0], [0], [1], [0, 0, 1, 1], [], []>} : vector<4x4xf32>, vector<4x32xf32>, vector<4x32xf32> -> vector<4x32xf32>
    %195 = vector.broadcast %1 : vector<4x1xf32> to vector<4x32xf32>
    %196 = arith.addf %194, %195 : vector<4x32xf32>
    %cst_130 = arith.constant 0.000000e+00 : f32
    %197 = vector.broadcast %cst_130 : f32 to vector<4x32xf32>
    %198 = arith.maximumf %196, %197 : vector<4x32xf32>
    %c12_131 = arith.constant 12 : index
    %c0_132 = arith.constant 0 : index
    %c0_133 = arith.constant 0 : index
    %199 = vector.load %arg5[%c12_131, %c0_132, %c0_133] : memref<16x4x32xf32, #tpu.memory_space<vmem>>, vector<1x4x32xf32>
    %200 = vector.shape_cast %199 : vector<1x4x32xf32> to vector<4x32xf32>
    %201 = arith.addf %198, %200 : vector<4x32xf32>
    %c12_134 = arith.constant 12 : index
    %c0_135 = arith.constant 0 : index
    %c0_136 = arith.constant 0 : index
    %202 = vector.load %arg4[%c12_134, %c0_135, %c0_136] : memref<16x4x32xf32, #tpu.memory_space<vmem>>, vector<1x4x32xf32>
    %203 = vector.shape_cast %202 : vector<1x4x32xf32> to vector<4x32xf32>
    %204 = vector.shape_cast %201 : vector<4x32xf32> to vector<1x4x32xf32>
    tpu.vector_store %arg4[%c12_134, %c0_135, %c0_136], %204 {strides = array<i32>} : memref<16x4x32xf32, #tpu.memory_space<vmem>>, vector<1x4x32xf32>,
    %cst_137 = arith.constant dense<0.000000e+00> : vector<4x32xf32>
    %205 = tpu.matmul %0, %201, %cst_137 {dimension_numbers = #tpu.dot_dimension_numbers<[1], [0], [0], [1], [0, 0, 1, 1], [], []>} : vector<4x4xf32>, vector<4x32xf32>, vector<4x32xf32> -> vector<4x32xf32>
    %206 = vector.broadcast %1 : vector<4x1xf32> to vector<4x32xf32>
    %207 = arith.addf %205, %206 : vector<4x32xf32>
    %cst_138 = arith.constant 0.000000e+00 : f32
    %208 = vector.broadcast %cst_138 : f32 to vector<4x32xf32>
    %209 = arith.maximumf %207, %208 : vector<4x32xf32>
    %c11_139 = arith.constant 11 : index
    %c0_140 = arith.constant 0 : index
    %c0_141 = arith.constant 0 : index
    %210 = vector.load %arg5[%c11_139, %c0_140, %c0_141] : memref<16x4x32xf32, #tpu.memory_space<vmem>>, vector<1x4x32xf32>
    %211 = vector.shape_cast %210 : vector<1x4x32xf32> to vector<4x32xf32>
    %212 = arith.addf %209, %211 : vector<4x32xf32>
    %c11_142 = arith.constant 11 : index
    %c0_143 = arith.constant 0 : index
    %c0_144 = arith.constant 0 : index
    %213 = vector.load %arg4[%c11_142, %c0_143, %c0_144] : memref<16x4x32xf32, #tpu.memory_space<vmem>>, vector<1x4x32xf32>
    %214 = vector.shape_cast %213 : vector<1x4x32xf32> to vector<4x32xf32>
    %215 = vector.shape_cast %212 : vector<4x32xf32> to vector<1x4x32xf32>
    tpu.vector_store %arg4[%c11_142, %c0_143, %c0_144], %215 {strides = array<i32>} : memref<16x4x32xf32, #tpu.memory_space<vmem>>, vector<1x4x32xf32>,
    %cst_145 = arith.constant dense<0.000000e+00> : vector<4x32xf32>
    %216 = tpu.matmul %0, %212, %cst_145 {dimension_numbers = #tpu.dot_dimension_numbers<[1], [0], [0], [1], [0, 0, 1, 1], [], []>} : vector<4x4xf32>, vector<4x32xf32>, vector<4x32xf32> -> vector<4x32xf32>
    %217 = vector.broadcast %1 : vector<4x1xf32> to vector<4x32xf32>
    %218 = arith.addf %216, %217 : vector<4x32xf32>
    %cst_146 = arith.constant 0.000000e+00 : f32
    %219 = vector.broadcast %cst_146 : f32 to vector<4x32xf32>
    %220 = arith.maximumf %218, %219 : vector<4x32xf32>
    %c10_147 = arith.constant 10 : index
    %c0_148 = arith.constant 0 : index
    %c0_149 = arith.constant 0 : index
    %221 = vector.load %arg5[%c10_147, %c0_148, %c0_149] : memref<16x4x32xf32, #tpu.memory_space<vmem>>, vector<1x4x32xf32>
    %222 = vector.shape_cast %221 : vector<1x4x32xf32> to vector<4x32xf32>
    %223 = arith.addf %220, %222 : vector<4x32xf32>
    %c10_150 = arith.constant 10 : index
    %c0_151 = arith.constant 0 : index
    %c0_152 = arith.constant 0 : index
    %224 = vector.load %arg4[%c10_150, %c0_151, %c0_152] : memref<16x4x32xf32, #tpu.memory_space<vmem>>, vector<1x4x32xf32>
    %225 = vector.shape_cast %224 : vector<1x4x32xf32> to vector<4x32xf32>
    %226 = vector.shape_cast %223 : vector<4x32xf32> to vector<1x4x32xf32>
    tpu.vector_store %arg4[%c10_150, %c0_151, %c0_152], %226 {strides = array<i32>} : memref<16x4x32xf32, #tpu.memory_space<vmem>>, vector<1x4x32xf32>,
    %cst_153 = arith.constant dense<0.000000e+00> : vector<4x32xf32>
    %227 = tpu.matmul %0, %223, %cst_153 {dimension_numbers = #tpu.dot_dimension_numbers<[1], [0], [0], [1], [0, 0, 1, 1], [], []>} : vector<4x4xf32>, vector<4x32xf32>, vector<4x32xf32> -> vector<4x32xf32>
    %228 = vector.broadcast %1 : vector<4x1xf32> to vector<4x32xf32>
    %229 = arith.addf %227, %228 : vector<4x32xf32>
    %cst_154 = arith.constant 0.000000e+00 : f32
    %230 = vector.broadcast %cst_154 : f32 to vector<4x32xf32>
    %231 = arith.maximumf %229, %230 : vector<4x32xf32>
    %c9_155 = arith.constant 9 : index
    %c0_156 = arith.constant 0 : index
    %c0_157 = arith.constant 0 : index
    %232 = vector.load %arg5[%c9_155, %c0_156, %c0_157] : memref<16x4x32xf32, #tpu.memory_space<vmem>>, vector<1x4x32xf32>
    %233 = vector.shape_cast %232 : vector<1x4x32xf32> to vector<4x32xf32>
    %234 = arith.addf %231, %233 : vector<4x32xf32>
    %c9_158 = arith.constant 9 : index
    %c0_159 = arith.constant 0 : index
    %c0_160 = arith.constant 0 : index
    %235 = vector.load %arg4[%c9_158, %c0_159, %c0_160] : memref<16x4x32xf32, #tpu.memory_space<vmem>>, vector<1x4x32xf32>
    %236 = vector.shape_cast %235 : vector<1x4x32xf32> to vector<4x32xf32>
    %237 = vector.shape_cast %234 : vector<4x32xf32> to vector<1x4x32xf32>
    tpu.vector_store %arg4[%c9_158, %c0_159, %c0_160], %237 {strides = array<i32>} : memref<16x4x32xf32, #tpu.memory_space<vmem>>, vector<1x4x32xf32>,
    %cst_161 = arith.constant dense<0.000000e+00> : vector<4x32xf32>
    %238 = tpu.matmul %0, %234, %cst_161 {dimension_numbers = #tpu.dot_dimension_numbers<[1], [0], [0], [1], [0, 0, 1, 1], [], []>} : vector<4x4xf32>, vector<4x32xf32>, vector<4x32xf32> -> vector<4x32xf32>
    %239 = vector.broadcast %1 : vector<4x1xf32> to vector<4x32xf32>
    %240 = arith.addf %238, %239 : vector<4x32xf32>
    %cst_162 = arith.constant 0.000000e+00 : f32
    %241 = vector.broadcast %cst_162 : f32 to vector<4x32xf32>
    %242 = arith.maximumf %240, %241 : vector<4x32xf32>
    %c8_163 = arith.constant 8 : index
    %c0_164 = arith.constant 0 : index
    %c0_165 = arith.constant 0 : index
    %243 = vector.load %arg5[%c8_163, %c0_164, %c0_165] : memref<16x4x32xf32, #tpu.memory_space<vmem>>, vector<1x4x32xf32>
    %244 = vector.shape_cast %243 : vector<1x4x32xf32> to vector<4x32xf32>
    %245 = arith.addf %242, %244 : vector<4x32xf32>
    %c8_166 = arith.constant 8 : index
    %c0_167 = arith.constant 0 : index
    %c0_168 = arith.constant 0 : index
    %246 = vector.load %arg4[%c8_166, %c0_167, %c0_168] : memref<16x4x32xf32, #tpu.memory_space<vmem>>, vector<1x4x32xf32>
    %247 = vector.shape_cast %246 : vector<1x4x32xf32> to vector<4x32xf32>
    %248 = vector.shape_cast %245 : vector<4x32xf32> to vector<1x4x32xf32>
    tpu.vector_store %arg4[%c8_166, %c0_167, %c0_168], %248 {strides = array<i32>} : memref<16x4x32xf32, #tpu.memory_space<vmem>>, vector<1x4x32xf32>,
    %cst_169 = arith.constant dense<0.000000e+00> : vector<4x32xf32>
    %249 = tpu.matmul %0, %245, %cst_169 {dimension_numbers = #tpu.dot_dimension_numbers<[1], [0], [0], [1], [0, 0, 1, 1], [], []>} : vector<4x4xf32>, vector<4x32xf32>, vector<4x32xf32> -> vector<4x32xf32>
    %250 = vector.broadcast %1 : vector<4x1xf32> to vector<4x32xf32>
    %251 = arith.addf %249, %250 : vector<4x32xf32>
    %cst_170 = arith.constant 0.000000e+00 : f32
    %252 = vector.broadcast %cst_170 : f32 to vector<4x32xf32>
    %253 = arith.maximumf %251, %252 : vector<4x32xf32>
    %c7_171 = arith.constant 7 : index
    %c0_172 = arith.constant 0 : index
    %c0_173 = arith.constant 0 : index
    %254 = vector.load %arg5[%c7_171, %c0_172, %c0_173] : memref<16x4x32xf32, #tpu.memory_space<vmem>>, vector<1x4x32xf32>
    %255 = vector.shape_cast %254 : vector<1x4x32xf32> to vector<4x32xf32>
    %256 = arith.addf %253, %255 : vector<4x32xf32>
    %c7_174 = arith.constant 7 : index
    %c0_175 = arith.constant 0 : index
    %c0_176 = arith.constant 0 : index
    %257 = vector.load %arg4[%c7_174, %c0_175, %c0_176] : memref<16x4x32xf32, #tpu.memory_space<vmem>>, vector<1x4x32xf32>
    %258 = vector.shape_cast %257 : vector<1x4x32xf32> to vector<4x32xf32>
    %259 = vector.shape_cast %256 : vector<4x32xf32> to vector<1x4x32xf32>
    tpu.vector_store %arg4[%c7_174, %c0_175, %c0_176], %259 {strides = array<i32>} : memref<16x4x32xf32, #tpu.memory_space<vmem>>, vector<1x4x32xf32>,
    %cst_177 = arith.constant dense<0.000000e+00> : vector<4x32xf32>
    %260 = tpu.matmul %0, %256, %cst_177 {dimension_numbers = #tpu.dot_dimension_numbers<[1], [0], [0], [1], [0, 0, 1, 1], [], []>} : vector<4x4xf32>, vector<4x32xf32>, vector<4x32xf32> -> vector<4x32xf32>
    %261 = vector.broadcast %1 : vector<4x1xf32> to vector<4x32xf32>
    %262 = arith.addf %260, %261 : vector<4x32xf32>
    %cst_178 = arith.constant 0.000000e+00 : f32
    %263 = vector.broadcast %cst_178 : f32 to vector<4x32xf32>
    %264 = arith.maximumf %262, %263 : vector<4x32xf32>
    %c6_179 = arith.constant 6 : index
    %c0_180 = arith.constant 0 : index
    %c0_181 = arith.constant 0 : index
    %265 = vector.load %arg5[%c6_179, %c0_180, %c0_181] : memref<16x4x32xf32, #tpu.memory_space<vmem>>, vector<1x4x32xf32>
    %266 = vector.shape_cast %265 : vector<1x4x32xf32> to vector<4x32xf32>
    %267 = arith.addf %264, %266 : vector<4x32xf32>
    %c6_182 = arith.constant 6 : index
    %c0_183 = arith.constant 0 : index
    %c0_184 = arith.constant 0 : index
    %268 = vector.load %arg4[%c6_182, %c0_183, %c0_184] : memref<16x4x32xf32, #tpu.memory_space<vmem>>, vector<1x4x32xf32>
    %269 = vector.shape_cast %268 : vector<1x4x32xf32> to vector<4x32xf32>
    %270 = vector.shape_cast %267 : vector<4x32xf32> to vector<1x4x32xf32>
    tpu.vector_store %arg4[%c6_182, %c0_183, %c0_184], %270 {strides = array<i32>} : memref<16x4x32xf32, #tpu.memory_space<vmem>>, vector<1x4x32xf32>,
    %cst_185 = arith.constant dense<0.000000e+00> : vector<4x32xf32>
    %271 = tpu.matmul %0, %267, %cst_185 {dimension_numbers = #tpu.dot_dimension_numbers<[1], [0], [0], [1], [0, 0, 1, 1], [], []>} : vector<4x4xf32>, vector<4x32xf32>, vector<4x32xf32> -> vector<4x32xf32>
    %272 = vector.broadcast %1 : vector<4x1xf32> to vector<4x32xf32>
    %273 = arith.addf %271, %272 : vector<4x32xf32>
    %cst_186 = arith.constant 0.000000e+00 : f32
    %274 = vector.broadcast %cst_186 : f32 to vector<4x32xf32>
    %275 = arith.maximumf %273, %274 : vector<4x32xf32>
    %c5_187 = arith.constant 5 : index
    %c0_188 = arith.constant 0 : index
    %c0_189 = arith.constant 0 : index
    %276 = vector.load %arg5[%c5_187, %c0_188, %c0_189] : memref<16x4x32xf32, #tpu.memory_space<vmem>>, vector<1x4x32xf32>
    %277 = vector.shape_cast %276 : vector<1x4x32xf32> to vector<4x32xf32>
    %278 = arith.addf %275, %277 : vector<4x32xf32>
    %c5_190 = arith.constant 5 : index
    %c0_191 = arith.constant 0 : index
    %c0_192 = arith.constant 0 : index
    %279 = vector.load %arg4[%c5_190, %c0_191, %c0_192] : memref<16x4x32xf32, #tpu.memory_space<vmem>>, vector<1x4x32xf32>
    %280 = vector.shape_cast %279 : vector<1x4x32xf32> to vector<4x32xf32>
    %281 = vector.shape_cast %278 : vector<4x32xf32> to vector<1x4x32xf32>
    tpu.vector_store %arg4[%c5_190, %c0_191, %c0_192], %281 {strides = array<i32>} : memref<16x4x32xf32, #tpu.memory_space<vmem>>, vector<1x4x32xf32>,
    %cst_193 = arith.constant dense<0.000000e+00> : vector<4x32xf32>
    %282 = tpu.matmul %0, %278, %cst_193 {dimension_numbers = #tpu.dot_dimension_numbers<[1], [0], [0], [1], [0, 0, 1, 1], [], []>} : vector<4x4xf32>, vector<4x32xf32>, vector<4x32xf32> -> vector<4x32xf32>
    %283 = vector.broadcast %1 : vector<4x1xf32> to vector<4x32xf32>
    %284 = arith.addf %282, %283 : vector<4x32xf32>
    %cst_194 = arith.constant 0.000000e+00 : f32
    %285 = vector.broadcast %cst_194 : f32 to vector<4x32xf32>
    %286 = arith.maximumf %284, %285 : vector<4x32xf32>
    %c4_195 = arith.constant 4 : index
    %c0_196 = arith.constant 0 : index
    %c0_197 = arith.constant 0 : index
    %287 = vector.load %arg5[%c4_195, %c0_196, %c0_197] : memref<16x4x32xf32, #tpu.memory_space<vmem>>, vector<1x4x32xf32>
    %288 = vector.shape_cast %287 : vector<1x4x32xf32> to vector<4x32xf32>
    %289 = arith.addf %286, %288 : vector<4x32xf32>
    %c4_198 = arith.constant 4 : index
    %c0_199 = arith.constant 0 : index
    %c0_200 = arith.constant 0 : index
    %290 = vector.load %arg4[%c4_198, %c0_199, %c0_200] : memref<16x4x32xf32, #tpu.memory_space<vmem>>, vector<1x4x32xf32>
    %291 = vector.shape_cast %290 : vector<1x4x32xf32> to vector<4x32xf32>
    %292 = vector.shape_cast %289 : vector<4x32xf32> to vector<1x4x32xf32>
    tpu.vector_store %arg4[%c4_198, %c0_199, %c0_200], %292 {strides = array<i32>} : memref<16x4x32xf32, #tpu.memory_space<vmem>>, vector<1x4x32xf32>,
    %cst_201 = arith.constant dense<0.000000e+00> : vector<4x32xf32>
    %293 = tpu.matmul %0, %289, %cst_201 {dimension_numbers = #tpu.dot_dimension_numbers<[1], [0], [0], [1], [0, 0, 1, 1], [], []>} : vector<4x4xf32>, vector<4x32xf32>, vector<4x32xf32> -> vector<4x32xf32>
    %294 = vector.broadcast %1 : vector<4x1xf32> to vector<4x32xf32>
    %295 = arith.addf %293, %294 : vector<4x32xf32>
    %cst_202 = arith.constant 0.000000e+00 : f32
    %296 = vector.broadcast %cst_202 : f32 to vector<4x32xf32>
    %297 = arith.maximumf %295, %296 : vector<4x32xf32>
    %c3_203 = arith.constant 3 : index
    %c0_204 = arith.constant 0 : index
    %c0_205 = arith.constant 0 : index
    %298 = vector.load %arg5[%c3_203, %c0_204, %c0_205] : memref<16x4x32xf32, #tpu.memory_space<vmem>>, vector<1x4x32xf32>
    %299 = vector.shape_cast %298 : vector<1x4x32xf32> to vector<4x32xf32>
    %300 = arith.addf %297, %299 : vector<4x32xf32>
    %c3_206 = arith.constant 3 : index
    %c0_207 = arith.constant 0 : index
    %c0_208 = arith.constant 0 : index
    %301 = vector.load %arg4[%c3_206, %c0_207, %c0_208] : memref<16x4x32xf32, #tpu.memory_space<vmem>>, vector<1x4x32xf32>
    %302 = vector.shape_cast %301 : vector<1x4x32xf32> to vector<4x32xf32>
    %303 = vector.shape_cast %300 : vector<4x32xf32> to vector<1x4x32xf32>
    tpu.vector_store %arg4[%c3_206, %c0_207, %c0_208], %303 {strides = array<i32>} : memref<16x4x32xf32, #tpu.memory_space<vmem>>, vector<1x4x32xf32>,
    %cst_209 = arith.constant dense<0.000000e+00> : vector<4x32xf32>
    %304 = tpu.matmul %0, %300, %cst_209 {dimension_numbers = #tpu.dot_dimension_numbers<[1], [0], [0], [1], [0, 0, 1, 1], [], []>} : vector<4x4xf32>, vector<4x32xf32>, vector<4x32xf32> -> vector<4x32xf32>
    %305 = vector.broadcast %1 : vector<4x1xf32> to vector<4x32xf32>
    %306 = arith.addf %304, %305 : vector<4x32xf32>
    %cst_210 = arith.constant 0.000000e+00 : f32
    %307 = vector.broadcast %cst_210 : f32 to vector<4x32xf32>
    %308 = arith.maximumf %306, %307 : vector<4x32xf32>
    %c2_211 = arith.constant 2 : index
    %c0_212 = arith.constant 0 : index
    %c0_213 = arith.constant 0 : index
    %309 = vector.load %arg5[%c2_211, %c0_212, %c0_213] : memref<16x4x32xf32, #tpu.memory_space<vmem>>, vector<1x4x32xf32>
    %310 = vector.shape_cast %309 : vector<1x4x32xf32> to vector<4x32xf32>
    %311 = arith.addf %308, %310 : vector<4x32xf32>
    %c2_214 = arith.constant 2 : index
    %c0_215 = arith.constant 0 : index
    %c0_216 = arith.constant 0 : index
    %312 = vector.load %arg4[%c2_214, %c0_215, %c0_216] : memref<16x4x32xf32, #tpu.memory_space<vmem>>, vector<1x4x32xf32>
    %313 = vector.shape_cast %312 : vector<1x4x32xf32> to vector<4x32xf32>
    %314 = vector.shape_cast %311 : vector<4x32xf32> to vector<1x4x32xf32>
    tpu.vector_store %arg4[%c2_214, %c0_215, %c0_216], %314 {strides = array<i32>} : memref<16x4x32xf32, #tpu.memory_space<vmem>>, vector<1x4x32xf32>,
    %cst_217 = arith.constant dense<0.000000e+00> : vector<4x32xf32>
    %315 = tpu.matmul %0, %311, %cst_217 {dimension_numbers = #tpu.dot_dimension_numbers<[1], [0], [0], [1], [0, 0, 1, 1], [], []>} : vector<4x4xf32>, vector<4x32xf32>, vector<4x32xf32> -> vector<4x32xf32>
    %316 = vector.broadcast %1 : vector<4x1xf32> to vector<4x32xf32>
    %317 = arith.addf %315, %316 : vector<4x32xf32>
    %cst_218 = arith.constant 0.000000e+00 : f32
    %318 = vector.broadcast %cst_218 : f32 to vector<4x32xf32>
    %319 = arith.maximumf %317, %318 : vector<4x32xf32>
    %c1_219 = arith.constant 1 : index
    %c0_220 = arith.constant 0 : index
    %c0_221 = arith.constant 0 : index
    %320 = vector.load %arg5[%c1_219, %c0_220, %c0_221] : memref<16x4x32xf32, #tpu.memory_space<vmem>>, vector<1x4x32xf32>
    %321 = vector.shape_cast %320 : vector<1x4x32xf32> to vector<4x32xf32>
    %322 = arith.addf %319, %321 : vector<4x32xf32>
    %c1_222 = arith.constant 1 : index
    %c0_223 = arith.constant 0 : index
    %c0_224 = arith.constant 0 : index
    %323 = vector.load %arg4[%c1_222, %c0_223, %c0_224] : memref<16x4x32xf32, #tpu.memory_space<vmem>>, vector<1x4x32xf32>
    %324 = vector.shape_cast %323 : vector<1x4x32xf32> to vector<4x32xf32>
    %325 = vector.shape_cast %322 : vector<4x32xf32> to vector<1x4x32xf32>
    tpu.vector_store %arg4[%c1_222, %c0_223, %c0_224], %325 {strides = array<i32>} : memref<16x4x32xf32, #tpu.memory_space<vmem>>, vector<1x4x32xf32>,
    %cst_225 = arith.constant dense<0.000000e+00> : vector<4x32xf32>
    %326 = tpu.matmul %0, %322, %cst_225 {dimension_numbers = #tpu.dot_dimension_numbers<[1], [0], [0], [1], [0, 0, 1, 1], [], []>} : vector<4x4xf32>, vector<4x32xf32>, vector<4x32xf32> -> vector<4x32xf32>
    %327 = vector.broadcast %1 : vector<4x1xf32> to vector<4x32xf32>
    %328 = arith.addf %326, %327 : vector<4x32xf32>
    %cst_226 = arith.constant 0.000000e+00 : f32
    %329 = vector.broadcast %cst_226 : f32 to vector<4x32xf32>
    %330 = arith.maximumf %328, %329 : vector<4x32xf32>
    %c0_227 = arith.constant 0 : index
    %c0_228 = arith.constant 0 : index
    %c0_229 = arith.constant 0 : index
    %331 = vector.load %arg5[%c0_227, %c0_228, %c0_229] : memref<16x4x32xf32, #tpu.memory_space<vmem>>, vector<1x4x32xf32>
    %332 = vector.shape_cast %331 : vector<1x4x32xf32> to vector<4x32xf32>
    %333 = arith.addf %330, %332 : vector<4x32xf32>
    %c0_230 = arith.constant 0 : index
    %c0_231 = arith.constant 0 : index
    %c0_232 = arith.constant 0 : index
    %334 = vector.load %arg4[%c0_230, %c0_231, %c0_232] : memref<16x4x32xf32, #tpu.memory_space<vmem>>, vector<1x4x32xf32>
    %335 = vector.shape_cast %334 : vector<1x4x32xf32> to vector<4x32xf32>
    %336 = vector.shape_cast %333 : vector<4x32xf32> to vector<1x4x32xf32>
    tpu.vector_store %arg4[%c0_230, %c0_231, %c0_232], %336 {strides = array<i32>} : memref<16x4x32xf32, #tpu.memory_space<vmem>>, vector<1x4x32xf32>,
    return
  }
  func.func @transform_0(%arg0: i32) -> (i32, i32, i32) {
    %c0_i32 = arith.constant 0 : i32
    %c0_i32_0 = arith.constant 0 : i32
    %c0_i32_1 = arith.constant 0 : i32
    return %c0_i32, %c0_i32_0, %arg0 : i32, i32, i32
  }
  func.func @transform_1(%arg0: i32) -> (i32, i32) {
    %c0_i32 = arith.constant 0 : i32
    %c0_i32_0 = arith.constant 0 : i32
    %c0_i32_1 = arith.constant 0 : i32
    return %c0_i32, %c0_i32_0 : i32, i32
  }
  func.func @transform_2(%arg0: i32) -> (i32, i32) {
    %c0_i32 = arith.constant 0 : i32
    %c0_i32_0 = arith.constant 0 : i32
    %c0_i32_1 = arith.constant 0 : i32
    return %c0_i32, %c0_i32_0 : i32, i32
  }
  func.func @transform_3(%arg0: i32) -> (i32, i32, i32) {
    %c0_i32 = arith.constant 0 : i32
    %c0_i32_0 = arith.constant 0 : i32
    %c0_i32_1 = arith.constant 0 : i32
    return %c0_i32, %c0_i32_0, %arg0 : i32, i32, i32
  }
}

</mosaic_0001>

<llo_original>
// kernel: tpu_custom_call.1
$region0: #{tpu_custom_call.1}
  #allocation0 [shape = 'u32[]', space=smem, size = 0x4, offset = 0x4, fixed_abs, tag = 'smem constant byte address 0x4 - core index']
  #allocation1 [shape = 'u32[144,128]{1,0:T(1,128)}', space=vmem, size = 0x12000, scoped, tag = 'internal scratch']
  #allocation2 [shape = 'f32[16,4,32]{2,1,0:T(4,128)}', space=vmem, size = 0x8000, scoped, tag = 'scratch operand']
  %s0 = inlined_call_operand.hbm [shape: f32[16,4,32], index: 0, kind: input, shape index: {}]
  %s1 = inlined_call_operand.vmem [shape: f32[4,4], index: 1, kind: input, shape index: {}]
  %s2 = inlined_call_operand.vmem [shape: f32[4,1], index: 2, kind: input, shape index: {}]
  %s3 = inlined_call_operand.hbm [shape: f32[16,4,32], index: 3, kind: output, shape index: {}]
  %s4 = sld [smem:[#allocation0]]
  $region26: #{tpu_custom_call.1} parent=0
    _
  %s6 = ssub.s32 1, %s4
  %s7 = scalar_select 0, %s6, %s4
  $region1: #{tpu_custom_call.1} parent=0
    #allocation3 [shape = 'u8[32768]{0}', space=vmem, size = 0x8000, scoped, tag = 'input window, operand 0, single buffered']
    #allocation4 [shape = 's32[1]{0}', space=sflag, size = 0x4, scoped, tag = 'scoped memory for tpu_custom_call.1']
    #allocation5 [shape = 's32[1]{0}', space=sflag, size = 0x4, scoped, tag = 'scoped memory for tpu_custom_call.1']
    #allocation6 [shape = 'u8[32768]{0}', space=vmem, size = 0x8000, scoped, tag = 'output window, operand 0, single buffered']
    %8 = vsyncpa [#allocation4], 0
    %9 = vsyncpa [#allocation5], 0
    // Predicated region
    $region2: #{tpu_custom_call.1} parent=1 // pred_check
      _
    $region3: #{tpu_custom_call.1} parent=1 // pred_check_branch
      %11 = sbr.rel (0) target = $region5
    $region4: #{tpu_custom_call.1} parent=1 // pred_region
      %s13 = ssub.s32 1024, 1024
      %14 = vsyncadd [#allocation4], %s13
      %s15 = sshll.u32 [#allocation3], 4
      %s16 = int_to_ptr.vmem [resolvable:$true] %s15
      %21 = dma.hbm_to_vmem [thread:$0]  %s0, 1024, %s16, [#allocation4], 64, 64, 4
    $region5: #{tpu_custom_call.1} parent=1 // pred_fallthru
      _
    // Predicated region
    $region6: #{tpu_custom_call.1} parent=1 // pred_check
      _
    $region7: #{tpu_custom_call.1} parent=1 // pred_check_branch
      %23 = sbr.rel (0) target = $region9
    $region8: #{tpu_custom_call.1} parent=1 // pred_region
      _
    $region9: #{tpu_custom_call.1} parent=1 // pred_fallthru
      _
    // Predicated region
    $region10: #{tpu_custom_call.1} parent=1 // pred_check
      _
    $region11: #{tpu_custom_call.1} parent=1 // pred_check_branch
      %25 = sbr.rel (0) target = $region13
    $region12: #{tpu_custom_call.1} parent=1 // pred_region
      _
    $region13: #{tpu_custom_call.1} parent=1 // pred_fallthru
      _
    // Predicated region
    $region14: #{tpu_custom_call.1} parent=1 // pred_check
      _
    $region15: #{tpu_custom_call.1} parent=1 // pred_check_branch
      %27 = sbr.rel (0) target = $region17
    $region16: #{tpu_custom_call.1} parent=1 // pred_region
      %28 = dma.done [#allocation4], 1024
    $region17: #{tpu_custom_call.1} parent=1 // pred_fallthru
      _
    %v29 = vld [vmem:[%s1] sm:$0xf]
    %v30 = vld [vmem:[%s2] sm:$0xf]
    %v31 = vld [vmem:[#allocation3] sm:$0xf]
    %vm32 = vcmask 257024
    %33 = vst.msk [vmem:[#allocation2] sm:$0xf] %vm32, %v31
    %35 = vset.pattern.permute.xlu0 0
    %36 = vperm.xlu0 %35, %v30
    %v37 = vpop.permute.xlu0 %36
    %vm39 = vcmask 31744
    %v41 = vsel %vm39, %v29, 0
    %vm43 = vcmask 1043456
    %v45 = vsel %vm43, %v31, 0
    %47 = vmatprep.subr.mxu0 0.0
    %48 = vmatpush1.msra.mxu0 %v45
    %49 = vmatprep.subr.mxu0 0.0
    %50 = vmatpush1.msra.mxu0 0.0
    %51 = vmatprep.subr.mxu0 0.0
    %52 = vmatpush1.msra.mxu0 0.0
    %53 = vmatprep.subr.mxu0 0.0
    %54 = vmatpush1.msra.mxu0 0.0
    %55 = vmatprep.subr.mxu0 0.0
    %56 = vmatpush1.msra.mxu0 0.0
    %57 = vmatprep.subr.mxu0 0.0
    %58 = vmatpush1.msra.mxu0 0.0
    %59 = vmatprep.subr.mxu0 0.0
    %60 = vmatpush1.msra.mxu0 0.0
    %61 = vmatprep.subr.mxu0 0.0
    %62 = vmatpush1.msra.mxu0 0.0
    %63 = vmatprep.subr.mxu0 0.0
    %64 = vmatpush1.msra.mxu0 0.0
    %65 = vmatprep.subr.mxu0 0.0
    %66 = vmatpush1.msra.mxu0 0.0
    %67 = vmatprep.subr.mxu0 0.0
    %68 = vmatpush1.msra.mxu0 0.0
    %69 = vmatprep.subr.mxu0 0.0
    %70 = vmatpush1.msra.mxu0 0.0
    %71 = vmatprep.subr.mxu0 0.0
    %72 = vmatpush1.msra.mxu0 0.0
    %73 = vmatprep.subr.mxu0 0.0
    %74 = vmatpush1.msra.mxu0 0.0
    %75 = vmatprep.subr.mxu0 0.0
    %76 = vmatpush1.msra.mxu0 0.0
    %77 = vmatprep.subr.mxu0 0.0
    %78 = vmatpush1.msra.mxu0 0.0
    %79 = vmatprep.subr.mxu0 0.0
    %80 = vmatpush1.msra.mxu0 0.0
    %81 = vmatprep.subr.mxu0 0.0
    %82 = vmatpush1.msra.mxu0 0.0
    %83 = vmatprep.subr.mxu0 0.0
    %84 = vmatpush1.msra.mxu0 0.0
    %85 = vmatprep.subr.mxu0 0.0
    %86 = vmatpush1.msra.mxu0 0.0
    %87 = vmatprep.subr.mxu0 0.0
    %88 = vmatpush1.msra.mxu0 0.0
    %89 = vmatprep.subr.mxu0 0.0
    %90 = vmatpush1.msra.mxu0 0.0
    %91 = vmatprep.subr.mxu0 0.0
    %92 = vmatpush1.msra.mxu0 0.0
    %93 = vmatprep.subr.mxu0 0.0
    %94 = vmatpush1.msra.mxu0 0.0
    %95 = vmatprep.subr.mxu0 0.0
    %96 = vmatpush1.msra.mxu0 0.0
    %97 = vmatprep.subr.mxu0 0.0
    %98 = vmatpush1.msra.mxu0 0.0
    %99 = vmatprep.subr.mxu0 0.0
    %100 = vmatpush1.msra.mxu0 0.0
    %101 = vmatprep.subr.mxu0 0.0
    %102 = vmatpush1.msra.mxu0 0.0
    %103 = vmatprep.subr.mxu0 0.0
    %104 = vmatpush1.msra.mxu0 0.0
    %105 = vmatprep.subr.mxu0 0.0
    %106 = vmatpush1.msra.mxu0 0.0
    %107 = vmatprep.subr.mxu0 0.0
    %108 = vmatpush1.msra.mxu0 0.0
    %109 = vmatprep.subr.mxu0 0.0
    %110 = vmatpush1.msra.mxu0 0.0
    %111 = vmatprep.mubr.f32.mxu0 0.0
    %112 = vmatmul.mubr.f32.gmra.mrb[0].mxu0 %v41
    %v113 = vpop.f32.mrb[0].mxu0
    %v114 = vadd.f32 %v37, %v113
    %v115 = vpop.f32.mrb[0].mxu0
    %116 = vdwg.mxu0
    %v117 = vmax.f32 %v114, 0.0
    %s118 = scalar_lea.vmem [#allocation3], 4
    %v119 = vld [vmem:[%s118] sm:$0xf]
    %v120 = vadd.f32 %v117, %v119
    %s121 = scalar_lea.vmem [#allocation2], 4
    %122 = vst.msk [vmem:[%s121] sm:$0xf] %vm32, %v120
    %v124 = vsel %vm43, %v120, 0
    %126 = vmatprep.subr.mxu0 0.0
    %127 = vmatpush1.msra.mxu0 %v124
    %128 = vmatprep.subr.mxu0 0.0
    %129 = vmatpush1.msra.mxu0 0.0
    %130 = vmatprep.subr.mxu0 0.0
    %131 = vmatpush1.msra.mxu0 0.0
    %132 = vmatprep.subr.mxu0 0.0
    %133 = vmatpush1.msra.mxu0 0.0
    %134 = vmatprep.subr.mxu0 0.0
    %135 = vmatpush1.msra.mxu0 0.0
    %136 = vmatprep.subr.mxu0 0.0
    %137 = vmatpush1.msra.mxu0 0.0
    %138 = vmatprep.subr.mxu0 0.0
    %139 = vmatpush1.msra.mxu0 0.0
    %140 = vmatprep.subr.mxu0 0.0
    %141 = vmatpush1.msra.mxu0 0.0
    %142 = vmatprep.subr.mxu0 0.0
    %143 = vmatpush1.msra.mxu0 0.0
    %144 = vmatprep.subr.mxu0 0.0
    %145 = vmatpush1.msra.mxu0 0.0
    %146 = vmatprep.subr.mxu0 0.0
    %147 = vmatpush1.msra.mxu0 0.0
    %148 = vmatprep.subr.mxu0 0.0
    %149 = vmatpush1.msra.mxu0 0.0
    %150 = vmatprep.subr.mxu0 0.0
    %151 = vmatpush1.msra.mxu0 0.0
    %152 = vmatprep.subr.mxu0 0.0
    %153 = vmatpush1.msra.mxu0 0.0
    %154 = vmatprep.subr.mxu0 0.0
    %155 = vmatpush1.msra.mxu0 0.0
    %156 = vmatprep.subr.mxu0 0.0
    %157 = vmatpush1.msra.mxu0 0.0
    %158 = vmatprep.subr.mxu0 0.0
    %159 = vmatpush1.msra.mxu0 0.0
    %160 = vmatprep.subr.mxu0 0.0
    %161 = vmatpush1.msra.mxu0 0.0
    %162 = vmatprep.subr.mxu0 0.0
    %163 = vmatpush1.msra.mxu0 0.0
    %164 = vmatprep.subr.mxu0 0.0
    %165 = vmatpush1.msra.mxu0 0.0
    %166 = vmatprep.subr.mxu0 0.0
    %167 = vmatpush1.msra.mxu0 0.0
    %168 = vmatprep.subr.mxu0 0.0
    %169 = vmatpush1.msra.mxu0 0.0
    %170 = vmatprep.subr.mxu0 0.0
    %171 = vmatpush1.msra.mxu0 0.0
    %172 = vmatprep.subr.mxu0 0.0
    %173 = vmatpush1.msra.mxu0 0.0
    %174 = vmatprep.subr.mxu0 0.0
    %175 = vmatpush1.msra.mxu0 0.0
    %176 = vmatprep.subr.mxu0 0.0
    %177 = vmatpush1.msra.mxu0 0.0
    %178 = vmatprep.subr.mxu0 0.0
    %179 = vmatpush1.msra.mxu0 0.0
    %180 = vmatprep.subr.mxu0 0.0
    %181 = vmatpush1.msra.mxu0 0.0
    %182 = vmatprep.subr.mxu0 0.0
    %183 = vmatpush1.msra.mxu0 0.0
    %184 = vmatprep.subr.mxu0 0.0
    %185 = vmatpush1.msra.mxu0 0.0
    %186 = vmatprep.subr.mxu0 0.0
    %187 = vmatpush1.msra.mxu0 0.0
    %188 = vmatprep.subr.mxu0 0.0
    %189 = vmatpush1.msra.mxu0 0.0
    %190 = vmatprep.mubr.f32.mxu0 0.0
    %191 = vmatmul.mubr.f32.gmra.mrb[0].mxu0 %v41
    %v192 = vpop.f32.mrb[0].mxu0
    %v193 = vadd.f32 %v37, %v192
    %v194 = vpop.f32.mrb[0].mxu0
    %195 = vdwg.mxu0
    %v196 = vmax.f32 %v193, 0.0
    %s197 = scalar_lea.vmem [#allocation3], 8
    %v198 = vld [vmem:[%s197] sm:$0xf]
    %v199 = vadd.f32 %v196, %v198
    %s200 = scalar_lea.vmem [#allocation2], 8
    %201 = vst.msk [vmem:[%s200] sm:$0xf] %vm32, %v199
    %v203 = vsel %vm43, %v199, 0
    %205 = vmatprep.subr.mxu0 0.0
    %206 = vmatpush1.msra.mxu0 %v203
    %207 = vmatprep.subr.mxu0 0.0
    %208 = vmatpush1.msra.mxu0 0.0
    %209 = vmatprep.subr.mxu0 0.0
    %210 = vmatpush1.msra.mxu0 0.0
    %211 = vmatprep.subr.mxu0 0.0
    %212 = vmatpush1.msra.mxu0 0.0
    %213 = vmatprep.subr.mxu0 0.0
    %214 = vmatpush1.msra.mxu0 0.0
    %215 = vmatprep.subr.mxu0 0.0
    %216 = vmatpush1.msra.mxu0 0.0
    %217 = vmatprep.subr.mxu0 0.0
    %218 = vmatpush1.msra.mxu0 0.0
    %219 = vmatprep.subr.mxu0 0.0
    %220 = vmatpush1.msra.mxu0 0.0
    %221 = vmatprep.subr.mxu0 0.0
    %222 = vmatpush1.msra.mxu0 0.0
    %223 = vmatprep.subr.mxu0 0.0
    %224 = vmatpush1.msra.mxu0 0.0
    %225 = vmatprep.subr.mxu0 0.0
    %226 = vmatpush1.msra.mxu0 0.0
    %227 = vmatprep.subr.mxu0 0.0
    %228 = vmatpush1.msra.mxu0 0.0
    %229 = vmatprep.subr.mxu0 0.0
    %230 = vmatpush1.msra.mxu0 0.0
    %231 = vmatprep.subr.mxu0 0.0
    %232 = vmatpush1.msra.mxu0 0.0
    %233 = vmatprep.subr.mxu0 0.0
    %234 = vmatpush1.msra.mxu0 0.0
    %235 = vmatprep.subr.mxu0 0.0
    %236 = vmatpush1.msra.mxu0 0.0
    %237 = vmatprep.subr.mxu0 0.0
    %238 = vmatpush1.msra.mxu0 0.0
    %239 = vmatprep.subr.mxu0 0.0
    %240 = vmatpush1.msra.mxu0 0.0
    %241 = vmatprep.subr.mxu0 0.0
    %242 = vmatpush1.msra.mxu0 0.0
    %243 = vmatprep.subr.mxu0 0.0
    %244 = vmatpush1.msra.mxu0 0.0
    %245 = vmatprep.subr.mxu0 0.0
    %246 = vmatpush1.msra.mxu0 0.0
    %247 = vmatprep.subr.mxu0 0.0
    %248 = vmatpush1.msra.mxu0 0.0
    %249 = vmatprep.subr.mxu0 0.0
    %250 = vmatpush1.msra.mxu0 0.0
    %251 = vmatprep.subr.mxu0 0.0
    %252 = vmatpush1.msra.mxu0 0.0
    %253 = vmatprep.subr.mxu0 0.0
    %254 = vmatpush1.msra.mxu0 0.0
    %255 = vmatprep.subr.mxu0 0.0
    %256 = vmatpush1.msra.mxu0 0.0
    %257 = vmatprep.subr.mxu0 0.0
    %258 = vmatpush1.msra.mxu0 0.0
    %259 = vmatprep.subr.mxu0 0.0
    %260 = vmatpush1.msra.mxu0 0.0
    %261 = vmatprep.subr.mxu0 0.0
    %262 = vmatpush1.msra.mxu0 0.0
    %263 = vmatprep.subr.mxu0 0.0
    %264 = vmatpush1.msra.mxu0 0.0
    %265 = vmatprep.subr.mxu0 0.0
    %266 = vmatpush1.msra.mxu0 0.0
    %267 = vmatprep.subr.mxu0 0.0
    %268 = vmatpush1.msra.mxu0 0.0
    %269 = vmatprep.mubr.f32.mxu0 0.0
    %270 = vmatmul.mubr.f32.gmra.mrb[0].mxu0 %v41
    %v271 = vpop.f32.mrb[0].mxu0
    %v272 = vadd.f32 %v37, %v271
    %v273 = vpop.f32.mrb[0].mxu0
    %274 = vdwg.mxu0
    %v275 = vmax.f32 %v272, 0.0
    %s276 = scalar_lea.vmem [#allocation3], 12
    %v277 = vld [vmem:[%s276] sm:$0xf]
    %v278 = vadd.f32 %v275, %v277
    %s279 = scalar_lea.vmem [#allocation2], 12
    %280 = vst.msk [vmem:[%s279] sm:$0xf] %vm32, %v278
    %v282 = vsel %vm43, %v278, 0
    %284 = vmatprep.subr.mxu0 0.0
    %285 = vmatpush1.msra.mxu0 %v282
    %286 = vmatprep.subr.mxu0 0.0
    %287 = vmatpush1.msra.mxu0 0.0
    %288 = vmatprep.subr.mxu0 0.0
    %289 = vmatpush1.msra.mxu0 0.0
    %290 = vmatprep.subr.mxu0 0.0
    %291 = vmatpush1.msra.mxu0 0.0
    %292 = vmatprep.subr.mxu0 0.0
    %293 = vmatpush1.msra.mxu0 0.0
    %294 = vmatprep.subr.mxu0 0.0
    %295 = vmatpush1.msra.mxu0 0.0
    %296 = vmatprep.subr.mxu0 0.0
    %297 = vmatpush1.msra.mxu0 0.0
    %298 = vmatprep.subr.mxu0 0.0
    %299 = vmatpush1.msra.mxu0 0.0
    %300 = vmatprep.subr.mxu0 0.0
    %301 = vmatpush1.msra.mxu0 0.0
    %302 = vmatprep.subr.mxu0 0.0
    %303 = vmatpush1.msra.mxu0 0.0
    %304 = vmatprep.subr.mxu0 0.0
    %305 = vmatpush1.msra.mxu0 0.0
    %306 = vmatprep.subr.mxu0 0.0
    %307 = vmatpush1.msra.mxu0 0.0
    %308 = vmatprep.subr.mxu0 0.0
    %309 = vmatpush1.msra.mxu0 0.0
    %310 = vmatprep.subr.mxu0 0.0
    %311 = vmatpush1.msra.mxu0 0.0
    %312 = vmatprep.subr.mxu0 0.0
    %313 = vmatpush1.msra.mxu0 0.0
    %314 = vmatprep.subr.mxu0 0.0
    %315 = vmatpush1.msra.mxu0 0.0
    %316 = vmatprep.subr.mxu0 0.0
    %317 = vmatpush1.msra.mxu0 0.0
    %318 = vmatprep.subr.mxu0 0.0
    %319 = vmatpush1.msra.mxu0 0.0
    %320 = vmatprep.subr.mxu0 0.0
    %321 = vmatpush1.msra.mxu0 0.0
    %322 = vmatprep.subr.mxu0 0.0
    %323 = vmatpush1.msra.mxu0 0.0
    %324 = vmatprep.subr.mxu0 0.0
    %325 = vmatpush1.msra.mxu0 0.0
    %326 = vmatprep.subr.mxu0 0.0
    %327 = vmatpush1.msra.mxu0 0.0
    %328 = vmatprep.subr.mxu0 0.0
    %329 = vmatpush1.msra.mxu0 0.0
    %330 = vmatprep.subr.mxu0 0.0
    %331 = vmatpush1.msra.mxu0 0.0
    %332 = vmatprep.subr.mxu0 0.0
    %333 = vmatpush1.msra.mxu0 0.0
    %334 = vmatprep.subr.mxu0 0.0
    %335 = vmatpush1.msra.mxu0 0.0
    %336 = vmatprep.subr.mxu0 0.0
    %337 = vmatpush1.msra.mxu0 0.0
    %338 = vmatprep.subr.mxu0 0.0
    %339 = vmatpush1.msra.mxu0 0.0
    %340 = vmatprep.subr.mxu0 0.0
    %341 = vmatpush1.msra.mxu0 0.0
    %342 = vmatprep.subr.mxu0 0.0
    %343 = vmatpush1.msra.mxu0 0.0
    %344 = vmatprep.subr.mxu0 0.0
    %345 = vmatpush1.msra.mxu0 0.0
    %346 = vmatprep.subr.mxu0 0.0
    %347 = vmatpush1.msra.mxu0 0.0
    %348 = vmatprep.mubr.f32.mxu0 0.0
    %349 = vmatmul.mubr.f32.gmra.mrb[0].mxu0 %v41
    %v350 = vpop.f32.mrb[0].mxu0
    %v351 = vadd.f32 %v37, %v350
    %v352 = vpop.f32.mrb[0].mxu0
    %353 = vdwg.mxu0
    %v354 = vmax.f32 %v351, 0.0
    %s355 = scalar_lea.vmem [#allocation3], 16
    %v356 = vld [vmem:[%s355] sm:$0xf]
    %v357 = vadd.f32 %v354, %v356
    %s358 = scalar_lea.vmem [#allocation2], 16
    %359 = vst.msk [vmem:[%s358] sm:$0xf] %vm32, %v357
    %v361 = vsel %vm43, %v357, 0
    %363 = vmatprep.subr.mxu0 0.0
    %364 = vmatpush1.msra.mxu0 %v361
    %365 = vmatprep.subr.mxu0 0.0
    %366 = vmatpush1.msra.mxu0 0.0
    %367 = vmatprep.subr.mxu0 0.0
    %368 = vmatpush1.msra.mxu0 0.0
    %369 = vmatprep.subr.mxu0 0.0
    %370 = vmatpush1.msra.mxu0 0.0
    %371 = vmatprep.subr.mxu0 0.0
    %372 = vmatpush1.msra.mxu0 0.0
    %373 = vmatprep.subr.mxu0 0.0
    %374 = vmatpush1.msra.mxu0 0.0
    %375 = vmatprep.subr.mxu0 0.0
    %376 = vmatpush1.msra.mxu0 0.0
    %377 = vmatprep.subr.mxu0 0.0
    %378 = vmatpush1.msra.mxu0 0.0
    %379 = vmatprep.subr.mxu0 0.0
    %380 = vmatpush1.msra.mxu0 0.0
    %381 = vmatprep.subr.mxu0 0.0
    %382 = vmatpush1.msra.mxu0 0.0
    %383 = vmatprep.subr.mxu0 0.0
    %384 = vmatpush1.msra.mxu0 0.0
    %385 = vmatprep.subr.mxu0 0.0
    %386 = vmatpush1.msra.mxu0 0.0
    %387 = vmatprep.subr.mxu0 0.0
    %388 = vmatpush1.msra.mxu0 0.0
    %389 = vmatprep.subr.mxu0 0.0
    %390 = vmatpush1.msra.mxu0 0.0
    %391 = vmatprep.subr.mxu0 0.0
    %392 = vmatpush1.msra.mxu0 0.0
    %393 = vmatprep.subr.mxu0 0.0
    %394 = vmatpush1.msra.mxu0 0.0
    %395 = vmatprep.subr.mxu0 0.0
    %396 = vmatpush1.msra.mxu0 0.0
    %397 = vmatprep.subr.mxu0 0.0
    %398 = vmatpush1.msra.mxu0 0.0
    %399 = vmatprep.subr.mxu0 0.0
    %400 = vmatpush1.msra.mxu0 0.0
    %401 = vmatprep.subr.mxu0 0.0
    %402 = vmatpush1.msra.mxu0 0.0
    %403 = vmatprep.subr.mxu0 0.0
    %404 = vmatpush1.msra.mxu0 0.0
    %405 = vmatprep.subr.mxu0 0.0
    %406 = vmatpush1.msra.mxu0 0.0
    %407 = vmatprep.subr.mxu0 0.0
    %408 = vmatpush1.msra.mxu0 0.0
    %409 = vmatprep.subr.mxu0 0.0
    %410 = vmatpush1.msra.mxu0 0.0
    %411 = vmatprep.subr.mxu0 0.0
    %412 = vmatpush1.msra.mxu0 0.0
    %413 = vmatprep.subr.mxu0 0.0
    %414 = vmatpush1.msra.mxu0 0.0
    %415 = vmatprep.subr.mxu0 0.0
    %416 = vmatpush1.msra.mxu0 0.0
    %417 = vmatprep.subr.mxu0 0.0
    %418 = vmatpush1.msra.mxu0 0.0
    %419 = vmatprep.subr.mxu0 0.0
    %420 = vmatpush1.msra.mxu0 0.0
    %421 = vmatprep.subr.mxu0 0.0
    %422 = vmatpush1.msra.mxu0 0.0
    %423 = vmatprep.subr.mxu0 0.0
    %424 = vmatpush1.msra.mxu0 0.0
    %425 = vmatprep.subr.mxu0 0.0
    %426 = vmatpush1.msra.mxu0 0.0
    %427 = vmatprep.mubr.f32.mxu0 0.0
    %428 = vmatmul.mubr.f32.gmra.mrb[0].mxu0 %v41
    %v429 = vpop.f32.mrb[0].mxu0
    %v430 = vadd.f32 %v37, %v429
    %v431 = vpop.f32.mrb[0].mxu0
    %432 = vdwg.mxu0
    %v433 = vmax.f32 %v430, 0.0
    %s434 = scalar_lea.vmem [#allocation3], 20
    %v435 = vld [vmem:[%s434] sm:$0xf]
    %v436 = vadd.f32 %v433, %v435
    %s437 = scalar_lea.vmem [#allocation2], 20
    %438 = vst.msk [vmem:[%s437] sm:$0xf] %vm32, %v436
    %v440 = vsel %vm43, %v436, 0
    %442 = vmatprep.subr.mxu0 0.0
    %443 = vmatpush1.msra.mxu0 %v440
    %444 = vmatprep.subr.mxu0 0.0
    %445 = vmatpush1.msra.mxu0 0.0
    %446 = vmatprep.subr.mxu0 0.0
    %447 = vmatpush1.msra.mxu0 0.0
    %448 = vmatprep.subr.mxu0 0.0
    %449 = vmatpush1.msra.mxu0 0.0
    %450 = vmatprep.subr.mxu0 0.0
    %451 = vmatpush1.msra.mxu0 0.0
    %452 = vmatprep.subr.mxu0 0.0
    %453 = vmatpush1.msra.mxu0 0.0
    %454 = vmatprep.subr.mxu0 0.0
    %455 = vmatpush1.msra.mxu0 0.0
    %456 = vmatprep.subr.mxu0 0.0
    %457 = vmatpush1.msra.mxu0 0.0
    %458 = vmatprep.subr.mxu0 0.0
    %459 = vmatpush1.msra.mxu0 0.0
    %460 = vmatprep.subr.mxu0 0.0
    %461 = vmatpush1.msra.mxu0 0.0
    %462 = vmatprep.subr.mxu0 0.0
    %463 = vmatpush1.msra.mxu0 0.0
    %464 = vmatprep.subr.mxu0 0.0
    %465 = vmatpush1.msra.mxu0 0.0
    %466 = vmatprep.subr.mxu0 0.0
    %467 = vmatpush1.msra.mxu0 0.0
    %468 = vmatprep.subr.mxu0 0.0
    %469 = vmatpush1.msra.mxu0 0.0
    %470 = vmatprep.subr.mxu0 0.0
    %471 = vmatpush1.msra.mxu0 0.0
    %472 = vmatprep.subr.mxu0 0.0
    %473 = vmatpush1.msra.mxu0 0.0
    %474 = vmatprep.subr.mxu0 0.0
    %475 = vmatpush1.msra.mxu0 0.0
    %476 = vmatprep.subr.mxu0 0.0
    %477 = vmatpush1.msra.mxu0 0.0
    %478 = vmatprep.subr.mxu0 0.0
    %479 = vmatpush1.msra.mxu0 0.0
    %480 = vmatprep.subr.mxu0 0.0
    %481 = vmatpush1.msra.mxu0 0.0
    %482 = vmatprep.subr.mxu0 0.0
    %483 = vmatpush1.msra.mxu0 0.0
    %484 = vmatprep.subr.mxu0 0.0
    %485 = vmatpush1.msra.mxu0 0.0
    %486 = vmatprep.subr.mxu0 0.0
    %487 = vmatpush1.msra.mxu0 0.0
    %488 = vmatprep.subr.mxu0 0.0
    %489 = vmatpush1.msra.mxu0 0.0
    %490 = vmatprep.subr.mxu0 0.0
    %491 = vmatpush1.msra.mxu0 0.0
    %492 = vmatprep.subr.mxu0 0.0
    %493 = vmatpush1.msra.mxu0 0.0
    %494 = vmatprep.subr.mxu0 0.0
    %495 = vmatpush1.msra.mxu0 0.0
    %496 = vmatprep.subr.mxu0 0.0
    %497 = vmatpush1.msra.mxu0 0.0
    %498 = vmatprep.subr.mxu0 0.0
    %499 = vmatpush1.msra.mxu0 0.0
    %500 = vmatprep.subr.mxu0 0.0
    %501 = vmatpush1.msra.mxu0 0.0
    %502 = vmatprep.subr.mxu0 0.0
    %503 = vmatpush1.msra.mxu0 0.0
    %504 = vmatprep.subr.mxu0 0.0
    %505 = vmatpush1.msra.mxu0 0.0
    %506 = vmatprep.mubr.f32.mxu0 0.0
    %507 = vmatmul.mubr.f32.gmra.mrb[0].mxu0 %v41
    %v508 = vpop.f32.mrb[0].mxu0
    %v509 = vadd.f32 %v37, %v508
    %v510 = vpop.f32.mrb[0].mxu0
    %511 = vdwg.mxu0
    %v512 = vmax.f32 %v509, 0.0
    %s513 = scalar_lea.vmem [#allocation3], 24
    %v514 = vld [vmem:[%s513] sm:$0xf]
    %v515 = vadd.f32 %v512, %v514
    %s516 = scalar_lea.vmem [#allocation2], 24
    %517 = vst.msk [vmem:[%s516] sm:$0xf] %vm32, %v515
    %v519 = vsel %vm43, %v515, 0
    %521 = vmatprep.subr.mxu0 0.0
    %522 = vmatpush1.msra.mxu0 %v519
    %523 = vmatprep.subr.mxu0 0.0
    %524 = vmatpush1.msra.mxu0 0.0
    %525 = vmatprep.subr.mxu0 0.0
    %526 = vmatpush1.msra.mxu0 0.0
    %527 = vmatprep.subr.mxu0 0.0
    %528 = vmatpush1.msra.mxu0 0.0
    %529 = vmatprep.subr.mxu0 0.0
    %530 = vmatpush1.msra.mxu0 0.0
    %531 = vmatprep.subr.mxu0 0.0
    %532 = vmatpush1.msra.mxu0 0.0
    %533 = vmatprep.subr.mxu0 0.0
    %534 = vmatpush1.msra.mxu0 0.0
    %535 = vmatprep.subr.mxu0 0.0
    %536 = vmatpush1.msra.mxu0 0.0
    %537 = vmatprep.subr.mxu0 0.0
    %538 = vmatpush1.msra.mxu0 0.0
    %539 = vmatprep.subr.mxu0 0.0
    %540 = vmatpush1.msra.mxu0 0.0
    %541 = vmatprep.subr.mxu0 0.0
    %542 = vmatpush1.msra.mxu0 0.0
    %543 = vmatprep.subr.mxu0 0.0
    %544 = vmatpush1.msra.mxu0 0.0
    %545 = vmatprep.subr.mxu0 0.0
    %546 = vmatpush1.msra.mxu0 0.0
    %547 = vmatprep.subr.mxu0 0.0
    %548 = vmatpush1.msra.mxu0 0.0
    %549 = vmatprep.subr.mxu0 0.0
    %550 = vmatpush1.msra.mxu0 0.0
    %551 = vmatprep.subr.mxu0 0.0
    %552 = vmatpush1.msra.mxu0 0.0
    %553 = vmatprep.subr.mxu0 0.0
    %554 = vmatpush1.msra.mxu0 0.0
    %555 = vmatprep.subr.mxu0 0.0
    %556 = vmatpush1.msra.mxu0 0.0
    %557 = vmatprep.subr.mxu0 0.0
    %558 = vmatpush1.msra.mxu0 0.0
    %559 = vmatprep.subr.mxu0 0.0
    %560 = vmatpush1.msra.mxu0 0.0
    %561 = vmatprep.subr.mxu0 0.0
    %562 = vmatpush1.msra.mxu0 0.0
    %563 = vmatprep.subr.mxu0 0.0
    %564 = vmatpush1.msra.mxu0 0.0
    %565 = vmatprep.subr.mxu0 0.0
    %566 = vmatpush1.msra.mxu0 0.0
    %567 = vmatprep.subr.mxu0 0.0
    %568 = vmatpush1.msra.mxu0 0.0
    %569 = vmatprep.subr.mxu0 0.0
    %570 = vmatpush1.msra.mxu0 0.0
    %571 = vmatprep.subr.mxu0 0.0
    %572 = vmatpush1.msra.mxu0 0.0
    %573 = vmatprep.subr.mxu0 0.0
    %574 = vmatpush1.msra.mxu0 0.0
    %575 = vmatprep.subr.mxu0 0.0
    %576 = vmatpush1.msra.mxu0 0.0
    %577 = vmatprep.subr.mxu0 0.0
    %578 = vmatpush1.msra.mxu0 0.0
    %579 = vmatprep.subr.mxu0 0.0
    %580 = vmatpush1.msra.mxu0 0.0
    %581 = vmatprep.subr.mxu0 0.0
    %582 = vmatpush1.msra.mxu0 0.0
    %583 = vmatprep.subr.mxu0 0.0
    %584 = vmatpush1.msra.mxu0 0.0
    %585 = vmatprep.mubr.f32.mxu0 0.0
    %586 = vmatmul.mubr.f32.gmra.mrb[0].mxu0 %v41
    %v587 = vpop.f32.mrb[0].mxu0
    %v588 = vadd.f32 %v37, %v587
    %v589 = vpop.f32.mrb[0].mxu0
    %590 = vdwg.mxu0
    %v591 = vmax.f32 %v588, 0.0
    %s592 = scalar_lea.vmem [#allocation3], 28
    %v593 = vld [vmem:[%s592] sm:$0xf]
    %v594 = vadd.f32 %v591, %v593
    %s595 = scalar_lea.vmem [#allocation2], 28
    %596 = vst.msk [vmem:[%s595] sm:$0xf] %vm32, %v594
    %v598 = vsel %vm43, %v594, 0
    %600 = vmatprep.subr.mxu0 0.0
    %601 = vmatpush1.msra.mxu0 %v598
    %602 = vmatprep.subr.mxu0 0.0
    %603 = vmatpush1.msra.mxu0 0.0
    %604 = vmatprep.subr.mxu0 0.0
    %605 = vmatpush1.msra.mxu0 0.0
    %606 = vmatprep.subr.mxu0 0.0
    %607 = vmatpush1.msra.mxu0 0.0
    %608 = vmatprep.subr.mxu0 0.0
    %609 = vmatpush1.msra.mxu0 0.0
    %610 = vmatprep.subr.mxu0 0.0
    %611 = vmatpush1.msra.mxu0 0.0
    %612 = vmatprep.subr.mxu0 0.0
    %613 = vmatpush1.msra.mxu0 0.0
    %614 = vmatprep.subr.mxu0 0.0
    %615 = vmatpush1.msra.mxu0 0.0
    %616 = vmatprep.subr.mxu0 0.0
    %617 = vmatpush1.msra.mxu0 0.0
    %618 = vmatprep.subr.mxu0 0.0
    %619 = vmatpush1.msra.mxu0 0.0
    %620 = vmatprep.subr.mxu0 0.0
    %621 = vmatpush1.msra.mxu0 0.0
    %622 = vmatprep.subr.mxu0 0.0
    %623 = vmatpush1.msra.mxu0 0.0
    %624 = vmatprep.subr.mxu0 0.0
    %625 = vmatpush1.msra.mxu0 0.0
    %626 = vmatprep.subr.mxu0 0.0
    %627 = vmatpush1.msra.mxu0 0.0
    %628 = vmatprep.subr.mxu0 0.0
    %629 = vmatpush1.msra.mxu0 0.0
    %630 = vmatprep.subr.mxu0 0.0
    %631 = vmatpush1.msra.mxu0 0.0
    %632 = vmatprep.subr.mxu0 0.0
    %633 = vmatpush1.msra.mxu0 0.0
    %634 = vmatprep.subr.mxu0 0.0
    %635 = vmatpush1.msra.mxu0 0.0
    %636 = vmatprep.subr.mxu0 0.0
    %637 = vmatpush1.msra.mxu0 0.0
    %638 = vmatprep.subr.mxu0 0.0
    %639 = vmatpush1.msra.mxu0 0.0
    %640 = vmatprep.subr.mxu0 0.0
    %641 = vmatpush1.msra.mxu0 0.0
    %642 = vmatprep.subr.mxu0 0.0
    %643 = vmatpush1.msra.mxu0 0.0
    %644 = vmatprep.subr.mxu0 0.0
    %645 = vmatpush1.msra.mxu0 0.0
    %646 = vmatprep.subr.mxu0 0.0
    %647 = vmatpush1.msra.mxu0 0.0
    %648 = vmatprep.subr.mxu0 0.0
    %649 = vmatpush1.msra.mxu0 0.0
    %650 = vmatprep.subr.mxu0 0.0
    %651 = vmatpush1.msra.mxu0 0.0
    %652 = vmatprep.subr.mxu0 0.0
    %653 = vmatpush1.msra.mxu0 0.0
    %654 = vmatprep.subr.mxu0 0.0
    %655 = vmatpush1.msra.mxu0 0.0
    %656 = vmatprep.subr.mxu0 0.0
    %657 = vmatpush1.msra.mxu0 0.0
    %658 = vmatprep.subr.mxu0 0.0
    %659 = vmatpush1.msra.mxu0 0.0
    %660 = vmatprep.subr.mxu0 0.0
    %661 = vmatpush1.msra.mxu0 0.0
    %662 = vmatprep.subr.mxu0 0.0
    %663 = vmatpush1.msra.mxu0 0.0
    %664 = vmatprep.mubr.f32.mxu0 0.0
    %665 = vmatmul.mubr.f32.gmra.mrb[0].mxu0 %v41
    %v666 = vpop.f32.mrb[0].mxu0
    %v667 = vadd.f32 %v37, %v666
    %v668 = vpop.f32.mrb[0].mxu0
    %669 = vdwg.mxu0
    %v670 = vmax.f32 %v667, 0.0
    %s671 = scalar_lea.vmem [#allocation3], 32
    %v672 = vld [vmem:[%s671] sm:$0xf]
    %v673 = vadd.f32 %v670, %v672
    %s674 = scalar_lea.vmem [#allocation2], 32
    %675 = vst.msk [vmem:[%s674] sm:$0xf] %vm32, %v673
    %v677 = vsel %vm43, %v673, 0
    %679 = vmatprep.subr.mxu0 0.0
    %680 = vmatpush1.msra.mxu0 %v677
    %681 = vmatprep.subr.mxu0 0.0
    %682 = vmatpush1.msra.mxu0 0.0
    %683 = vmatprep.subr.mxu0 0.0
    %684 = vmatpush1.msra.mxu0 0.0
    %685 = vmatprep.subr.mxu0 0.0
    %686 = vmatpush1.msra.mxu0 0.0
    %687 = vmatprep.subr.mxu0 0.0
    %688 = vmatpush1.msra.mxu0 0.0
    %689 = vmatprep.subr.mxu0 0.0
    %690 = vmatpush1.msra.mxu0 0.0
    %691 = vmatprep.subr.mxu0 0.0
    %692 = vmatpush1.msra.mxu0 0.0
    %693 = vmatprep.subr.mxu0 0.0
    %694 = vmatpush1.msra.mxu0 0.0
    %695 = vmatprep.subr.mxu0 0.0
    %696 = vmatpush1.msra.mxu0 0.0
    %697 = vmatprep.subr.mxu0 0.0
    %698 = vmatpush1.msra.mxu0 0.0
    %699 = vmatprep.subr.mxu0 0.0
    %700 = vmatpush1.msra.mxu0 0.0
    %701 = vmatprep.subr.mxu0 0.0
    %702 = vmatpush1.msra.mxu0 0.0
    %703 = vmatprep.subr.mxu0 0.0
    %704 = vmatpush1.msra.mxu0 0.0
    %705 = vmatprep.subr.mxu0 0.0
    %706 = vmatpush1.msra.mxu0 0.0
    %707 = vmatprep.subr.mxu0 0.0
    %708 = vmatpush1.msra.mxu0 0.0
    %709 = vmatprep.subr.mxu0 0.0
    %710 = vmatpush1.msra.mxu0 0.0
    %711 = vmatprep.subr.mxu0 0.0
    %712 = vmatpush1.msra.mxu0 0.0
    %713 = vmatprep.subr.mxu0 0.0
    %714 = vmatpush1.msra.mxu0 0.0
    %715 = vmatprep.subr.mxu0 0.0
    %716 = vmatpush1.msra.mxu0 0.0
    %717 = vmatprep.subr.mxu0 0.0
    %718 = vmatpush1.msra.mxu0 0.0
    %719 = vmatprep.subr.mxu0 0.0
    %720 = vmatpush1.msra.mxu0 0.0
    %721 = vmatprep.subr.mxu0 0.0
    %722 = vmatpush1.msra.mxu0 0.0
    %723 = vmatprep.subr.mxu0 0.0
    %724 = vmatpush1.msra.mxu0 0.0
    %725 = vmatprep.subr.mxu0 0.0
    %726 = vmatpush1.msra.mxu0 0.0
    %727 = vmatprep.subr.mxu0 0.0
    %728 = vmatpush1.msra.mxu0 0.0
    %729 = vmatprep.subr.mxu0 0.0
    %730 = vmatpush1.msra.mxu0 0.0
    %731 = vmatprep.subr.mxu0 0.0
    %732 = vmatpush1.msra.mxu0 0.0
    %733 = vmatprep.subr.mxu0 0.0
    %734 = vmatpush1.msra.mxu0 0.0
    %735 = vmatprep.subr.mxu0 0.0
    %736 = vmatpush1.msra.mxu0 0.0
    %737 = vmatprep.subr.mxu0 0.0
    %738 = vmatpush1.msra.mxu0 0.0
    %739 = vmatprep.subr.mxu0 0.0
    %740 = vmatpush1.msra.mxu0 0.0
    %741 = vmatprep.subr.mxu0 0.0
    %742 = vmatpush1.msra.mxu0 0.0
    %743 = vmatprep.mubr.f32.mxu0 0.0
    %744 = vmatmul.mubr.f32.gmra.mrb[0].mxu0 %v41
    %v745 = vpop.f32.mrb[0].mxu0
    %v746 = vadd.f32 %v37, %v745
    %v747 = vpop.f32.mrb[0].mxu0
    %748 = vdwg.mxu0
    %v749 = vmax.f32 %v746, 0.0
    %s750 = scalar_lea.vmem [#allocation3], 36
    %v751 = vld [vmem:[%s750] sm:$0xf]
    %v752 = vadd.f32 %v749, %v751
    %s753 = scalar_lea.vmem [#allocation2], 36
    %754 = vst.msk [vmem:[%s753] sm:$0xf] %vm32, %v752
    %v756 = vsel %vm43, %v752, 0
    %758 = vmatprep.subr.mxu0 0.0
    %759 = vmatpush1.msra.mxu0 %v756
    %760 = vmatprep.subr.mxu0 0.0
    %761 = vmatpush1.msra.mxu0 0.0
    %762 = vmatprep.subr.mxu0 0.0
    %763 = vmatpush1.msra.mxu0 0.0
    %764 = vmatprep.subr.mxu0 0.0
    %765 = vmatpush1.msra.mxu0 0.0
    %766 = vmatprep.subr.mxu0 0.0
    %767 = vmatpush1.msra.mxu0 0.0
    %768 = vmatprep.subr.mxu0 0.0
    %769 = vmatpush1.msra.mxu0 0.0
    %770 = vmatprep.subr.mxu0 0.0
    %771 = vmatpush1.msra.mxu0 0.0
    %772 = vmatprep.subr.mxu0 0.0
    %773 = vmatpush1.msra.mxu0 0.0
    %774 = vmatprep.subr.mxu0 0.0
    %775 = vmatpush1.msra.mxu0 0.0
    %776 = vmatprep.subr.mxu0 0.0
    %777 = vmatpush1.msra.mxu0 0.0
    %778 = vmatprep.subr.mxu0 0.0
    %779 = vmatpush1.msra.mxu0 0.0
    %780 = vmatprep.subr.mxu0 0.0
    %781 = vmatpush1.msra.mxu0 0.0
    %782 = vmatprep.subr.mxu0 0.0
    %783 = vmatpush1.msra.mxu0 0.0
    %784 = vmatprep.subr.mxu0 0.0
    %785 = vmatpush1.msra.mxu0 0.0
    %786 = vmatprep.subr.mxu0 0.0
    %787 = vmatpush1.msra.mxu0 0.0
    %788 = vmatprep.subr.mxu0 0.0
    %789 = vmatpush1.msra.mxu0 0.0
    %790 = vmatprep.subr.mxu0 0.0
    %791 = vmatpush1.msra.mxu0 0.0
    %792 = vmatprep.subr.mxu0 0.0
    %793 = vmatpush1.msra.mxu0 0.0
    %794 = vmatprep.subr.mxu0 0.0
    %795 = vmatpush1.msra.mxu0 0.0
    %796 = vmatprep.subr.mxu0 0.0
    %797 = vmatpush1.msra.mxu0 0.0
    %798 = vmatprep.subr.mxu0 0.0
    %799 = vmatpush1.msra.mxu0 0.0
    %800 = vmatprep.subr.mxu0 0.0
    %801 = vmatpush1.msra.mxu0 0.0
    %802 = vmatprep.subr.mxu0 0.0
    %803 = vmatpush1.msra.mxu0 0.0
    %804 = vmatprep.subr.mxu0 0.0
    %805 = vmatpush1.msra.mxu0 0.0
    %806 = vmatprep.subr.mxu0 0.0
    %807 = vmatpush1.msra.mxu0 0.0
    %808 = vmatprep.subr.mxu0 0.0
    %809 = vmatpush1.msra.mxu0 0.0
    %810 = vmatprep.subr.mxu0 0.0
    %811 = vmatpush1.msra.mxu0 0.0
    %812 = vmatprep.subr.mxu0 0.0
    %813 = vmatpush1.msra.mxu0 0.0
    %814 = vmatprep.subr.mxu0 0.0
    %815 = vmatpush1.msra.mxu0 0.0
    %816 = vmatprep.subr.mxu0 0.0
    %817 = vmatpush1.msra.mxu0 0.0
    %818 = vmatprep.subr.mxu0 0.0
    %819 = vmatpush1.msra.mxu0 0.0
    %820 = vmatprep.subr.mxu0 0.0
    %821 = vmatpush1.msra.mxu0 0.0
    %822 = vmatprep.mubr.f32.mxu0 0.0
    %823 = vmatmul.mubr.f32.gmra.mrb[0].mxu0 %v41
    %v824 = vpop.f32.mrb[0].mxu0
    %v825 = vadd.f32 %v37, %v824
    %v826 = vpop.f32.mrb[0].mxu0
    %827 = vdwg.mxu0
    %v828 = vmax.f32 %v825, 0.0
    %s829 = scalar_lea.vmem [#allocation3], 40
    %v830 = vld [vmem:[%s829] sm:$0xf]
    %v831 = vadd.f32 %v828, %v830
    %s832 = scalar_lea.vmem [#allocation2], 40
    %833 = vst.msk [vmem:[%s832] sm:$0xf] %vm32, %v831
    %v835 = vsel %vm43, %v831, 0
    %837 = vmatprep.subr.mxu0 0.0
    %838 = vmatpush1.msra.mxu0 %v835
    %839 = vmatprep.subr.mxu0 0.0
    %840 = vmatpush1.msra.mxu0 0.0
    %841 = vmatprep.subr.mxu0 0.0
    %842 = vmatpush1.msra.mxu0 0.0
    %843 = vmatprep.subr.mxu0 0.0
    %844 = vmatpush1.msra.mxu0 0.0
    %845 = vmatprep.subr.mxu0 0.0
    %846 = vmatpush1.msra.mxu0 0.0
    %847 = vmatprep.subr.mxu0 0.0
    %848 = vmatpush1.msra.mxu0 0.0
    %849 = vmatprep.subr.mxu0 0.0
    %850 = vmatpush1.msra.mxu0 0.0
    %851 = vmatprep.subr.mxu0 0.0
    %852 = vmatpush1.msra.mxu0 0.0
    %853 = vmatprep.subr.mxu0 0.0
    %854 = vmatpush1.msra.mxu0 0.0
    %855 = vmatprep.subr.mxu0 0.0
    %856 = vmatpush1.msra.mxu0 0.0
    %857 = vmatprep.subr.mxu0 0.0
    %858 = vmatpush1.msra.mxu0 0.0
    %859 = vmatprep.subr.mxu0 0.0
    %860 = vmatpush1.msra.mxu0 0.0
    %861 = vmatprep.subr.mxu0 0.0
    %862 = vmatpush1.msra.mxu0 0.0
    %863 = vmatprep.subr.mxu0 0.0
    %864 = vmatpush1.msra.mxu0 0.0
    %865 = vmatprep.subr.mxu0 0.0
    %866 = vmatpush1.msra.mxu0 0.0
    %867 = vmatprep.subr.mxu0 0.0
    %868 = vmatpush1.msra.mxu0 0.0
    %869 = vmatprep.subr.mxu0 0.0
    %870 = vmatpush1.msra.mxu0 0.0
    %871 = vmatprep.subr.mxu0 0.0
    %872 = vmatpush1.msra.mxu0 0.0
    %873 = vmatprep.subr.mxu0 0.0
    %874 = vmatpush1.msra.mxu0 0.0
    %875 = vmatprep.subr.mxu0 0.0
    %876 = vmatpush1.msra.mxu0 0.0
    %877 = vmatprep.subr.mxu0 0.0
    %878 = vmatpush1.msra.mxu0 0.0
    %879 = vmatprep.subr.mxu0 0.0
    %880 = vmatpush1.msra.mxu0 0.0
    %881 = vmatprep.subr.mxu0 0.0
    %882 = vmatpush1.msra.mxu0 0.0
    %883 = vmatprep.subr.mxu0 0.0
    %884 = vmatpush1.msra.mxu0 0.0
    %885 = vmatprep.subr.mxu0 0.0
    %886 = vmatpush1.msra.mxu0 0.0
    %887 = vmatprep.subr.mxu0 0.0
    %888 = vmatpush1.msra.mxu0 0.0
    %889 = vmatprep.subr.mxu0 0.0
    %890 = vmatpush1.msra.mxu0 0.0
    %891 = vmatprep.subr.mxu0 0.0
    %892 = vmatpush1.msra.mxu0 0.0
    %893 = vmatprep.subr.mxu0 0.0
    %894 = vmatpush1.msra.mxu0 0.0
    %895 = vmatprep.subr.mxu0 0.0
    %896 = vmatpush1.msra.mxu0 0.0
    %897 = vmatprep.subr.mxu0 0.0
    %898 = vmatpush1.msra.mxu0 0.0
    %899 = vmatprep.subr.mxu0 0.0
    %900 = vmatpush1.msra.mxu0 0.0
    %901 = vmatprep.mubr.f32.mxu0 0.0
    %902 = vmatmul.mubr.f32.gmra.mrb[0].mxu0 %v41
    %v903 = vpop.f32.mrb[0].mxu0
    %v904 = vadd.f32 %v37, %v903
    %v905 = vpop.f32.mrb[0].mxu0
    %906 = vdwg.mxu0
    %v907 = vmax.f32 %v904, 0.0
    %s908 = scalar_lea.vmem [#allocation3], 44
    %v909 = vld [vmem:[%s908] sm:$0xf]
    %v910 = vadd.f32 %v907, %v909
    %s911 = scalar_lea.vmem [#allocation2], 44
    %912 = vst.msk [vmem:[%s911] sm:$0xf] %vm32, %v910
    %v914 = vsel %vm43, %v910, 0
    %916 = vmatprep.subr.mxu0 0.0
    %917 = vmatpush1.msra.mxu0 %v914
    %918 = vmatprep.subr.mxu0 0.0
    %919 = vmatpush1.msra.mxu0 0.0
    %920 = vmatprep.subr.mxu0 0.0
    %921 = vmatpush1.msra.mxu0 0.0
    %922 = vmatprep.subr.mxu0 0.0
    %923 = vmatpush1.msra.mxu0 0.0
    %924 = vmatprep.subr.mxu0 0.0
    %925 = vmatpush1.msra.mxu0 0.0
    %926 = vmatprep.subr.mxu0 0.0
    %927 = vmatpush1.msra.mxu0 0.0
    %928 = vmatprep.subr.mxu0 0.0
    %929 = vmatpush1.msra.mxu0 0.0
    %930 = vmatprep.subr.mxu0 0.0
    %931 = vmatpush1.msra.mxu0 0.0
    %932 = vmatprep.subr.mxu0 0.0
    %933 = vmatpush1.msra.mxu0 0.0
    %934 = vmatprep.subr.mxu0 0.0
    %935 = vmatpush1.msra.mxu0 0.0
    %936 = vmatprep.subr.mxu0 0.0
    %937 = vmatpush1.msra.mxu0 0.0
    %938 = vmatprep.subr.mxu0 0.0
    %939 = vmatpush1.msra.mxu0 0.0
    %940 = vmatprep.subr.mxu0 0.0
    %941 = vmatpush1.msra.mxu0 0.0
    %942 = vmatprep.subr.mxu0 0.0
    %943 = vmatpush1.msra.mxu0 0.0
    %944 = vmatprep.subr.mxu0 0.0
    %945 = vmatpush1.msra.mxu0 0.0
    %946 = vmatprep.subr.mxu0 0.0
    %947 = vmatpush1.msra.mxu0 0.0
    %948 = vmatprep.subr.mxu0 0.0
    %949 = vmatpush1.msra.mxu0 0.0
    %950 = vmatprep.subr.mxu0 0.0
    %951 = vmatpush1.msra.mxu0 0.0
    %952 = vmatprep.subr.mxu0 0.0
    %953 = vmatpush1.msra.mxu0 0.0
    %954 = vmatprep.subr.mxu0 0.0
    %955 = vmatpush1.msra.mxu0 0.0
    %956 = vmatprep.subr.mxu0 0.0
    %957 = vmatpush1.msra.mxu0 0.0
    %958 = vmatprep.subr.mxu0 0.0
    %959 = vmatpush1.msra.mxu0 0.0
    %960 = vmatprep.subr.mxu0 0.0
    %961 = vmatpush1.msra.mxu0 0.0
    %962 = vmatprep.subr.mxu0 0.0
    %963 = vmatpush1.msra.mxu0 0.0
    %964 = vmatprep.subr.mxu0 0.0
    %965 = vmatpush1.msra.mxu0 0.0
    %966 = vmatprep.subr.mxu0 0.0
    %967 = vmatpush1.msra.mxu0 0.0
    %968 = vmatprep.subr.mxu0 0.0
    %969 = vmatpush1.msra.mxu0 0.0
    %970 = vmatprep.subr.mxu0 0.0
    %971 = vmatpush1.msra.mxu0 0.0
    %972 = vmatprep.subr.mxu0 0.0
    %973 = vmatpush1.msra.mxu0 0.0
    %974 = vmatprep.subr.mxu0 0.0
    %975 = vmatpush1.msra.mxu0 0.0
    %976 = vmatprep.subr.mxu0 0.0
    %977 = vmatpush1.msra.mxu0 0.0
    %978 = vmatprep.subr.mxu0 0.0
    %979 = vmatpush1.msra.mxu0 0.0
    %980 = vmatprep.mubr.f32.mxu0 0.0
    %981 = vmatmul.mubr.f32.gmra.mrb[0].mxu0 %v41
    %v982 = vpop.f32.mrb[0].mxu0
    %v983 = vadd.f32 %v37, %v982
    %v984 = vpop.f32.mrb[0].mxu0
    %985 = vdwg.mxu0
    %v986 = vmax.f32 %v983, 0.0
    %s987 = scalar_lea.vmem [#allocation3], 48
    %v988 = vld [vmem:[%s987] sm:$0xf]
    %v989 = vadd.f32 %v986, %v988
    %s990 = scalar_lea.vmem [#allocation2], 48
    %991 = vst.msk [vmem:[%s990] sm:$0xf] %vm32, %v989
    %v993 = vsel %vm43, %v989, 0
    %995 = vmatprep.subr.mxu0 0.0
    %996 = vmatpush1.msra.mxu0 %v993
    %997 = vmatprep.subr.mxu0 0.0
    %998 = vmatpush1.msra.mxu0 0.0
    %999 = vmatprep.subr.mxu0 0.0
    %1000 = vmatpush1.msra.mxu0 0.0
    %1001 = vmatprep.subr.mxu0 0.0
    %1002 = vmatpush1.msra.mxu0 0.0
    %1003 = vmatprep.subr.mxu0 0.0
    %1004 = vmatpush1.msra.mxu0 0.0
    %1005 = vmatprep.subr.mxu0 0.0
    %1006 = vmatpush1.msra.mxu0 0.0
    %1007 = vmatprep.subr.mxu0 0.0
    %1008 = vmatpush1.msra.mxu0 0.0
    %1009 = vmatprep.subr.mxu0 0.0
    %1010 = vmatpush1.msra.mxu0 0.0
    %1011 = vmatprep.subr.mxu0 0.0
    %1012 = vmatpush1.msra.mxu0 0.0
    %1013 = vmatprep.subr.mxu0 0.0
    %1014 = vmatpush1.msra.mxu0 0.0
    %1015 = vmatprep.subr.mxu0 0.0
    %1016 = vmatpush1.msra.mxu0 0.0
    %1017 = vmatprep.subr.mxu0 0.0
    %1018 = vmatpush1.msra.mxu0 0.0
    %1019 = vmatprep.subr.mxu0 0.0
    %1020 = vmatpush1.msra.mxu0 0.0
    %1021 = vmatprep.subr.mxu0 0.0
    %1022 = vmatpush1.msra.mxu0 0.0
    %1023 = vmatprep.subr.mxu0 0.0
    %1024 = vmatpush1.msra.mxu0 0.0
    %1025 = vmatprep.subr.mxu0 0.0
    %1026 = vmatpush1.msra.mxu0 0.0
    %1027 = vmatprep.subr.mxu0 0.0
    %1028 = vmatpush1.msra.mxu0 0.0
    %1029 = vmatprep.subr.mxu0 0.0
    %1030 = vmatpush1.msra.mxu0 0.0
    %1031 = vmatprep.subr.mxu0 0.0
    %1032 = vmatpush1.msra.mxu0 0.0
    %1033 = vmatprep.subr.mxu0 0.0
    %1034 = vmatpush1.msra.mxu0 0.0
    %1035 = vmatprep.subr.mxu0 0.0
    %1036 = vmatpush1.msra.mxu0 0.0
    %1037 = vmatprep.subr.mxu0 0.0
    %1038 = vmatpush1.msra.mxu0 0.0
    %1039 = vmatprep.subr.mxu0 0.0
    %1040 = vmatpush1.msra.mxu0 0.0
    %1041 = vmatprep.subr.mxu0 0.0
    %1042 = vmatpush1.msra.mxu0 0.0
    %1043 = vmatprep.subr.mxu0 0.0
    %1044 = vmatpush1.msra.mxu0 0.0
    %1045 = vmatprep.subr.mxu0 0.0
    %1046 = vmatpush1.msra.mxu0 0.0
    %1047 = vmatprep.subr.mxu0 0.0
    %1048 = vmatpush1.msra.mxu0 0.0
    %1049 = vmatprep.subr.mxu0 0.0
    %1050 = vmatpush1.msra.mxu0 0.0
    %1051 = vmatprep.subr.mxu0 0.0
    %1052 = vmatpush1.msra.mxu0 0.0
    %1053 = vmatprep.subr.mxu0 0.0
    %1054 = vmatpush1.msra.mxu0 0.0
    %1055 = vmatprep.subr.mxu0 0.0
    %1056 = vmatpush1.msra.mxu0 0.0
    %1057 = vmatprep.subr.mxu0 0.0
    %1058 = vmatpush1.msra.mxu0 0.0
    %1059 = vmatprep.mubr.f32.mxu0 0.0
    %1060 = vmatmul.mubr.f32.gmra.mrb[0].mxu0 %v41
    %v1061 = vpop.f32.mrb[0].mxu0
    %v1062 = vadd.f32 %v37, %v1061
    %v1063 = vpop.f32.mrb[0].mxu0
    %1064 = vdwg.mxu0
    %v1065 = vmax.f32 %v1062, 0.0
    %s1066 = scalar_lea.vmem [#allocation3], 52
    %v1067 = vld [vmem:[%s1066] sm:$0xf]
    %v1068 = vadd.f32 %v1065, %v1067
    %s1069 = scalar_lea.vmem [#allocation2], 52
    %1070 = vst.msk [vmem:[%s1069] sm:$0xf] %vm32, %v1068
    %v1072 = vsel %vm43, %v1068, 0
    %1074 = vmatprep.subr.mxu0 0.0
    %1075 = vmatpush1.msra.mxu0 %v1072
    %1076 = vmatprep.subr.mxu0 0.0
    %1077 = vmatpush1.msra.mxu0 0.0
    %1078 = vmatprep.subr.mxu0 0.0
    %1079 = vmatpush1.msra.mxu0 0.0
    %1080 = vmatprep.subr.mxu0 0.0
    %1081 = vmatpush1.msra.mxu0 0.0
    %1082 = vmatprep.subr.mxu0 0.0
    %1083 = vmatpush1.msra.mxu0 0.0
    %1084 = vmatprep.subr.mxu0 0.0
    %1085 = vmatpush1.msra.mxu0 0.0
    %1086 = vmatprep.subr.mxu0 0.0
    %1087 = vmatpush1.msra.mxu0 0.0
    %1088 = vmatprep.subr.mxu0 0.0
    %1089 = vmatpush1.msra.mxu0 0.0
    %1090 = vmatprep.subr.mxu0 0.0
    %1091 = vmatpush1.msra.mxu0 0.0
    %1092 = vmatprep.subr.mxu0 0.0
    %1093 = vmatpush1.msra.mxu0 0.0
    %1094 = vmatprep.subr.mxu0 0.0
    %1095 = vmatpush1.msra.mxu0 0.0
    %1096 = vmatprep.subr.mxu0 0.0
    %1097 = vmatpush1.msra.mxu0 0.0
    %1098 = vmatprep.subr.mxu0 0.0
    %1099 = vmatpush1.msra.mxu0 0.0
    %1100 = vmatprep.subr.mxu0 0.0
    %1101 = vmatpush1.msra.mxu0 0.0
    %1102 = vmatprep.subr.mxu0 0.0
    %1103 = vmatpush1.msra.mxu0 0.0
    %1104 = vmatprep.subr.mxu0 0.0
    %1105 = vmatpush1.msra.mxu0 0.0
    %1106 = vmatprep.subr.mxu0 0.0
    %1107 = vmatpush1.msra.mxu0 0.0
    %1108 = vmatprep.subr.mxu0 0.0
    %1109 = vmatpush1.msra.mxu0 0.0
    %1110 = vmatprep.subr.mxu0 0.0
    %1111 = vmatpush1.msra.mxu0 0.0
    %1112 = vmatprep.subr.mxu0 0.0
    %1113 = vmatpush1.msra.mxu0 0.0
    %1114 = vmatprep.subr.mxu0 0.0
    %1115 = vmatpush1.msra.mxu0 0.0
    %1116 = vmatprep.subr.mxu0 0.0
    %1117 = vmatpush1.msra.mxu0 0.0
    %1118 = vmatprep.subr.mxu0 0.0
    %1119 = vmatpush1.msra.mxu0 0.0
    %1120 = vmatprep.subr.mxu0 0.0
    %1121 = vmatpush1.msra.mxu0 0.0
    %1122 = vmatprep.subr.mxu0 0.0
    %1123 = vmatpush1.msra.mxu0 0.0
    %1124 = vmatprep.subr.mxu0 0.0
    %1125 = vmatpush1.msra.mxu0 0.0
    %1126 = vmatprep.subr.mxu0 0.0
    %1127 = vmatpush1.msra.mxu0 0.0
    %1128 = vmatprep.subr.mxu0 0.0
    %1129 = vmatpush1.msra.mxu0 0.0
    %1130 = vmatprep.subr.mxu0 0.0
    %1131 = vmatpush1.msra.mxu0 0.0
    %1132 = vmatprep.subr.mxu0 0.0
    %1133 = vmatpush1.msra.mxu0 0.0
    %1134 = vmatprep.subr.mxu0 0.0
    %1135 = vmatpush1.msra.mxu0 0.0
    %1136 = vmatprep.subr.mxu0 0.0
    %1137 = vmatpush1.msra.mxu0 0.0
    %1138 = vmatprep.mubr.f32.mxu0 0.0
    %1139 = vmatmul.mubr.f32.gmra.mrb[0].mxu0 %v41
    %v1140 = vpop.f32.mrb[0].mxu0
    %v1141 = vadd.f32 %v37, %v1140
    %v1142 = vpop.f32.mrb[0].mxu0
    %1143 = vdwg.mxu0
    %v1144 = vmax.f32 %v1141, 0.0
    %s1145 = scalar_lea.vmem [#allocation3], 56
    %v1146 = vld [vmem:[%s1145] sm:$0xf]
    %v1147 = vadd.f32 %v1144, %v1146
    %s1148 = scalar_lea.vmem [#allocation2], 56
    %1149 = vst.msk [vmem:[%s1148] sm:$0xf] %vm32, %v1147
    %v1151 = vsel %vm43, %v1147, 0
    %1153 = vmatprep.subr.mxu0 0.0
    %1154 = vmatpush1.msra.mxu0 %v1151
    %1155 = vmatprep.subr.mxu0 0.0
    %1156 = vmatpush1.msra.mxu0 0.0
    %1157 = vmatprep.subr.mxu0 0.0
    %1158 = vmatpush1.msra.mxu0 0.0
    %1159 = vmatprep.subr.mxu0 0.0
    %1160 = vmatpush1.msra.mxu0 0.0
    %1161 = vmatprep.subr.mxu0 0.0
    %1162 = vmatpush1.msra.mxu0 0.0
    %1163 = vmatprep.subr.mxu0 0.0
    %1164 = vmatpush1.msra.mxu0 0.0
    %1165 = vmatprep.subr.mxu0 0.0
    %1166 = vmatpush1.msra.mxu0 0.0
    %1167 = vmatprep.subr.mxu0 0.0
    %1168 = vmatpush1.msra.mxu0 0.0
    %1169 = vmatprep.subr.mxu0 0.0
    %1170 = vmatpush1.msra.mxu0 0.0
    %1171 = vmatprep.subr.mxu0 0.0
    %1172 = vmatpush1.msra.mxu0 0.0
    %1173 = vmatprep.subr.mxu0 0.0
    %1174 = vmatpush1.msra.mxu0 0.0
    %1175 = vmatprep.subr.mxu0 0.0
    %1176 = vmatpush1.msra.mxu0 0.0
    %1177 = vmatprep.subr.mxu0 0.0
    %1178 = vmatpush1.msra.mxu0 0.0
    %1179 = vmatprep.subr.mxu0 0.0
    %1180 = vmatpush1.msra.mxu0 0.0
    %1181 = vmatprep.subr.mxu0 0.0
    %1182 = vmatpush1.msra.mxu0 0.0
    %1183 = vmatprep.subr.mxu0 0.0
    %1184 = vmatpush1.msra.mxu0 0.0
    %1185 = vmatprep.subr.mxu0 0.0
    %1186 = vmatpush1.msra.mxu0 0.0
    %1187 = vmatprep.subr.mxu0 0.0
    %1188 = vmatpush1.msra.mxu0 0.0
    %1189 = vmatprep.subr.mxu0 0.0
    %1190 = vmatpush1.msra.mxu0 0.0
    %1191 = vmatprep.subr.mxu0 0.0
    %1192 = vmatpush1.msra.mxu0 0.0
    %1193 = vmatprep.subr.mxu0 0.0
    %1194 = vmatpush1.msra.mxu0 0.0
    %1195 = vmatprep.subr.mxu0 0.0
    %1196 = vmatpush1.msra.mxu0 0.0
    %1197 = vmatprep.subr.mxu0 0.0
    %1198 = vmatpush1.msra.mxu0 0.0
    %1199 = vmatprep.subr.mxu0 0.0
    %1200 = vmatpush1.msra.mxu0 0.0
    %1201 = vmatprep.subr.mxu0 0.0
    %1202 = vmatpush1.msra.mxu0 0.0
    %1203 = vmatprep.subr.mxu0 0.0
    %1204 = vmatpush1.msra.mxu0 0.0
    %1205 = vmatprep.subr.mxu0 0.0
    %1206 = vmatpush1.msra.mxu0 0.0
    %1207 = vmatprep.subr.mxu0 0.0
    %1208 = vmatpush1.msra.mxu0 0.0
    %1209 = vmatprep.subr.mxu0 0.0
    %1210 = vmatpush1.msra.mxu0 0.0
    %1211 = vmatprep.subr.mxu0 0.0
    %1212 = vmatpush1.msra.mxu0 0.0
    %1213 = vmatprep.subr.mxu0 0.0
    %1214 = vmatpush1.msra.mxu0 0.0
    %1215 = vmatprep.subr.mxu0 0.0
    %1216 = vmatpush1.msra.mxu0 0.0
    %1217 = vmatprep.mubr.f32.mxu0 0.0
    %1218 = vmatmul.mubr.f32.gmra.mrb[0].mxu0 %v41
    %v1219 = vpop.f32.mrb[0].mxu0
    %v1220 = vadd.f32 %v37, %v1219
    %v1221 = vpop.f32.mrb[0].mxu0
    %1222 = vdwg.mxu0
    %v1223 = vmax.f32 %v1220, 0.0
    %s1224 = scalar_lea.vmem [#allocation3], 60
    %v1225 = vld [vmem:[%s1224] sm:$0xf]
    %v1226 = vadd.f32 %v1223, %v1225
    %s1227 = scalar_lea.vmem [#allocation6], 60
    %1228 = vst.msk [vmem:[%s1227] sm:$0xf] %vm32, %v1226
    %v1230 = vsel %vm43, %v1226, 0
    %1232 = vmatprep.subr.mxu0 0.0
    %1233 = vmatpush1.msra.mxu0 %v1230
    %1234 = vmatprep.subr.mxu0 0.0
    %1235 = vmatpush1.msra.mxu0 0.0
    %1236 = vmatprep.subr.mxu0 0.0
    %1237 = vmatpush1.msra.mxu0 0.0
    %1238 = vmatprep.subr.mxu0 0.0
    %1239 = vmatpush1.msra.mxu0 0.0
    %1240 = vmatprep.subr.mxu0 0.0
    %1241 = vmatpush1.msra.mxu0 0.0
    %1242 = vmatprep.subr.mxu0 0.0
    %1243 = vmatpush1.msra.mxu0 0.0
    %1244 = vmatprep.subr.mxu0 0.0
    %1245 = vmatpush1.msra.mxu0 0.0
    %1246 = vmatprep.subr.mxu0 0.0
    %1247 = vmatpush1.msra.mxu0 0.0
    %1248 = vmatprep.subr.mxu0 0.0
    %1249 = vmatpush1.msra.mxu0 0.0
    %1250 = vmatprep.subr.mxu0 0.0
    %1251 = vmatpush1.msra.mxu0 0.0
    %1252 = vmatprep.subr.mxu0 0.0
    %1253 = vmatpush1.msra.mxu0 0.0
    %1254 = vmatprep.subr.mxu0 0.0
    %1255 = vmatpush1.msra.mxu0 0.0
    %1256 = vmatprep.subr.mxu0 0.0
    %1257 = vmatpush1.msra.mxu0 0.0
    %1258 = vmatprep.subr.mxu0 0.0
    %1259 = vmatpush1.msra.mxu0 0.0
    %1260 = vmatprep.subr.mxu0 0.0
    %1261 = vmatpush1.msra.mxu0 0.0
    %1262 = vmatprep.subr.mxu0 0.0
    %1263 = vmatpush1.msra.mxu0 0.0
    %1264 = vmatprep.subr.mxu0 0.0
    %1265 = vmatpush1.msra.mxu0 0.0
    %1266 = vmatprep.subr.mxu0 0.0
    %1267 = vmatpush1.msra.mxu0 0.0
    %1268 = vmatprep.subr.mxu0 0.0
    %1269 = vmatpush1.msra.mxu0 0.0
    %1270 = vmatprep.subr.mxu0 0.0
    %1271 = vmatpush1.msra.mxu0 0.0
    %1272 = vmatprep.subr.mxu0 0.0
    %1273 = vmatpush1.msra.mxu0 0.0
    %1274 = vmatprep.subr.mxu0 0.0
    %1275 = vmatpush1.msra.mxu0 0.0
    %1276 = vmatprep.subr.mxu0 0.0
    %1277 = vmatpush1.msra.mxu0 0.0
    %1278 = vmatprep.subr.mxu0 0.0
    %1279 = vmatpush1.msra.mxu0 0.0
    %1280 = vmatprep.subr.mxu0 0.0
    %1281 = vmatpush1.msra.mxu0 0.0
    %1282 = vmatprep.subr.mxu0 0.0
    %1283 = vmatpush1.msra.mxu0 0.0
    %1284 = vmatprep.subr.mxu0 0.0
    %1285 = vmatpush1.msra.mxu0 0.0
    %1286 = vmatprep.subr.mxu0 0.0
    %1287 = vmatpush1.msra.mxu0 0.0
    %1288 = vmatprep.subr.mxu0 0.0
    %1289 = vmatpush1.msra.mxu0 0.0
    %1290 = vmatprep.subr.mxu0 0.0
    %1291 = vmatpush1.msra.mxu0 0.0
    %1292 = vmatprep.subr.mxu0 0.0
    %1293 = vmatpush1.msra.mxu0 0.0
    %1294 = vmatprep.subr.mxu0 0.0
    %1295 = vmatpush1.msra.mxu0 0.0
    %1296 = vmatprep.mubr.f32.mxu0 0.0
    %1297 = vmatmul.mubr.f32.gmra.mrb[0].mxu0 %v41
    %v1298 = vpop.f32.mrb[0].mxu0
    %v1299 = vadd.f32 %v37, %v1298
    %v1300 = vpop.f32.mrb[0].mxu0
    %1301 = vdwg.mxu0
    %v1302 = vmax.f32 %v1299, 0.0
    %v1303 = vld [vmem:[%s1148] sm:$0xf]
    %v1304 = vadd.f32 %v1302, %v1303
    %s1305 = scalar_lea.vmem [#allocation6], 56
    %1306 = vst.msk [vmem:[%s1305] sm:$0xf] %vm32, %v1304
    %v1308 = vsel %vm43, %v1304, 0
    %1310 = vmatprep.subr.mxu0 0.0
    %1311 = vmatpush1.msra.mxu0 %v1308
    %1312 = vmatprep.subr.mxu0 0.0
    %1313 = vmatpush1.msra.mxu0 0.0
    %1314 = vmatprep.subr.mxu0 0.0
    %1315 = vmatpush1.msra.mxu0 0.0
    %1316 = vmatprep.subr.mxu0 0.0
    %1317 = vmatpush1.msra.mxu0 0.0
    %1318 = vmatprep.subr.mxu0 0.0
    %1319 = vmatpush1.msra.mxu0 0.0
    %1320 = vmatprep.subr.mxu0 0.0
    %1321 = vmatpush1.msra.mxu0 0.0
    %1322 = vmatprep.subr.mxu0 0.0
    %1323 = vmatpush1.msra.mxu0 0.0
    %1324 = vmatprep.subr.mxu0 0.0
    %1325 = vmatpush1.msra.mxu0 0.0
    %1326 = vmatprep.subr.mxu0 0.0
    %1327 = vmatpush1.msra.mxu0 0.0
    %1328 = vmatprep.subr.mxu0 0.0
    %1329 = vmatpush1.msra.mxu0 0.0
    %1330 = vmatprep.subr.mxu0 0.0
    %1331 = vmatpush1.msra.mxu0 0.0
    %1332 = vmatprep.subr.mxu0 0.0
    %1333 = vmatpush1.msra.mxu0 0.0
    %1334 = vmatprep.subr.mxu0 0.0
    %1335 = vmatpush1.msra.mxu0 0.0
    %1336 = vmatprep.subr.mxu0 0.0
    %1337 = vmatpush1.msra.mxu0 0.0
    %1338 = vmatprep.subr.mxu0 0.0
    %1339 = vmatpush1.msra.mxu0 0.0
    %1340 = vmatprep.subr.mxu0 0.0
    %1341 = vmatpush1.msra.mxu0 0.0
    %1342 = vmatprep.subr.mxu0 0.0
    %1343 = vmatpush1.msra.mxu0 0.0
    %1344 = vmatprep.subr.mxu0 0.0
    %1345 = vmatpush1.msra.mxu0 0.0
    %1346 = vmatprep.subr.mxu0 0.0
    %1347 = vmatpush1.msra.mxu0 0.0
    %1348 = vmatprep.subr.mxu0 0.0
    %1349 = vmatpush1.msra.mxu0 0.0
    %1350 = vmatprep.subr.mxu0 0.0
    %1351 = vmatpush1.msra.mxu0 0.0
    %1352 = vmatprep.subr.mxu0 0.0
    %1353 = vmatpush1.msra.mxu0 0.0
    %1354 = vmatprep.subr.mxu0 0.0
    %1355 = vmatpush1.msra.mxu0 0.0
    %1356 = vmatprep.subr.mxu0 0.0
    %1357 = vmatpush1.msra.mxu0 0.0
    %1358 = vmatprep.subr.mxu0 0.0
    %1359 = vmatpush1.msra.mxu0 0.0
    %1360 = vmatprep.subr.mxu0 0.0
    %1361 = vmatpush1.msra.mxu0 0.0
    %1362 = vmatprep.subr.mxu0 0.0
    %1363 = vmatpush1.msra.mxu0 0.0
    %1364 = vmatprep.subr.mxu0 0.0
    %1365 = vmatpush1.msra.mxu0 0.0
    %1366 = vmatprep.subr.mxu0 0.0
    %1367 = vmatpush1.msra.mxu0 0.0
    %1368 = vmatprep.subr.mxu0 0.0
    %1369 = vmatpush1.msra.mxu0 0.0
    %1370 = vmatprep.subr.mxu0 0.0
    %1371 = vmatpush1.msra.mxu0 0.0
    %1372 = vmatprep.subr.mxu0 0.0
    %1373 = vmatpush1.msra.mxu0 0.0
    %1374 = vmatprep.mubr.f32.mxu0 0.0
    %1375 = vmatmul.mubr.f32.gmra.mrb[0].mxu0 %v41
    %v1376 = vpop.f32.mrb[0].mxu0
    %v1377 = vadd.f32 %v37, %v1376
    %v1378 = vpop.f32.mrb[0].mxu0
    %1379 = vdwg.mxu0
    %v1380 = vmax.f32 %v1377, 0.0
    %v1381 = vld [vmem:[%s1069] sm:$0xf]
    %v1382 = vadd.f32 %v1380, %v1381
    %s1383 = scalar_lea.vmem [#allocation6], 52
    %1384 = vst.msk [vmem:[%s1383] sm:$0xf] %vm32, %v1382
    %v1386 = vsel %vm43, %v1382, 0
    %1388 = vmatprep.subr.mxu0 0.0
    %1389 = vmatpush1.msra.mxu0 %v1386
    %1390 = vmatprep.subr.mxu0 0.0
    %1391 = vmatpush1.msra.mxu0 0.0
    %1392 = vmatprep.subr.mxu0 0.0
    %1393 = vmatpush1.msra.mxu0 0.0
    %1394 = vmatprep.subr.mxu0 0.0
    %1395 = vmatpush1.msra.mxu0 0.0
    %1396 = vmatprep.subr.mxu0 0.0
    %1397 = vmatpush1.msra.mxu0 0.0
    %1398 = vmatprep.subr.mxu0 0.0
    %1399 = vmatpush1.msra.mxu0 0.0
    %1400 = vmatprep.subr.mxu0 0.0
    %1401 = vmatpush1.msra.mxu0 0.0
    %1402 = vmatprep.subr.mxu0 0.0
    %1403 = vmatpush1.msra.mxu0 0.0
    %1404 = vmatprep.subr.mxu0 0.0
    %1405 = vmatpush1.msra.mxu0 0.0
    %1406 = vmatprep.subr.mxu0 0.0
    %1407 = vmatpush1.msra.mxu0 0.0
    %1408 = vmatprep.subr.mxu0 0.0
    %1409 = vmatpush1.msra.mxu0 0.0
    %1410 = vmatprep.subr.mxu0 0.0
    %1411 = vmatpush1.msra.mxu0 0.0
    %1412 = vmatprep.subr.mxu0 0.0
    %1413 = vmatpush1.msra.mxu0 0.0
    %1414 = vmatprep.subr.mxu0 0.0
    %1415 = vmatpush1.msra.mxu0 0.0
    %1416 = vmatprep.subr.mxu0 0.0
    %1417 = vmatpush1.msra.mxu0 0.0
    %1418 = vmatprep.subr.mxu0 0.0
    %1419 = vmatpush1.msra.mxu0 0.0
    %1420 = vmatprep.subr.mxu0 0.0
    %1421 = vmatpush1.msra.mxu0 0.0
    %1422 = vmatprep.subr.mxu0 0.0
    %1423 = vmatpush1.msra.mxu0 0.0
    %1424 = vmatprep.subr.mxu0 0.0
    %1425 = vmatpush1.msra.mxu0 0.0
    %1426 = vmatprep.subr.mxu0 0.0
    %1427 = vmatpush1.msra.mxu0 0.0
    %1428 = vmatprep.subr.mxu0 0.0
    %1429 = vmatpush1.msra.mxu0 0.0
    %1430 = vmatprep.subr.mxu0 0.0
    %1431 = vmatpush1.msra.mxu0 0.0
    %1432 = vmatprep.subr.mxu0 0.0
    %1433 = vmatpush1.msra.mxu0 0.0
    %1434 = vmatprep.subr.mxu0 0.0
    %1435 = vmatpush1.msra.mxu0 0.0
    %1436 = vmatprep.subr.mxu0 0.0
    %1437 = vmatpush1.msra.mxu0 0.0
    %1438 = vmatprep.subr.mxu0 0.0
    %1439 = vmatpush1.msra.mxu0 0.0
    %1440 = vmatprep.subr.mxu0 0.0
    %1441 = vmatpush1.msra.mxu0 0.0
    %1442 = vmatprep.subr.mxu0 0.0
    %1443 = vmatpush1.msra.mxu0 0.0
    %1444 = vmatprep.subr.mxu0 0.0
    %1445 = vmatpush1.msra.mxu0 0.0
    %1446 = vmatprep.subr.mxu0 0.0
    %1447 = vmatpush1.msra.mxu0 0.0
    %1448 = vmatprep.subr.mxu0 0.0
    %1449 = vmatpush1.msra.mxu0 0.0
    %1450 = vmatprep.subr.mxu0 0.0
    %1451 = vmatpush1.msra.mxu0 0.0
    %1452 = vmatprep.mubr.f32.mxu0 0.0
    %1453 = vmatmul.mubr.f32.gmra.mrb[0].mxu0 %v41
    %v1454 = vpop.f32.mrb[0].mxu0
    %v1455 = vadd.f32 %v37, %v1454
    %v1456 = vpop.f32.mrb[0].mxu0
    %1457 = vdwg.mxu0
    %v1458 = vmax.f32 %v1455, 0.0
    %v1459 = vld [vmem:[%s990] sm:$0xf]
    %v1460 = vadd.f32 %v1458, %v1459
    %s1461 = scalar_lea.vmem [#allocation6], 48
    %1462 = vst.msk [vmem:[%s1461] sm:$0xf] %vm32, %v1460
    %v1464 = vsel %vm43, %v1460, 0
    %1466 = vmatprep.subr.mxu0 0.0
    %1467 = vmatpush1.msra.mxu0 %v1464
    %1468 = vmatprep.subr.mxu0 0.0
    %1469 = vmatpush1.msra.mxu0 0.0
    %1470 = vmatprep.subr.mxu0 0.0
    %1471 = vmatpush1.msra.mxu0 0.0
    %1472 = vmatprep.subr.mxu0 0.0
    %1473 = vmatpush1.msra.mxu0 0.0
    %1474 = vmatprep.subr.mxu0 0.0
    %1475 = vmatpush1.msra.mxu0 0.0
    %1476 = vmatprep.subr.mxu0 0.0
    %1477 = vmatpush1.msra.mxu0 0.0
    %1478 = vmatprep.subr.mxu0 0.0
    %1479 = vmatpush1.msra.mxu0 0.0
    %1480 = vmatprep.subr.mxu0 0.0
    %1481 = vmatpush1.msra.mxu0 0.0
    %1482 = vmatprep.subr.mxu0 0.0
    %1483 = vmatpush1.msra.mxu0 0.0
    %1484 = vmatprep.subr.mxu0 0.0
    %1485 = vmatpush1.msra.mxu0 0.0
    %1486 = vmatprep.subr.mxu0 0.0
    %1487 = vmatpush1.msra.mxu0 0.0
    %1488 = vmatprep.subr.mxu0 0.0
    %1489 = vmatpush1.msra.mxu0 0.0
    %1490 = vmatprep.subr.mxu0 0.0
    %1491 = vmatpush1.msra.mxu0 0.0
    %1492 = vmatprep.subr.mxu0 0.0
    %1493 = vmatpush1.msra.mxu0 0.0
    %1494 = vmatprep.subr.mxu0 0.0
    %1495 = vmatpush1.msra.mxu0 0.0
    %1496 = vmatprep.subr.mxu0 0.0
    %1497 = vmatpush1.msra.mxu0 0.0
    %1498 = vmatprep.subr.mxu0 0.0
    %1499 = vmatpush1.msra.mxu0 0.0
    %1500 = vmatprep.subr.mxu0 0.0
    %1501 = vmatpush1.msra.mxu0 0.0
    %1502 = vmatprep.subr.mxu0 0.0
    %1503 = vmatpush1.msra.mxu0 0.0
    %1504 = vmatprep.subr.mxu0 0.0
    %1505 = vmatpush1.msra.mxu0 0.0
    %1506 = vmatprep.subr.mxu0 0.0
    %1507 = vmatpush1.msra.mxu0 0.0
    %1508 = vmatprep.subr.mxu0 0.0
    %1509 = vmatpush1.msra.mxu0 0.0
    %1510 = vmatprep.subr.mxu0 0.0
    %1511 = vmatpush1.msra.mxu0 0.0
    %1512 = vmatprep.subr.mxu0 0.0
    %1513 = vmatpush1.msra.mxu0 0.0
    %1514 = vmatprep.subr.mxu0 0.0
    %1515 = vmatpush1.msra.mxu0 0.0
    %1516 = vmatprep.subr.mxu0 0.0
    %1517 = vmatpush1.msra.mxu0 0.0
    %1518 = vmatprep.subr.mxu0 0.0
    %1519 = vmatpush1.msra.mxu0 0.0
    %1520 = vmatprep.subr.mxu0 0.0
    %1521 = vmatpush1.msra.mxu0 0.0
    %1522 = vmatprep.subr.mxu0 0.0
    %1523 = vmatpush1.msra.mxu0 0.0
    %1524 = vmatprep.subr.mxu0 0.0
    %1525 = vmatpush1.msra.mxu0 0.0
    %1526 = vmatprep.subr.mxu0 0.0
    %1527 = vmatpush1.msra.mxu0 0.0
    %1528 = vmatprep.subr.mxu0 0.0
    %1529 = vmatpush1.msra.mxu0 0.0
    %1530 = vmatprep.mubr.f32.mxu0 0.0
    %1531 = vmatmul.mubr.f32.gmra.mrb[0].mxu0 %v41
    %v1532 = vpop.f32.mrb[0].mxu0
    %v1533 = vadd.f32 %v37, %v1532
    %v1534 = vpop.f32.mrb[0].mxu0
    %1535 = vdwg.mxu0
    %v1536 = vmax.f32 %v1533, 0.0
    %v1537 = vld [vmem:[%s911] sm:$0xf]
    %v1538 = vadd.f32 %v1536, %v1537
    %s1539 = scalar_lea.vmem [#allocation6], 44
    %1540 = vst.msk [vmem:[%s1539] sm:$0xf] %vm32, %v1538
    %v1542 = vsel %vm43, %v1538, 0
    %1544 = vmatprep.subr.mxu0 0.0
    %1545 = vmatpush1.msra.mxu0 %v1542
    %1546 = vmatprep.subr.mxu0 0.0
    %1547 = vmatpush1.msra.mxu0 0.0
    %1548 = vmatprep.subr.mxu0 0.0
    %1549 = vmatpush1.msra.mxu0 0.0
    %1550 = vmatprep.subr.mxu0 0.0
    %1551 = vmatpush1.msra.mxu0 0.0
    %1552 = vmatprep.subr.mxu0 0.0
    %1553 = vmatpush1.msra.mxu0 0.0
    %1554 = vmatprep.subr.mxu0 0.0
    %1555 = vmatpush1.msra.mxu0 0.0
    %1556 = vmatprep.subr.mxu0 0.0
    %1557 = vmatpush1.msra.mxu0 0.0
    %1558 = vmatprep.subr.mxu0 0.0
    %1559 = vmatpush1.msra.mxu0 0.0
    %1560 = vmatprep.subr.mxu0 0.0
    %1561 = vmatpush1.msra.mxu0 0.0
    %1562 = vmatprep.subr.mxu0 0.0
    %1563 = vmatpush1.msra.mxu0 0.0
    %1564 = vmatprep.subr.mxu0 0.0
    %1565 = vmatpush1.msra.mxu0 0.0
    %1566 = vmatprep.subr.mxu0 0.0
    %1567 = vmatpush1.msra.mxu0 0.0
    %1568 = vmatprep.subr.mxu0 0.0
    %1569 = vmatpush1.msra.mxu0 0.0
    %1570 = vmatprep.subr.mxu0 0.0
    %1571 = vmatpush1.msra.mxu0 0.0
    %1572 = vmatprep.subr.mxu0 0.0
    %1573 = vmatpush1.msra.mxu0 0.0
    %1574 = vmatprep.subr.mxu0 0.0
    %1575 = vmatpush1.msra.mxu0 0.0
    %1576 = vmatprep.subr.mxu0 0.0
    %1577 = vmatpush1.msra.mxu0 0.0
    %1578 = vmatprep.subr.mxu0 0.0
    %1579 = vmatpush1.msra.mxu0 0.0
    %1580 = vmatprep.subr.mxu0 0.0
    %1581 = vmatpush1.msra.mxu0 0.0
    %1582 = vmatprep.subr.mxu0 0.0
    %1583 = vmatpush1.msra.mxu0 0.0
    %1584 = vmatprep.subr.mxu0 0.0
    %1585 = vmatpush1.msra.mxu0 0.0
    %1586 = vmatprep.subr.mxu0 0.0
    %1587 = vmatpush1.msra.mxu0 0.0
    %1588 = vmatprep.subr.mxu0 0.0
    %1589 = vmatpush1.msra.mxu0 0.0
    %1590 = vmatprep.subr.mxu0 0.0
    %1591 = vmatpush1.msra.mxu0 0.0
    %1592 = vmatprep.subr.mxu0 0.0
    %1593 = vmatpush1.msra.mxu0 0.0
    %1594 = vmatprep.subr.mxu0 0.0
    %1595 = vmatpush1.msra.mxu0 0.0
    %1596 = vmatprep.subr.mxu0 0.0
    %1597 = vmatpush1.msra.mxu0 0.0
    %1598 = vmatprep.subr.mxu0 0.0
    %1599 = vmatpush1.msra.mxu0 0.0
    %1600 = vmatprep.subr.mxu0 0.0
    %1601 = vmatpush1.msra.mxu0 0.0
    %1602 = vmatprep.subr.mxu0 0.0
    %1603 = vmatpush1.msra.mxu0 0.0
    %1604 = vmatprep.subr.mxu0 0.0
    %1605 = vmatpush1.msra.mxu0 0.0
    %1606 = vmatprep.subr.mxu0 0.0
    %1607 = vmatpush1.msra.mxu0 0.0
    %1608 = vmatprep.mubr.f32.mxu0 0.0
    %1609 = vmatmul.mubr.f32.gmra.mrb[0].mxu0 %v41
    %v1610 = vpop.f32.mrb[0].mxu0
    %v1611 = vadd.f32 %v37, %v1610
    %v1612 = vpop.f32.mrb[0].mxu0
    %1613 = vdwg.mxu0
    %v1614 = vmax.f32 %v1611, 0.0
    %v1615 = vld [vmem:[%s832] sm:$0xf]
    %v1616 = vadd.f32 %v1614, %v1615
    %s1617 = scalar_lea.vmem [#allocation6], 40
    %1618 = vst.msk [vmem:[%s1617] sm:$0xf] %vm32, %v1616
    %v1620 = vsel %vm43, %v1616, 0
    %1622 = vmatprep.subr.mxu0 0.0
    %1623 = vmatpush1.msra.mxu0 %v1620
    %1624 = vmatprep.subr.mxu0 0.0
    %1625 = vmatpush1.msra.mxu0 0.0
    %1626 = vmatprep.subr.mxu0 0.0
    %1627 = vmatpush1.msra.mxu0 0.0
    %1628 = vmatprep.subr.mxu0 0.0
    %1629 = vmatpush1.msra.mxu0 0.0
    %1630 = vmatprep.subr.mxu0 0.0
    %1631 = vmatpush1.msra.mxu0 0.0
    %1632 = vmatprep.subr.mxu0 0.0
    %1633 = vmatpush1.msra.mxu0 0.0
    %1634 = vmatprep.subr.mxu0 0.0
    %1635 = vmatpush1.msra.mxu0 0.0
    %1636 = vmatprep.subr.mxu0 0.0
    %1637 = vmatpush1.msra.mxu0 0.0
    %1638 = vmatprep.subr.mxu0 0.0
    %1639 = vmatpush1.msra.mxu0 0.0
    %1640 = vmatprep.subr.mxu0 0.0
    %1641 = vmatpush1.msra.mxu0 0.0
    %1642 = vmatprep.subr.mxu0 0.0
    %1643 = vmatpush1.msra.mxu0 0.0
    %1644 = vmatprep.subr.mxu0 0.0
    %1645 = vmatpush1.msra.mxu0 0.0
    %1646 = vmatprep.subr.mxu0 0.0
    %1647 = vmatpush1.msra.mxu0 0.0
    %1648 = vmatprep.subr.mxu0 0.0
    %1649 = vmatpush1.msra.mxu0 0.0
    %1650 = vmatprep.subr.mxu0 0.0
    %1651 = vmatpush1.msra.mxu0 0.0
    %1652 = vmatprep.subr.mxu0 0.0
    %1653 = vmatpush1.msra.mxu0 0.0
    %1654 = vmatprep.subr.mxu0 0.0
    %1655 = vmatpush1.msra.mxu0 0.0
    %1656 = vmatprep.subr.mxu0 0.0
    %1657 = vmatpush1.msra.mxu0 0.0
    %1658 = vmatprep.subr.mxu0 0.0
    %1659 = vmatpush1.msra.mxu0 0.0
    %1660 = vmatprep.subr.mxu0 0.0
    %1661 = vmatpush1.msra.mxu0 0.0
    %1662 = vmatprep.subr.mxu0 0.0
    %1663 = vmatpush1.msra.mxu0 0.0
    %1664 = vmatprep.subr.mxu0 0.0
    %1665 = vmatpush1.msra.mxu0 0.0
    %1666 = vmatprep.subr.mxu0 0.0
    %1667 = vmatpush1.msra.mxu0 0.0
    %1668 = vmatprep.subr.mxu0 0.0
    %1669 = vmatpush1.msra.mxu0 0.0
    %1670 = vmatprep.subr.mxu0 0.0
    %1671 = vmatpush1.msra.mxu0 0.0
    %1672 = vmatprep.subr.mxu0 0.0
    %1673 = vmatpush1.msra.mxu0 0.0
    %1674 = vmatprep.subr.mxu0 0.0
    %1675 = vmatpush1.msra.mxu0 0.0
    %1676 = vmatprep.subr.mxu0 0.0
    %1677 = vmatpush1.msra.mxu0 0.0
    %1678 = vmatprep.subr.mxu0 0.0
    %1679 = vmatpush1.msra.mxu0 0.0
    %1680 = vmatprep.subr.mxu0 0.0
    %1681 = vmatpush1.msra.mxu0 0.0
    %1682 = vmatprep.subr.mxu0 0.0
    %1683 = vmatpush1.msra.mxu0 0.0
    %1684 = vmatprep.subr.mxu0 0.0
    %1685 = vmatpush1.msra.mxu0 0.0
    %1686 = vmatprep.mubr.f32.mxu0 0.0
    %1687 = vmatmul.mubr.f32.gmra.mrb[0].mxu0 %v41
    %v1688 = vpop.f32.mrb[0].mxu0
    %v1689 = vadd.f32 %v37, %v1688
    %v1690 = vpop.f32.mrb[0].mxu0
    %1691 = vdwg.mxu0
    %v1692 = vmax.f32 %v1689, 0.0
    %v1693 = vld [vmem:[%s753] sm:$0xf]
    %v1694 = vadd.f32 %v1692, %v1693
    %s1695 = scalar_lea.vmem [#allocation6], 36
    %1696 = vst.msk [vmem:[%s1695] sm:$0xf] %vm32, %v1694
    %v1698 = vsel %vm43, %v1694, 0
    %1700 = vmatprep.subr.mxu0 0.0
    %1701 = vmatpush1.msra.mxu0 %v1698
    %1702 = vmatprep.subr.mxu0 0.0
    %1703 = vmatpush1.msra.mxu0 0.0
    %1704 = vmatprep.subr.mxu0 0.0
    %1705 = vmatpush1.msra.mxu0 0.0
    %1706 = vmatprep.subr.mxu0 0.0
    %1707 = vmatpush1.msra.mxu0 0.0
    %1708 = vmatprep.subr.mxu0 0.0
    %1709 = vmatpush1.msra.mxu0 0.0
    %1710 = vmatprep.subr.mxu0 0.0
    %1711 = vmatpush1.msra.mxu0 0.0
    %1712 = vmatprep.subr.mxu0 0.0
    %1713 = vmatpush1.msra.mxu0 0.0
    %1714 = vmatprep.subr.mxu0 0.0
    %1715 = vmatpush1.msra.mxu0 0.0
    %1716 = vmatprep.subr.mxu0 0.0
    %1717 = vmatpush1.msra.mxu0 0.0
    %1718 = vmatprep.subr.mxu0 0.0
    %1719 = vmatpush1.msra.mxu0 0.0
    %1720 = vmatprep.subr.mxu0 0.0
    %1721 = vmatpush1.msra.mxu0 0.0
    %1722 = vmatprep.subr.mxu0 0.0
    %1723 = vmatpush1.msra.mxu0 0.0
    %1724 = vmatprep.subr.mxu0 0.0
    %1725 = vmatpush1.msra.mxu0 0.0
    %1726 = vmatprep.subr.mxu0 0.0
    %1727 = vmatpush1.msra.mxu0 0.0
    %1728 = vmatprep.subr.mxu0 0.0
    %1729 = vmatpush1.msra.mxu0 0.0
    %1730 = vmatprep.subr.mxu0 0.0
    %1731 = vmatpush1.msra.mxu0 0.0
    %1732 = vmatprep.subr.mxu0 0.0
    %1733 = vmatpush1.msra.mxu0 0.0
    %1734 = vmatprep.subr.mxu0 0.0
    %1735 = vmatpush1.msra.mxu0 0.0
    %1736 = vmatprep.subr.mxu0 0.0
    %1737 = vmatpush1.msra.mxu0 0.0
    %1738 = vmatprep.subr.mxu0 0.0
    %1739 = vmatpush1.msra.mxu0 0.0
    %1740 = vmatprep.subr.mxu0 0.0
    %1741 = vmatpush1.msra.mxu0 0.0
    %1742 = vmatprep.subr.mxu0 0.0
    %1743 = vmatpush1.msra.mxu0 0.0
    %1744 = vmatprep.subr.mxu0 0.0
    %1745 = vmatpush1.msra.mxu0 0.0
    %1746 = vmatprep.subr.mxu0 0.0
    %1747 = vmatpush1.msra.mxu0 0.0
    %1748 = vmatprep.subr.mxu0 0.0
    %1749 = vmatpush1.msra.mxu0 0.0
    %1750 = vmatprep.subr.mxu0 0.0
    %1751 = vmatpush1.msra.mxu0 0.0
    %1752 = vmatprep.subr.mxu0 0.0
    %1753 = vmatpush1.msra.mxu0 0.0
    %1754 = vmatprep.subr.mxu0 0.0
    %1755 = vmatpush1.msra.mxu0 0.0
    %1756 = vmatprep.subr.mxu0 0.0
    %1757 = vmatpush1.msra.mxu0 0.0
    %1758 = vmatprep.subr.mxu0 0.0
    %1759 = vmatpush1.msra.mxu0 0.0
    %1760 = vmatprep.subr.mxu0 0.0
    %1761 = vmatpush1.msra.mxu0 0.0
    %1762 = vmatprep.subr.mxu0 0.0
    %1763 = vmatpush1.msra.mxu0 0.0
    %1764 = vmatprep.mubr.f32.mxu0 0.0
    %1765 = vmatmul.mubr.f32.gmra.mrb[0].mxu0 %v41
    %v1766 = vpop.f32.mrb[0].mxu0
    %v1767 = vadd.f32 %v37, %v1766
    %v1768 = vpop.f32.mrb[0].mxu0
    %1769 = vdwg.mxu0
    %v1770 = vmax.f32 %v1767, 0.0
    %v1771 = vld [vmem:[%s674] sm:$0xf]
    %v1772 = vadd.f32 %v1770, %v1771
    %s1773 = scalar_lea.vmem [#allocation6], 32
    %1774 = vst.msk [vmem:[%s1773] sm:$0xf] %vm32, %v1772
    %v1776 = vsel %vm43, %v1772, 0
    %1778 = vmatprep.subr.mxu0 0.0
    %1779 = vmatpush1.msra.mxu0 %v1776
    %1780 = vmatprep.subr.mxu0 0.0
    %1781 = vmatpush1.msra.mxu0 0.0
    %1782 = vmatprep.subr.mxu0 0.0
    %1783 = vmatpush1.msra.mxu0 0.0
    %1784 = vmatprep.subr.mxu0 0.0
    %1785 = vmatpush1.msra.mxu0 0.0
    %1786 = vmatprep.subr.mxu0 0.0
    %1787 = vmatpush1.msra.mxu0 0.0
    %1788 = vmatprep.subr.mxu0 0.0
    %1789 = vmatpush1.msra.mxu0 0.0
    %1790 = vmatprep.subr.mxu0 0.0
    %1791 = vmatpush1.msra.mxu0 0.0
    %1792 = vmatprep.subr.mxu0 0.0
    %1793 = vmatpush1.msra.mxu0 0.0
    %1794 = vmatprep.subr.mxu0 0.0
    %1795 = vmatpush1.msra.mxu0 0.0
    %1796 = vmatprep.subr.mxu0 0.0
    %1797 = vmatpush1.msra.mxu0 0.0
    %1798 = vmatprep.subr.mxu0 0.0
    %1799 = vmatpush1.msra.mxu0 0.0
    %1800 = vmatprep.subr.mxu0 0.0
    %1801 = vmatpush1.msra.mxu0 0.0
    %1802 = vmatprep.subr.mxu0 0.0
    %1803 = vmatpush1.msra.mxu0 0.0
    %1804 = vmatprep.subr.mxu0 0.0
    %1805 = vmatpush1.msra.mxu0 0.0
    %1806 = vmatprep.subr.mxu0 0.0
    %1807 = vmatpush1.msra.mxu0 0.0
    %1808 = vmatprep.subr.mxu0 0.0
    %1809 = vmatpush1.msra.mxu0 0.0
    %1810 = vmatprep.subr.mxu0 0.0
    %1811 = vmatpush1.msra.mxu0 0.0
    %1812 = vmatprep.subr.mxu0 0.0
    %1813 = vmatpush1.msra.mxu0 0.0
    %1814 = vmatprep.subr.mxu0 0.0
    %1815 = vmatpush1.msra.mxu0 0.0
    %1816 = vmatprep.subr.mxu0 0.0
    %1817 = vmatpush1.msra.mxu0 0.0
    %1818 = vmatprep.subr.mxu0 0.0
    %1819 = vmatpush1.msra.mxu0 0.0
    %1820 = vmatprep.subr.mxu0 0.0
    %1821 = vmatpush1.msra.mxu0 0.0
    %1822 = vmatprep.subr.mxu0 0.0
    %1823 = vmatpush1.msra.mxu0 0.0
    %1824 = vmatprep.subr.mxu0 0.0
    %1825 = vmatpush1.msra.mxu0 0.0
    %1826 = vmatprep.subr.mxu0 0.0
    %1827 = vmatpush1.msra.mxu0 0.0
    %1828 = vmatprep.subr.mxu0 0.0
    %1829 = vmatpush1.msra.mxu0 0.0
    %1830 = vmatprep.subr.mxu0 0.0
    %1831 = vmatpush1.msra.mxu0 0.0
    %1832 = vmatprep.subr.mxu0 0.0
    %1833 = vmatpush1.msra.mxu0 0.0
    %1834 = vmatprep.subr.mxu0 0.0
    %1835 = vmatpush1.msra.mxu0 0.0
    %1836 = vmatprep.subr.mxu0 0.0
    %1837 = vmatpush1.msra.mxu0 0.0
    %1838 = vmatprep.subr.mxu0 0.0
    %1839 = vmatpush1.msra.mxu0 0.0
    %1840 = vmatprep.subr.mxu0 0.0
    %1841 = vmatpush1.msra.mxu0 0.0
    %1842 = vmatprep.mubr.f32.mxu0 0.0
    %1843 = vmatmul.mubr.f32.gmra.mrb[0].mxu0 %v41
    %v1844 = vpop.f32.mrb[0].mxu0
    %v1845 = vadd.f32 %v37, %v1844
    %v1846 = vpop.f32.mrb[0].mxu0
    %1847 = vdwg.mxu0
    %v1848 = vmax.f32 %v1845, 0.0
    %v1849 = vld [vmem:[%s595] sm:$0xf]
    %v1850 = vadd.f32 %v1848, %v1849
    %s1851 = scalar_lea.vmem [#allocation6], 28
    %1852 = vst.msk [vmem:[%s1851] sm:$0xf] %vm32, %v1850
    %v1854 = vsel %vm43, %v1850, 0
    %1856 = vmatprep.subr.mxu0 0.0
    %1857 = vmatpush1.msra.mxu0 %v1854
    %1858 = vmatprep.subr.mxu0 0.0
    %1859 = vmatpush1.msra.mxu0 0.0
    %1860 = vmatprep.subr.mxu0 0.0
    %1861 = vmatpush1.msra.mxu0 0.0
    %1862 = vmatprep.subr.mxu0 0.0
    %1863 = vmatpush1.msra.mxu0 0.0
    %1864 = vmatprep.subr.mxu0 0.0
    %1865 = vmatpush1.msra.mxu0 0.0
    %1866 = vmatprep.subr.mxu0 0.0
    %1867 = vmatpush1.msra.mxu0 0.0
    %1868 = vmatprep.subr.mxu0 0.0
    %1869 = vmatpush1.msra.mxu0 0.0
    %1870 = vmatprep.subr.mxu0 0.0
    %1871 = vmatpush1.msra.mxu0 0.0
    %1872 = vmatprep.subr.mxu0 0.0
    %1873 = vmatpush1.msra.mxu0 0.0
    %1874 = vmatprep.subr.mxu0 0.0
    %1875 = vmatpush1.msra.mxu0 0.0
    %1876 = vmatprep.subr.mxu0 0.0
    %1877 = vmatpush1.msra.mxu0 0.0
    %1878 = vmatprep.subr.mxu0 0.0
    %1879 = vmatpush1.msra.mxu0 0.0
    %1880 = vmatprep.subr.mxu0 0.0
    %1881 = vmatpush1.msra.mxu0 0.0
    %1882 = vmatprep.subr.mxu0 0.0
    %1883 = vmatpush1.msra.mxu0 0.0
    %1884 = vmatprep.subr.mxu0 0.0
    %1885 = vmatpush1.msra.mxu0 0.0
    %1886 = vmatprep.subr.mxu0 0.0
    %1887 = vmatpush1.msra.mxu0 0.0
    %1888 = vmatprep.subr.mxu0 0.0
    %1889 = vmatpush1.msra.mxu0 0.0
    %1890 = vmatprep.subr.mxu0 0.0
    %1891 = vmatpush1.msra.mxu0 0.0
    %1892 = vmatprep.subr.mxu0 0.0
    %1893 = vmatpush1.msra.mxu0 0.0
    %1894 = vmatprep.subr.mxu0 0.0
    %1895 = vmatpush1.msra.mxu0 0.0
    %1896 = vmatprep.subr.mxu0 0.0
    %1897 = vmatpush1.msra.mxu0 0.0
    %1898 = vmatprep.subr.mxu0 0.0
    %1899 = vmatpush1.msra.mxu0 0.0
    %1900 = vmatprep.subr.mxu0 0.0
    %1901 = vmatpush1.msra.mxu0 0.0
    %1902 = vmatprep.subr.mxu0 0.0
    %1903 = vmatpush1.msra.mxu0 0.0
    %1904 = vmatprep.subr.mxu0 0.0
    %1905 = vmatpush1.msra.mxu0 0.0
    %1906 = vmatprep.subr.mxu0 0.0
    %1907 = vmatpush1.msra.mxu0 0.0
    %1908 = vmatprep.subr.mxu0 0.0
    %1909 = vmatpush1.msra.mxu0 0.0
    %1910 = vmatprep.subr.mxu0 0.0
    %1911 = vmatpush1.msra.mxu0 0.0
    %1912 = vmatprep.subr.mxu0 0.0
    %1913 = vmatpush1.msra.mxu0 0.0
    %1914 = vmatprep.subr.mxu0 0.0
    %1915 = vmatpush1.msra.mxu0 0.0
    %1916 = vmatprep.subr.mxu0 0.0
    %1917 = vmatpush1.msra.mxu0 0.0
    %1918 = vmatprep.subr.mxu0 0.0
    %1919 = vmatpush1.msra.mxu0 0.0
    %1920 = vmatprep.mubr.f32.mxu0 0.0
    %1921 = vmatmul.mubr.f32.gmra.mrb[0].mxu0 %v41
    %v1922 = vpop.f32.mrb[0].mxu0
    %v1923 = vadd.f32 %v37, %v1922
    %v1924 = vpop.f32.mrb[0].mxu0
    %1925 = vdwg.mxu0
    %v1926 = vmax.f32 %v1923, 0.0
    %v1927 = vld [vmem:[%s516] sm:$0xf]
    %v1928 = vadd.f32 %v1926, %v1927
    %s1929 = scalar_lea.vmem [#allocation6], 24
    %1930 = vst.msk [vmem:[%s1929] sm:$0xf] %vm32, %v1928
    %v1932 = vsel %vm43, %v1928, 0
    %1934 = vmatprep.subr.mxu0 0.0
    %1935 = vmatpush1.msra.mxu0 %v1932
    %1936 = vmatprep.subr.mxu0 0.0
    %1937 = vmatpush1.msra.mxu0 0.0
    %1938 = vmatprep.subr.mxu0 0.0
    %1939 = vmatpush1.msra.mxu0 0.0
    %1940 = vmatprep.subr.mxu0 0.0
    %1941 = vmatpush1.msra.mxu0 0.0
    %1942 = vmatprep.subr.mxu0 0.0
    %1943 = vmatpush1.msra.mxu0 0.0
    %1944 = vmatprep.subr.mxu0 0.0
    %1945 = vmatpush1.msra.mxu0 0.0
    %1946 = vmatprep.subr.mxu0 0.0
    %1947 = vmatpush1.msra.mxu0 0.0
    %1948 = vmatprep.subr.mxu0 0.0
    %1949 = vmatpush1.msra.mxu0 0.0
    %1950 = vmatprep.subr.mxu0 0.0
    %1951 = vmatpush1.msra.mxu0 0.0
    %1952 = vmatprep.subr.mxu0 0.0
    %1953 = vmatpush1.msra.mxu0 0.0
    %1954 = vmatprep.subr.mxu0 0.0
    %1955 = vmatpush1.msra.mxu0 0.0
    %1956 = vmatprep.subr.mxu0 0.0
    %1957 = vmatpush1.msra.mxu0 0.0
    %1958 = vmatprep.subr.mxu0 0.0
    %1959 = vmatpush1.msra.mxu0 0.0
    %1960 = vmatprep.subr.mxu0 0.0
    %1961 = vmatpush1.msra.mxu0 0.0
    %1962 = vmatprep.subr.mxu0 0.0
    %1963 = vmatpush1.msra.mxu0 0.0
    %1964 = vmatprep.subr.mxu0 0.0
    %1965 = vmatpush1.msra.mxu0 0.0
    %1966 = vmatprep.subr.mxu0 0.0
    %1967 = vmatpush1.msra.mxu0 0.0
    %1968 = vmatprep.subr.mxu0 0.0
    %1969 = vmatpush1.msra.mxu0 0.0
    %1970 = vmatprep.subr.mxu0 0.0
    %1971 = vmatpush1.msra.mxu0 0.0
    %1972 = vmatprep.subr.mxu0 0.0
    %1973 = vmatpush1.msra.mxu0 0.0
    %1974 = vmatprep.subr.mxu0 0.0
    %1975 = vmatpush1.msra.mxu0 0.0
    %1976 = vmatprep.subr.mxu0 0.0
    %1977 = vmatpush1.msra.mxu0 0.0
    %1978 = vmatprep.subr.mxu0 0.0
    %1979 = vmatpush1.msra.mxu0 0.0
    %1980 = vmatprep.subr.mxu0 0.0
    %1981 = vmatpush1.msra.mxu0 0.0
    %1982 = vmatprep.subr.mxu0 0.0
    %1983 = vmatpush1.msra.mxu0 0.0
    %1984 = vmatprep.subr.mxu0 0.0
    %1985 = vmatpush1.msra.mxu0 0.0
    %1986 = vmatprep.subr.mxu0 0.0
    %1987 = vmatpush1.msra.mxu0 0.0
    %1988 = vmatprep.subr.mxu0 0.0
    %1989 = vmatpush1.msra.mxu0 0.0
    %1990 = vmatprep.subr.mxu0 0.0
    %1991 = vmatpush1.msra.mxu0 0.0
    %1992 = vmatprep.subr.mxu0 0.0
    %1993 = vmatpush1.msra.mxu0 0.0
    %1994 = vmatprep.subr.mxu0 0.0
    %1995 = vmatpush1.msra.mxu0 0.0
    %1996 = vmatprep.subr.mxu0 0.0
    %1997 = vmatpush1.msra.mxu0 0.0
    %1998 = vmatprep.mubr.f32.mxu0 0.0
    %1999 = vmatmul.mubr.f32.gmra.mrb[0].mxu0 %v41
    %v2000 = vpop.f32.mrb[0].mxu0
    %v2001 = vadd.f32 %v37, %v2000
    %v2002 = vpop.f32.mrb[0].mxu0
    %2003 = vdwg.mxu0
    %v2004 = vmax.f32 %v2001, 0.0
    %v2005 = vld [vmem:[%s437] sm:$0xf]
    %v2006 = vadd.f32 %v2004, %v2005
    %s2007 = scalar_lea.vmem [#allocation6], 20
    %2008 = vst.msk [vmem:[%s2007] sm:$0xf] %vm32, %v2006
    %v2010 = vsel %vm43, %v2006, 0
    %2012 = vmatprep.subr.mxu0 0.0
    %2013 = vmatpush1.msra.mxu0 %v2010
    %2014 = vmatprep.subr.mxu0 0.0
    %2015 = vmatpush1.msra.mxu0 0.0
    %2016 = vmatprep.subr.mxu0 0.0
    %2017 = vmatpush1.msra.mxu0 0.0
    %2018 = vmatprep.subr.mxu0 0.0
    %2019 = vmatpush1.msra.mxu0 0.0
    %2020 = vmatprep.subr.mxu0 0.0
    %2021 = vmatpush1.msra.mxu0 0.0
    %2022 = vmatprep.subr.mxu0 0.0
    %2023 = vmatpush1.msra.mxu0 0.0
    %2024 = vmatprep.subr.mxu0 0.0
    %2025 = vmatpush1.msra.mxu0 0.0
    %2026 = vmatprep.subr.mxu0 0.0
    %2027 = vmatpush1.msra.mxu0 0.0
    %2028 = vmatprep.subr.mxu0 0.0
    %2029 = vmatpush1.msra.mxu0 0.0
    %2030 = vmatprep.subr.mxu0 0.0
    %2031 = vmatpush1.msra.mxu0 0.0
    %2032 = vmatprep.subr.mxu0 0.0
    %2033 = vmatpush1.msra.mxu0 0.0
    %2034 = vmatprep.subr.mxu0 0.0
    %2035 = vmatpush1.msra.mxu0 0.0
    %2036 = vmatprep.subr.mxu0 0.0
    %2037 = vmatpush1.msra.mxu0 0.0
    %2038 = vmatprep.subr.mxu0 0.0
    %2039 = vmatpush1.msra.mxu0 0.0
    %2040 = vmatprep.subr.mxu0 0.0
    %2041 = vmatpush1.msra.mxu0 0.0
    %2042 = vmatprep.subr.mxu0 0.0
    %2043 = vmatpush1.msra.mxu0 0.0
    %2044 = vmatprep.subr.mxu0 0.0
    %2045 = vmatpush1.msra.mxu0 0.0
    %2046 = vmatprep.subr.mxu0 0.0
    %2047 = vmatpush1.msra.mxu0 0.0
    %2048 = vmatprep.subr.mxu0 0.0
    %2049 = vmatpush1.msra.mxu0 0.0
    %2050 = vmatprep.subr.mxu0 0.0
    %2051 = vmatpush1.msra.mxu0 0.0
    %2052 = vmatprep.subr.mxu0 0.0
    %2053 = vmatpush1.msra.mxu0 0.0
    %2054 = vmatprep.subr.mxu0 0.0
    %2055 = vmatpush1.msra.mxu0 0.0
    %2056 = vmatprep.subr.mxu0 0.0
    %2057 = vmatpush1.msra.mxu0 0.0
    %2058 = vmatprep.subr.mxu0 0.0
    %2059 = vmatpush1.msra.mxu0 0.0
    %2060 = vmatprep.subr.mxu0 0.0
    %2061 = vmatpush1.msra.mxu0 0.0
    %2062 = vmatprep.subr.mxu0 0.0
    %2063 = vmatpush1.msra.mxu0 0.0
    %2064 = vmatprep.subr.mxu0 0.0
    %2065 = vmatpush1.msra.mxu0 0.0
    %2066 = vmatprep.subr.mxu0 0.0
    %2067 = vmatpush1.msra.mxu0 0.0
    %2068 = vmatprep.subr.mxu0 0.0
    %2069 = vmatpush1.msra.mxu0 0.0
    %2070 = vmatprep.subr.mxu0 0.0
    %2071 = vmatpush1.msra.mxu0 0.0
    %2072 = vmatprep.subr.mxu0 0.0
    %2073 = vmatpush1.msra.mxu0 0.0
    %2074 = vmatprep.subr.mxu0 0.0
    %2075 = vmatpush1.msra.mxu0 0.0
    %2076 = vmatprep.mubr.f32.mxu0 0.0
    %2077 = vmatmul.mubr.f32.gmra.mrb[0].mxu0 %v41
    %v2078 = vpop.f32.mrb[0].mxu0
    %v2079 = vadd.f32 %v37, %v2078
    %v2080 = vpop.f32.mrb[0].mxu0
    %2081 = vdwg.mxu0
    %v2082 = vmax.f32 %v2079, 0.0
    %v2083 = vld [vmem:[%s358] sm:$0xf]
    %v2084 = vadd.f32 %v2082, %v2083
    %s2085 = scalar_lea.vmem [#allocation6], 16
    %2086 = vst.msk [vmem:[%s2085] sm:$0xf] %vm32, %v2084
    %v2088 = vsel %vm43, %v2084, 0
    %2090 = vmatprep.subr.mxu0 0.0
    %2091 = vmatpush1.msra.mxu0 %v2088
    %2092 = vmatprep.subr.mxu0 0.0
    %2093 = vmatpush1.msra.mxu0 0.0
    %2094 = vmatprep.subr.mxu0 0.0
    %2095 = vmatpush1.msra.mxu0 0.0
    %2096 = vmatprep.subr.mxu0 0.0
    %2097 = vmatpush1.msra.mxu0 0.0
    %2098 = vmatprep.subr.mxu0 0.0
    %2099 = vmatpush1.msra.mxu0 0.0
    %2100 = vmatprep.subr.mxu0 0.0
    %2101 = vmatpush1.msra.mxu0 0.0
    %2102 = vmatprep.subr.mxu0 0.0
    %2103 = vmatpush1.msra.mxu0 0.0
    %2104 = vmatprep.subr.mxu0 0.0
    %2105 = vmatpush1.msra.mxu0 0.0
    %2106 = vmatprep.subr.mxu0 0.0
    %2107 = vmatpush1.msra.mxu0 0.0
    %2108 = vmatprep.subr.mxu0 0.0
    %2109 = vmatpush1.msra.mxu0 0.0
    %2110 = vmatprep.subr.mxu0 0.0
    %2111 = vmatpush1.msra.mxu0 0.0
    %2112 = vmatprep.subr.mxu0 0.0
    %2113 = vmatpush1.msra.mxu0 0.0
    %2114 = vmatprep.subr.mxu0 0.0
    %2115 = vmatpush1.msra.mxu0 0.0
    %2116 = vmatprep.subr.mxu0 0.0
    %2117 = vmatpush1.msra.mxu0 0.0
    %2118 = vmatprep.subr.mxu0 0.0
    %2119 = vmatpush1.msra.mxu0 0.0
    %2120 = vmatprep.subr.mxu0 0.0
    %2121 = vmatpush1.msra.mxu0 0.0
    %2122 = vmatprep.subr.mxu0 0.0
    %2123 = vmatpush1.msra.mxu0 0.0
    %2124 = vmatprep.subr.mxu0 0.0
    %2125 = vmatpush1.msra.mxu0 0.0
    %2126 = vmatprep.subr.mxu0 0.0
    %2127 = vmatpush1.msra.mxu0 0.0
    %2128 = vmatprep.subr.mxu0 0.0
    %2129 = vmatpush1.msra.mxu0 0.0
    %2130 = vmatprep.subr.mxu0 0.0
    %2131 = vmatpush1.msra.mxu0 0.0
    %2132 = vmatprep.subr.mxu0 0.0
    %2133 = vmatpush1.msra.mxu0 0.0
    %2134 = vmatprep.subr.mxu0 0.0
    %2135 = vmatpush1.msra.mxu0 0.0
    %2136 = vmatprep.subr.mxu0 0.0
    %2137 = vmatpush1.msra.mxu0 0.0
    %2138 = vmatprep.subr.mxu0 0.0
    %2139 = vmatpush1.msra.mxu0 0.0
    %2140 = vmatprep.subr.mxu0 0.0
    %2141 = vmatpush1.msra.mxu0 0.0
    %2142 = vmatprep.subr.mxu0 0.0
    %2143 = vmatpush1.msra.mxu0 0.0
    %2144 = vmatprep.subr.mxu0 0.0
    %2145 = vmatpush1.msra.mxu0 0.0
    %2146 = vmatprep.subr.mxu0 0.0
    %2147 = vmatpush1.msra.mxu0 0.0
    %2148 = vmatprep.subr.mxu0 0.0
    %2149 = vmatpush1.msra.mxu0 0.0
    %2150 = vmatprep.subr.mxu0 0.0
    %2151 = vmatpush1.msra.mxu0 0.0
    %2152 = vmatprep.subr.mxu0 0.0
    %2153 = vmatpush1.msra.mxu0 0.0
    %2154 = vmatprep.mubr.f32.mxu0 0.0
    %2155 = vmatmul.mubr.f32.gmra.mrb[0].mxu0 %v41
    %v2156 = vpop.f32.mrb[0].mxu0
    %v2157 = vadd.f32 %v37, %v2156
    %v2158 = vpop.f32.mrb[0].mxu0
    %2159 = vdwg.mxu0
    %v2160 = vmax.f32 %v2157, 0.0
    %v2161 = vld [vmem:[%s279] sm:$0xf]
    %v2162 = vadd.f32 %v2160, %v2161
    %s2163 = scalar_lea.vmem [#allocation6], 12
    %2164 = vst.msk [vmem:[%s2163] sm:$0xf] %vm32, %v2162
    %v2166 = vsel %vm43, %v2162, 0
    %2168 = vmatprep.subr.mxu0 0.0
    %2169 = vmatpush1.msra.mxu0 %v2166
    %2170 = vmatprep.subr.mxu0 0.0
    %2171 = vmatpush1.msra.mxu0 0.0
    %2172 = vmatprep.subr.mxu0 0.0
    %2173 = vmatpush1.msra.mxu0 0.0
    %2174 = vmatprep.subr.mxu0 0.0
    %2175 = vmatpush1.msra.mxu0 0.0
    %2176 = vmatprep.subr.mxu0 0.0
    %2177 = vmatpush1.msra.mxu0 0.0
    %2178 = vmatprep.subr.mxu0 0.0
    %2179 = vmatpush1.msra.mxu0 0.0
    %2180 = vmatprep.subr.mxu0 0.0
    %2181 = vmatpush1.msra.mxu0 0.0
    %2182 = vmatprep.subr.mxu0 0.0
    %2183 = vmatpush1.msra.mxu0 0.0
    %2184 = vmatprep.subr.mxu0 0.0
    %2185 = vmatpush1.msra.mxu0 0.0
    %2186 = vmatprep.subr.mxu0 0.0
    %2187 = vmatpush1.msra.mxu0 0.0
    %2188 = vmatprep.subr.mxu0 0.0
    %2189 = vmatpush1.msra.mxu0 0.0
    %2190 = vmatprep.subr.mxu0 0.0
    %2191 = vmatpush1.msra.mxu0 0.0
    %2192 = vmatprep.subr.mxu0 0.0
    %2193 = vmatpush1.msra.mxu0 0.0
    %2194 = vmatprep.subr.mxu0 0.0
    %2195 = vmatpush1.msra.mxu0 0.0
    %2196 = vmatprep.subr.mxu0 0.0
    %2197 = vmatpush1.msra.mxu0 0.0
    %2198 = vmatprep.subr.mxu0 0.0
    %2199 = vmatpush1.msra.mxu0 0.0
    %2200 = vmatprep.subr.mxu0 0.0
    %2201 = vmatpush1.msra.mxu0 0.0
    %2202 = vmatprep.subr.mxu0 0.0
    %2203 = vmatpush1.msra.mxu0 0.0
    %2204 = vmatprep.subr.mxu0 0.0
    %2205 = vmatpush1.msra.mxu0 0.0
    %2206 = vmatprep.subr.mxu0 0.0
    %2207 = vmatpush1.msra.mxu0 0.0
    %2208 = vmatprep.subr.mxu0 0.0
    %2209 = vmatpush1.msra.mxu0 0.0
    %2210 = vmatprep.subr.mxu0 0.0
    %2211 = vmatpush1.msra.mxu0 0.0
    %2212 = vmatprep.subr.mxu0 0.0
    %2213 = vmatpush1.msra.mxu0 0.0
    %2214 = vmatprep.subr.mxu0 0.0
    %2215 = vmatpush1.msra.mxu0 0.0
    %2216 = vmatprep.subr.mxu0 0.0
    %2217 = vmatpush1.msra.mxu0 0.0
    %2218 = vmatprep.subr.mxu0 0.0
    %2219 = vmatpush1.msra.mxu0 0.0
    %2220 = vmatprep.subr.mxu0 0.0
    %2221 = vmatpush1.msra.mxu0 0.0
    %2222 = vmatprep.subr.mxu0 0.0
    %2223 = vmatpush1.msra.mxu0 0.0
    %2224 = vmatprep.subr.mxu0 0.0
    %2225 = vmatpush1.msra.mxu0 0.0
    %2226 = vmatprep.subr.mxu0 0.0
    %2227 = vmatpush1.msra.mxu0 0.0
    %2228 = vmatprep.subr.mxu0 0.0
    %2229 = vmatpush1.msra.mxu0 0.0
    %2230 = vmatprep.subr.mxu0 0.0
    %2231 = vmatpush1.msra.mxu0 0.0
    %2232 = vmatprep.mubr.f32.mxu0 0.0
    %2233 = vmatmul.mubr.f32.gmra.mrb[0].mxu0 %v41
    %v2234 = vpop.f32.mrb[0].mxu0
    %v2235 = vadd.f32 %v37, %v2234
    %v2236 = vpop.f32.mrb[0].mxu0
    %2237 = vdwg.mxu0
    %v2238 = vmax.f32 %v2235, 0.0
    %v2239 = vld [vmem:[%s200] sm:$0xf]
    %v2240 = vadd.f32 %v2238, %v2239
    %s2241 = scalar_lea.vmem [#allocation6], 8
    %2242 = vst.msk [vmem:[%s2241] sm:$0xf] %vm32, %v2240
    %v2244 = vsel %vm43, %v2240, 0
    %2246 = vmatprep.subr.mxu0 0.0
    %2247 = vmatpush1.msra.mxu0 %v2244
    %2248 = vmatprep.subr.mxu0 0.0
    %2249 = vmatpush1.msra.mxu0 0.0
    %2250 = vmatprep.subr.mxu0 0.0
    %2251 = vmatpush1.msra.mxu0 0.0
    %2252 = vmatprep.subr.mxu0 0.0
    %2253 = vmatpush1.msra.mxu0 0.0
    %2254 = vmatprep.subr.mxu0 0.0
    %2255 = vmatpush1.msra.mxu0 0.0
    %2256 = vmatprep.subr.mxu0 0.0
    %2257 = vmatpush1.msra.mxu0 0.0
    %2258 = vmatprep.subr.mxu0 0.0
    %2259 = vmatpush1.msra.mxu0 0.0
    %2260 = vmatprep.subr.mxu0 0.0
    %2261 = vmatpush1.msra.mxu0 0.0
    %2262 = vmatprep.subr.mxu0 0.0
    %2263 = vmatpush1.msra.mxu0 0.0
    %2264 = vmatprep.subr.mxu0 0.0
    %2265 = vmatpush1.msra.mxu0 0.0
    %2266 = vmatprep.subr.mxu0 0.0
    %2267 = vmatpush1.msra.mxu0 0.0
    %2268 = vmatprep.subr.mxu0 0.0
    %2269 = vmatpush1.msra.mxu0 0.0
    %2270 = vmatprep.subr.mxu0 0.0
    %2271 = vmatpush1.msra.mxu0 0.0
    %2272 = vmatprep.subr.mxu0 0.0
    %2273 = vmatpush1.msra.mxu0 0.0
    %2274 = vmatprep.subr.mxu0 0.0
    %2275 = vmatpush1.msra.mxu0 0.0
    %2276 = vmatprep.subr.mxu0 0.0
    %2277 = vmatpush1.msra.mxu0 0.0
    %2278 = vmatprep.subr.mxu0 0.0
    %2279 = vmatpush1.msra.mxu0 0.0
    %2280 = vmatprep.subr.mxu0 0.0
    %2281 = vmatpush1.msra.mxu0 0.0
    %2282 = vmatprep.subr.mxu0 0.0
    %2283 = vmatpush1.msra.mxu0 0.0
    %2284 = vmatprep.subr.mxu0 0.0
    %2285 = vmatpush1.msra.mxu0 0.0
    %2286 = vmatprep.subr.mxu0 0.0
    %2287 = vmatpush1.msra.mxu0 0.0
    %2288 = vmatprep.subr.mxu0 0.0
    %2289 = vmatpush1.msra.mxu0 0.0
    %2290 = vmatprep.subr.mxu0 0.0
    %2291 = vmatpush1.msra.mxu0 0.0
    %2292 = vmatprep.subr.mxu0 0.0
    %2293 = vmatpush1.msra.mxu0 0.0
    %2294 = vmatprep.subr.mxu0 0.0
    %2295 = vmatpush1.msra.mxu0 0.0
    %2296 = vmatprep.subr.mxu0 0.0
    %2297 = vmatpush1.msra.mxu0 0.0
    %2298 = vmatprep.subr.mxu0 0.0
    %2299 = vmatpush1.msra.mxu0 0.0
    %2300 = vmatprep.subr.mxu0 0.0
    %2301 = vmatpush1.msra.mxu0 0.0
    %2302 = vmatprep.subr.mxu0 0.0
    %2303 = vmatpush1.msra.mxu0 0.0
    %2304 = vmatprep.subr.mxu0 0.0
    %2305 = vmatpush1.msra.mxu0 0.0
    %2306 = vmatprep.subr.mxu0 0.0
    %2307 = vmatpush1.msra.mxu0 0.0
    %2308 = vmatprep.subr.mxu0 0.0
    %2309 = vmatpush1.msra.mxu0 0.0
    %2310 = vmatprep.mubr.f32.mxu0 0.0
    %2311 = vmatmul.mubr.f32.gmra.mrb[0].mxu0 %v41
    %v2312 = vpop.f32.mrb[0].mxu0
    %v2313 = vadd.f32 %v37, %v2312
    %v2314 = vpop.f32.mrb[0].mxu0
    %2315 = vdwg.mxu0
    %v2316 = vmax.f32 %v2313, 0.0
    %v2317 = vld [vmem:[%s121] sm:$0xf]
    %v2318 = vadd.f32 %v2316, %v2317
    %s2319 = scalar_lea.vmem [#allocation6], 4
    %2320 = vst.msk [vmem:[%s2319] sm:$0xf] %vm32, %v2318
    %v2322 = vsel %vm43, %v2318, 0
    %2324 = vmatprep.subr.mxu0 0.0
    %2325 = vmatpush1.msra.mxu0 %v2322
    %2326 = vmatprep.subr.mxu0 0.0
    %2327 = vmatpush1.msra.mxu0 0.0
    %2328 = vmatprep.subr.mxu0 0.0
    %2329 = vmatpush1.msra.mxu0 0.0
    %2330 = vmatprep.subr.mxu0 0.0
    %2331 = vmatpush1.msra.mxu0 0.0
    %2332 = vmatprep.subr.mxu0 0.0
    %2333 = vmatpush1.msra.mxu0 0.0
    %2334 = vmatprep.subr.mxu0 0.0
    %2335 = vmatpush1.msra.mxu0 0.0
    %2336 = vmatprep.subr.mxu0 0.0
    %2337 = vmatpush1.msra.mxu0 0.0
    %2338 = vmatprep.subr.mxu0 0.0
    %2339 = vmatpush1.msra.mxu0 0.0
    %2340 = vmatprep.subr.mxu0 0.0
    %2341 = vmatpush1.msra.mxu0 0.0
    %2342 = vmatprep.subr.mxu0 0.0
    %2343 = vmatpush1.msra.mxu0 0.0
    %2344 = vmatprep.subr.mxu0 0.0
    %2345 = vmatpush1.msra.mxu0 0.0
    %2346 = vmatprep.subr.mxu0 0.0
    %2347 = vmatpush1.msra.mxu0 0.0
    %2348 = vmatprep.subr.mxu0 0.0
    %2349 = vmatpush1.msra.mxu0 0.0
    %2350 = vmatprep.subr.mxu0 0.0
    %2351 = vmatpush1.msra.mxu0 0.0
    %2352 = vmatprep.subr.mxu0 0.0
    %2353 = vmatpush1.msra.mxu0 0.0
    %2354 = vmatprep.subr.mxu0 0.0
    %2355 = vmatpush1.msra.mxu0 0.0
    %2356 = vmatprep.subr.mxu0 0.0
    %2357 = vmatpush1.msra.mxu0 0.0
    %2358 = vmatprep.subr.mxu0 0.0
    %2359 = vmatpush1.msra.mxu0 0.0
    %2360 = vmatprep.subr.mxu0 0.0
    %2361 = vmatpush1.msra.mxu0 0.0
    %2362 = vmatprep.subr.mxu0 0.0
    %2363 = vmatpush1.msra.mxu0 0.0
    %2364 = vmatprep.subr.mxu0 0.0
    %2365 = vmatpush1.msra.mxu0 0.0
    %2366 = vmatprep.subr.mxu0 0.0
    %2367 = vmatpush1.msra.mxu0 0.0
    %2368 = vmatprep.subr.mxu0 0.0
    %2369 = vmatpush1.msra.mxu0 0.0
    %2370 = vmatprep.subr.mxu0 0.0
    %2371 = vmatpush1.msra.mxu0 0.0
    %2372 = vmatprep.subr.mxu0 0.0
    %2373 = vmatpush1.msra.mxu0 0.0
    %2374 = vmatprep.subr.mxu0 0.0
    %2375 = vmatpush1.msra.mxu0 0.0
    %2376 = vmatprep.subr.mxu0 0.0
    %2377 = vmatpush1.msra.mxu0 0.0
    %2378 = vmatprep.subr.mxu0 0.0
    %2379 = vmatpush1.msra.mxu0 0.0
    %2380 = vmatprep.subr.mxu0 0.0
    %2381 = vmatpush1.msra.mxu0 0.0
    %2382 = vmatprep.subr.mxu0 0.0
    %2383 = vmatpush1.msra.mxu0 0.0
    %2384 = vmatprep.subr.mxu0 0.0
    %2385 = vmatpush1.msra.mxu0 0.0
    %2386 = vmatprep.subr.mxu0 0.0
    %2387 = vmatpush1.msra.mxu0 0.0
    %2388 = vmatprep.mubr.f32.mxu0 0.0
    %2389 = vmatmul.mubr.f32.gmra.mrb[0].mxu0 %v41
    %v2390 = vpop.f32.mrb[0].mxu0
    %v2391 = vadd.f32 %v37, %v2390
    %v2392 = vpop.f32.mrb[0].mxu0
    %2393 = vdwg.mxu0
    %v2394 = vmax.f32 %v2391, 0.0
    %v2395 = vld [vmem:[#allocation2] sm:$0xf]
    %v2396 = vadd.f32 %v2394, %v2395
    %2397 = vst.msk [vmem:[#allocation6] sm:$0xf] %vm32, %v2396
    // Predicated region
    $region18: #{tpu_custom_call.1} parent=1 // pred_check
      _
    $region19: #{tpu_custom_call.1} parent=1 // pred_check_branch
      %2399 = sbr.rel (0) target = $region21
    $region20: #{tpu_custom_call.1} parent=1 // pred_region
      %s2401 = ssub.s32 1024, 1024
      %2402 = vsyncadd [#allocation5], %s2401
      %s2403 = sshll.u32 [#allocation6], 4
      %s2404 = int_to_ptr.vmem [resolvable:$true] %s2403
      %2409 = dma.vmem_to_hbm [thread:$0]  %s2404, 1024, %s3, [#allocation5], 64, 64, 4
    $region21: #{tpu_custom_call.1} parent=1 // pred_fallthru
      _
    // Predicated region
    $region22: #{tpu_custom_call.1} parent=1 // pred_check
      _
    $region23: #{tpu_custom_call.1} parent=1 // pred_check_branch
      %2411 = sbr.rel (0) target = $region25
    $region24: #{tpu_custom_call.1} parent=1 // pred_region
      %2412 = dma.done [#allocation5], 1024
    $region25: #{tpu_custom_call.1} parent=1 // pred_fallthru
      _
    %2413 = vsyncpa [#allocation4], 1
    %2414 = vsyncpa [#allocation5], 1

</llo_original>
